<compile_context>
chip_gen: v5e
topology: v5e:2x2
jax: 0.10.0
libtpu: 0.0.40
codegen_flags: <defaults>
</compile_context>

<pallas_src>
import functools

import numpy as np
import jax
import jax.numpy as jnp
from jax.experimental import pallas as pl
from jax.experimental.pallas import tpu as pltpu


# -----------------------------------------------------------------------------
# Kernel A: per-point MLP (3 x 1x1 conv + folded BN (+ ReLU)) with an optional
# fused input transform, and a running max over point tiles.
# Grid: (B, N // TN); channel-major tiles (C, TN) with channels on sublanes.
# -----------------------------------------------------------------------------
def _point_mlp_max_kernel(*refs, has_transform, relu_last):
    if has_transform:
        (x_ref, t_ref, w1_ref, b1_ref, w2_ref, b2_ref, w3_ref, b3_ref,
         out_ref, acc_ref) = refs
    else:
        (x_ref, w1_ref, b1_ref, w2_ref, b2_ref, w3_ref, b3_ref,
         out_ref, acc_ref) = refs
        t_ref = None

    n = pl.program_id(1)

    @pl.when(n == 0)
    def _init():
        # -inf (not 0): the feature branch has no ReLU before its max-pool.
        acc_ref[...] = jnp.full_like(acc_ref, -jnp.inf)

    x = x_ref[0].astype(jnp.bfloat16)                                  # (C, TN)
    if t_ref is not None:
        # Fused input transform: trans^T @ x  ==  NCW form of bmm(x^T, trans).
        x = jnp.dot(t_ref[0].astype(jnp.bfloat16), x,
                    preferred_element_type=jnp.float32).astype(jnp.bfloat16)

    h = jnp.dot(w1_ref[...], x, preferred_element_type=jnp.float32) + b1_ref[...]
    h = jnp.maximum(h, 0.0).astype(jnp.bfloat16)                       # (64,  TN)
    h = jnp.dot(w2_ref[...], h, preferred_element_type=jnp.float32) + b2_ref[...]
    h = jnp.maximum(h, 0.0).astype(jnp.bfloat16)                       # (128, TN)
    h = jnp.dot(w3_ref[...], h, preferred_element_type=jnp.float32) + b3_ref[...]
    if relu_last:
        h = jnp.maximum(h, 0.0)                                        # (1024, TN) f32

    # Running max over the point tiles (lane reduction -> (1024, 1)).
    acc_ref[...] = jnp.maximum(acc_ref[...], jnp.max(h, axis=1, keepdims=True))

    @pl.when(n == pl.num_programs(1) - 1)
    def _write():
        out_ref[0] = acc_ref[...]


# -----------------------------------------------------------------------------
# Kernel B: STN FC head (fc1->bn4->relu, fc2->bn5->relu, fc3).  The identity
# matrix is folded into b6 by the wrapper, so no in-kernel iota/where/add.
# -----------------------------------------------------------------------------
def _fc_head_kernel(p_ref, w4_ref, b4_ref, w5_ref, b5_ref, w6_ref, b6_ref, out_ref):
    p = p_ref[...].astype(jnp.bfloat16)                                # (B, 1024)
    f = jnp.dot(p, w4_ref[...], preferred_element_type=jnp.float32) + b4_ref[...]
    f = jnp.maximum(f, 0.0).astype(jnp.bfloat16)                       # (B, 512)
    f = jnp.dot(f, w5_ref[...], preferred_element_type=jnp.float32) + b5_ref[...]
    f = jnp.maximum(f, 0.0).astype(jnp.bfloat16)                       # (B, 256)
    out_ref[...] = (jnp.dot(f, w6_ref[...], preferred_element_type=jnp.float32)
                    + b6_ref[...])                                     # (B, C*C)


# -----------------------------------------------------------------------------
# Wrappers
# -----------------------------------------------------------------------------
def _point_mlp_max_pool(x, conv_w, conv_b, trans_t, relu_last, tile_n):
    """x: (B, C, N) f32; conv_w[i]: (Cout, Cin) bf16; conv_b[i]: (Cout, 1) f32.
    Returns the per-batch max-pooled feature, shape (B, Cout_last) f32."""
    B, C, N = x.shape
    tn = tile_n if (tile_n % 128 == 0 and N % tile_n == 0) else N
    c_out = conv_w[-1].shape[0]

    const2 = lambda b, n: (0, 0)
    operands = [x]
    in_specs = [pl.BlockSpec((1, C, tn), lambda b, n: (b, 0, n))]
    if trans_t is not None:
        operands.append(trans_t)
        in_specs.append(pl.BlockSpec((1, C, C), lambda b, n: (b, 0, 0)))
    for w, bias in zip(conv_w, conv_b):
        operands += [w, bias]
        in_specs += [pl.BlockSpec(w.shape, const2), pl.BlockSpec(bias.shape, const2)]

    pooled = pl.pallas_call(
        functools.partial(_point_mlp_max_kernel,
                          has_transform=trans_t is not None,
                          relu_last=relu_last),
        out_shape=jax.ShapeDtypeStruct((B, c_out, 1), jnp.float32),
        grid=(B, N // tn),
        in_specs=in_specs,
        out_specs=pl.BlockSpec((1, c_out, 1), lambda b, n: (b, 0, 0)),
        scratch_shapes=[pltpu.VMEM((c_out, 1), jnp.float32)],
        compiler_params=pltpu.CompilerParams(
            dimension_semantics=("parallel", "arbitrary")),
    )(*operands)
    return pooled.reshape(B, c_out)


def _stn_fc_head(pooled, fc_w, fc_b):
    B = pooled.shape[0]
    w4, w5, w6 = fc_w
    b4, b5, b6 = fc_b
    return pl.pallas_call(
        _fc_head_kernel,
        out_shape=jax.ShapeDtypeStruct((B, w6.shape[1]), jnp.float32),
    )(pooled, w4, b4, w5, b5, w6, b6)


def pointnetfeat_forward(x, params, tile_n=512):
    """PointNetfeat forward (global_feat=True, feature_transform=False).

    x: (B, C, N) float32 (PyTorch NCW).  Returns (global_feat (B,1024),
    trans (B,C,C), trans_feat=None)."""
    B, C, N = x.shape
    stn, feat = params["stn"], params["feat"]

    # --- STNkd(k=C): point MLP + max pool + FC head (identity folded in b6) ---
    pooled = _point_mlp_max_pool(x, stn["conv_w"], stn["conv_b"],
                                 trans_t=None, relu_last=True, tile_n=tile_n)
    trans = _stn_fc_head(pooled, stn["fc_w"], stn["fc_b"]).reshape(B, C, C)

    # --- feature MLP with the input-transform bmm fused into the kernel ---
    trans_t = jnp.transpose(trans, (0, 2, 1))          # tiny (B, C, C)
    global_feat = _point_mlp_max_pool(x, feat["conv_w"], feat["conv_b"],
                                      trans_t=trans_t, relu_last=False,
                                      tile_n=tile_n)
    # TODO(synk): global_feat=False (per-point concat output) and
    # feature_transform=True (fstn) branches are not implemented (defaults only).
    return global_feat, trans, None


# -----------------------------------------------------------------------------
# Deterministic parameters (Conv/Linear weights + eval-mode BatchNorm folded)
# -----------------------------------------------------------------------------
def _rand_bn(key, cout):
    kg, kb, km, kv = jax.random.split(key, 4)
    gamma = 1.0 + 0.1 * jax.random.normal(kg, (cout,), jnp.float32)
    beta = 0.1 * jax.random.normal(kb, (cout,), jnp.float32)
    mean = 0.1 * jax.random.normal(km, (cout,), jnp.float32)
    var = 0.5 + 0.5 * jnp.abs(jax.random.normal(kv, (cout,), jnp.float32))
    return gamma, beta, mean, var


def _conv_bn_layer(key, cin, cout, eps=1e-5):
    """1x1 Conv1d with folded inference BatchNorm; channel-major weight (cout, cin)."""
    kw, kb, kbn = jax.random.split(key, 3)
    w = 0.1 * jax.random.normal(kw, (cout, cin), jnp.float32)
    b = 0.1 * jax.random.normal(kb, (cout,), jnp.float32)
    gamma, beta, mean, var = _rand_bn(kbn, cout)
    scale = gamma / jnp.sqrt(var + eps)
    w = w * scale[:, None]
    b = (b - mean) * scale + beta
    return w.astype(jnp.bfloat16), b.reshape(cout, 1).astype(jnp.float32)


def _fc_layer(key, cin, cout, with_bn, eps=1e-5):
    kw, kb, kbn = jax.random.split(key, 3)
    w = 0.1 * jax.random.normal(kw, (cin, cout), jnp.float32)
    b = 0.1 * jax.random.normal(kb, (cout,), jnp.float32)
    if with_bn:
        gamma, beta, mean, var = _rand_bn(kbn, cout)
        scale = gamma / jnp.sqrt(var + eps)
        w = w * scale[None, :]
        b = (b - mean) * scale + beta
    return w.astype(jnp.bfloat16), b.reshape(1, cout).astype(jnp.float32)


def make_params(C, key):
    ks = jax.random.split(key, 9)
    stn_conv = [_conv_bn_layer(ks[0], C, 64),
                _conv_bn_layer(ks[1], 64, 128),
                _conv_bn_layer(ks[2], 128, 1024)]
    w4, b4 = _fc_layer(ks[3], 1024, 512, True)
    w5, b5 = _fc_layer(ks[4], 512, 256, True)
    w6, b6 = _fc_layer(ks[5], 256, C * C, False)
    b6 = b6 + jnp.eye(C, dtype=jnp.float32).reshape(1, C * C)   # fold STN identity add
    feat_conv = [_conv_bn_layer(ks[6], C, 64),
                 _conv_bn_layer(ks[7], 64, 128),
                 _conv_bn_layer(ks[8], 128, 1024)]
    return {
        "stn": {"conv_w": tuple(w for w, _ in stn_conv),
                "conv_b": tuple(b for _, b in stn_conv),
                "fc_w": (w4, w5, w6), "fc_b": (b4, b5, b6)},
        "feat": {"conv_w": tuple(w for w, _ in feat_conv),
                 "conv_b": tuple(b for _, b in feat_conv)},
    }


# -----------------------------------------------------------------------------
# Pure-JAX reference of the same folded / bf16 math (sanity check)
# -----------------------------------------------------------------------------
def _reference(x, params, C):
    stn, feat = params["stn"], params["feat"]

    def point_mlp(h, conv_w, conv_b, relu_last):
        last = len(conv_w) - 1
        for i, (w, b) in enumerate(zip(conv_w, conv_b)):
            a = jnp.einsum("oi,bin->bon", w, h,
                           preferred_element_type=jnp.float32) + b[None]
            if i < last or relu_last:
                a = jnp.maximum(a, 0.0)
            h = a.astype(jnp.bfloat16) if i < last else a
        return h                                                     # (B, 1024, N) f32

    xb = x.astype(jnp.bfloat16)
    pooled = jnp.max(point_mlp(xb, stn["conv_w"], stn["conv_b"], True), axis=2)

    w4, w5, w6 = stn["fc_w"]
    b4, b5, b6 = stn["fc_b"]
    f = jnp.maximum(jnp.dot(pooled.astype(jnp.bfloat16), w4,
                            preferred_element_type=jnp.float32) + b4, 0.0)
    f = jnp.maximum(jnp.dot(f.astype(jnp.bfloat16), w5,
                            preferred_element_type=jnp.float32) + b5, 0.0)
    trans = (jnp.dot(f.astype(jnp.bfloat16), w6,
                     preferred_element_type=jnp.float32) + b6).reshape(-1, C, C)

    xt = jnp.einsum("bcd,bcn->bdn", trans.astype(jnp.bfloat16), xb,
                    preferred_element_type=jnp.float32).astype(jnp.bfloat16)
    gfeat = jnp.max(point_mlp(xt, feat["conv_w"], feat["conv_b"], False), axis=2)
    return gfeat, trans, None


if __name__ == "__main__":
    B, C, N = 2, 6, 512           # PointNetfeat default C=6; N multiple of the 128-tile

    key = jax.random.PRNGKey(0)
    kx, kp = jax.random.split(key)
    x = jax.random.normal(kx, (B, C, N), jnp.float32)    # PyTorch (B, C, N)
    params = make_params(C, kp)

    gfeat, trans, trans_feat = pointnetfeat_forward(x, params, tile_n=128)
    gfeat = jax.block_until_ready(gfeat)
    trans = jax.block_until_ready(trans)

    ref_g, ref_t, _ = _reference(x, params, C)
    ref_g = jax.block_until_ready(ref_g)
    ref_t = jax.block_until_ready(ref_t)

    assert gfeat.shape == (B, 1024)
    assert trans.shape == (B, C, C)
    assert trans_feat is None
    np.testing.assert_allclose(np.asarray(gfeat), np.asarray(ref_g),
                               rtol=2e-2, atol=2e-2)
    np.testing.assert_allclose(np.asarray(trans), np.asarray(ref_t),
                               rtol=2e-2, atol=2e-2)
    print("KERNEL_OK")
</pallas_src>

<mosaic_0001>
module attributes {stable_mosaic.version = 11 : i64} {
  func.func @_point_mlp_max_kernel(%arg0: i32, %arg1: i32, %arg2: memref<1x6x128xf32, #tpu.memory_space<vmem>>, %arg3: memref<64x6xbf16, #tpu.memory_space<vmem>>, %arg4: memref<64x1xf32, #tpu.memory_space<vmem>>, %arg5: memref<128x64xbf16, #tpu.memory_space<vmem>>, %arg6: memref<128x1xf32, #tpu.memory_space<vmem>>, %arg7: memref<1024x128xbf16, #tpu.memory_space<vmem>>, %arg8: memref<1024x1xf32, #tpu.memory_space<vmem>>, %arg9: memref<1x1024x1xf32, #tpu.memory_space<vmem>>, %arg10: memref<1024x1xf32, #tpu.memory_space<vmem>>) attributes {dimension_semantics = [#tpu.dimension_semantics<parallel>, #tpu.dimension_semantics<arbitrary>], iteration_bounds = array<i64: 2, 4>, scalar_prefetch = 0 : i64, scratch_operands = 1 : i64, tpu.core_type = #tpu.core_type<tc>, window_params = [{transform_indices = @transform_0, window_bounds = array<i64: 1, 6, 128>}, {pipeline_mode = #tpu.pipeline_mode<synchronous>, transform_indices = @transform_1, window_bounds = array<i64: 64, 6>}, {pipeline_mode = #tpu.pipeline_mode<synchronous>, transform_indices = @transform_2, window_bounds = array<i64: 64, 1>}, {pipeline_mode = #tpu.pipeline_mode<synchronous>, transform_indices = @transform_3, window_bounds = array<i64: 128, 64>}, {pipeline_mode = #tpu.pipeline_mode<synchronous>, transform_indices = @transform_4, window_bounds = array<i64: 128, 1>}, {pipeline_mode = #tpu.pipeline_mode<synchronous>, transform_indices = @transform_5, window_bounds = array<i64: 1024, 128>}, {pipeline_mode = #tpu.pipeline_mode<synchronous>, transform_indices = @transform_6, window_bounds = array<i64: 1024, 1>}, {transform_indices = @transform_7, window_bounds = array<i64: 1, 1024, 1>}]} {
    %c0_i32 = arith.constant 0 : i32
    %0 = arith.cmpi eq, %arg1, %c0_i32 : i32
    %1 = arith.extui %0 : i1 to i32
    %c0_i32_0 = arith.constant 0 : i32
    %2 = arith.cmpi ne, %1, %c0_i32_0 : i32
    scf.if %2 {
      %cst_26 = arith.constant 0xFF800000 : f32
      %37 = vector.broadcast %cst_26 : f32 to vector<1024x1xf32>
      %c0_27 = arith.constant 0 : index
      %c0_28 = arith.constant 0 : index
      %38 = vector.load %arg10[%c0_27, %c0_28] : memref<1024x1xf32, #tpu.memory_space<vmem>>, vector<1024x1xf32>
      tpu.vector_store %arg10[%c0_27, %c0_28], %37 {strides = array<i32>} : memref<1024x1xf32, #tpu.memory_space<vmem>>, vector<1024x1xf32>,
    } else {
    }
    %c0 = arith.constant 0 : index
    %c0_1 = arith.constant 0 : index
    %c0_2 = arith.constant 0 : index
    %3 = vector.load %arg2[%c0, %c0_1, %c0_2] : memref<1x6x128xf32, #tpu.memory_space<vmem>>, vector<1x6x128xf32>
    %4 = vector.shape_cast %3 : vector<1x6x128xf32> to vector<6x128xf32>
    %5 = arith.truncf %4 : vector<6x128xf32> to vector<6x128xbf16>
    %c0_3 = arith.constant 0 : index
    %c0_4 = arith.constant 0 : index
    %6 = vector.load %arg3[%c0_3, %c0_4] : memref<64x6xbf16, #tpu.memory_space<vmem>>, vector<64x6xbf16>
    %cst = arith.constant dense<0.000000e+00> : vector<64x128xf32>
    %7 = tpu.matmul %6, %5, %cst {dimension_numbers = #tpu.dot_dimension_numbers<[1], [0], [0], [1], [0, 0, 1, 1], [], []>} : vector<64x6xbf16>, vector<6x128xbf16>, vector<64x128xf32> -> vector<64x128xf32>
    %c0_5 = arith.constant 0 : index
    %c0_6 = arith.constant 0 : index
    %8 = vector.load %arg4[%c0_5, %c0_6] : memref<64x1xf32, #tpu.memory_space<vmem>>, vector<64x1xf32>
    %9 = vector.broadcast %8 : vector<64x1xf32> to vector<64x128xf32>
    %10 = arith.addf %7, %9 : vector<64x128xf32>
    %cst_7 = arith.constant 0.000000e+00 : f32
    %11 = vector.broadcast %cst_7 : f32 to vector<64x128xf32>
    %12 = arith.maximumf %10, %11 : vector<64x128xf32>
    %13 = arith.truncf %12 : vector<64x128xf32> to vector<64x128xbf16>
    %c0_8 = arith.constant 0 : index
    %c0_9 = arith.constant 0 : index
    %14 = vector.load %arg5[%c0_8, %c0_9] : memref<128x64xbf16, #tpu.memory_space<vmem>>, vector<128x64xbf16>
    %cst_10 = arith.constant dense<0.000000e+00> : vector<128x128xf32>
    %15 = tpu.matmul %14, %13, %cst_10 {dimension_numbers = #tpu.dot_dimension_numbers<[1], [0], [0], [1], [0, 0, 1, 1], [], []>} : vector<128x64xbf16>, vector<64x128xbf16>, vector<128x128xf32> -> vector<128x128xf32>
    %c0_11 = arith.constant 0 : index
    %c0_12 = arith.constant 0 : index
    %16 = vector.load %arg6[%c0_11, %c0_12] : memref<128x1xf32, #tpu.memory_space<vmem>>, vector<128x1xf32>
    %17 = vector.broadcast %16 : vector<128x1xf32> to vector<128x128xf32>
    %18 = arith.addf %15, %17 : vector<128x128xf32>
    %cst_13 = arith.constant 0.000000e+00 : f32
    %19 = vector.broadcast %cst_13 : f32 to vector<128x128xf32>
    %20 = arith.maximumf %18, %19 : vector<128x128xf32>
    %21 = arith.truncf %20 : vector<128x128xf32> to vector<128x128xbf16>
    %c0_14 = arith.constant 0 : index
    %c0_15 = arith.constant 0 : index
    %22 = vector.load %arg7[%c0_14, %c0_15] : memref<1024x128xbf16, #tpu.memory_space<vmem>>, vector<1024x128xbf16>
    %cst_16 = arith.constant dense<0.000000e+00> : vector<1024x128xf32>
    %23 = tpu.matmul %22, %21, %cst_16 {dimension_numbers = #tpu.dot_dimension_numbers<[1], [0], [0], [1], [0, 0, 1, 1], [], []>} : vector<1024x128xbf16>, vector<128x128xbf16>, vector<1024x128xf32> -> vector<1024x128xf32>
    %c0_17 = arith.constant 0 : index
    %c0_18 = arith.constant 0 : index
    %24 = vector.load %arg8[%c0_17, %c0_18] : memref<1024x1xf32, #tpu.memory_space<vmem>>, vector<1024x1xf32>
    %25 = vector.broadcast %24 : vector<1024x1xf32> to vector<1024x128xf32>
    %26 = arith.addf %23, %25 : vector<1024x128xf32>
    %cst_19 = arith.constant 0.000000e+00 : f32
    %27 = vector.broadcast %cst_19 : f32 to vector<1024x128xf32>
    %28 = arith.maximumf %26, %27 : vector<1024x128xf32>
    %c0_20 = arith.constant 0 : index
    %c0_21 = arith.constant 0 : index
    %29 = vector.load %arg10[%c0_20, %c0_21] : memref<1024x1xf32, #tpu.memory_space<vmem>>, vector<1024x1xf32>
    %cst_22 = arith.constant dense<0xFF800000> : vector<1024xf32>
    %30 = vector.multi_reduction <maximumf>, %28, %cst_22 [1] : vector<1024x128xf32> to vector<1024xf32>
    %31 = vector.shape_cast %30 : vector<1024xf32> to vector<1024x1xf32>
    %32 = arith.maximumf %29, %31 : vector<1024x1xf32>
    %c0_23 = arith.constant 0 : index
    %c0_24 = arith.constant 0 : index
    %33 = vector.load %arg10[%c0_23, %c0_24] : memref<1024x1xf32, #tpu.memory_space<vmem>>, vector<1024x1xf32>
    tpu.vector_store %arg10[%c0_23, %c0_24], %32 {strides = array<i32>} : memref<1024x1xf32, #tpu.memory_space<vmem>>, vector<1024x1xf32>,
    %c3_i32 = arith.constant 3 : i32
    %34 = arith.cmpi eq, %arg1, %c3_i32 : i32
    %35 = arith.extui %34 : i1 to i32
    %c0_i32_25 = arith.constant 0 : i32
    %36 = arith.cmpi ne, %35, %c0_i32_25 : i32
    scf.if %36 {
      %c0_26 = arith.constant 0 : index
      %c0_27 = arith.constant 0 : index
      %37 = vector.load %arg10[%c0_26, %c0_27] : memref<1024x1xf32, #tpu.memory_space<vmem>>, vector<1024x1xf32>
      %c0_28 = arith.constant 0 : index
      %c0_29 = arith.constant 0 : index
      %c0_30 = arith.constant 0 : index
      %38 = vector.load %arg9[%c0_28, %c0_29, %c0_30] : memref<1x1024x1xf32, #tpu.memory_space<vmem>>, vector<1x1024x1xf32>
      %39 = vector.shape_cast %38 : vector<1x1024x1xf32> to vector<1024x1xf32>
      %40 = vector.shape_cast %37 : vector<1024x1xf32> to vector<1x1024x1xf32>
      tpu.vector_store %arg9[%c0_28, %c0_29, %c0_30], %40 {strides = array<i32>} : memref<1x1024x1xf32, #tpu.memory_space<vmem>>, vector<1x1024x1xf32>,
    } else {
    }
    return
  }
  func.func @transform_0(%arg0: i32, %arg1: i32) -> (i32, i32, i32) {
    %c0_i32 = arith.constant 0 : i32
    %c0_i32_0 = arith.constant 0 : i32
    return %arg0, %c0_i32, %arg1 : i32, i32, i32
  }
  func.func @transform_1(%arg0: i32, %arg1: i32) -> (i32, i32) {
    %c0_i32 = arith.constant 0 : i32
    %c0_i32_0 = arith.constant 0 : i32
    %c0_i32_1 = arith.constant 0 : i32
    return %c0_i32, %c0_i32_0 : i32, i32
  }
  func.func @transform_2(%arg0: i32, %arg1: i32) -> (i32, i32) {
    %c0_i32 = arith.constant 0 : i32
    %c0_i32_0 = arith.constant 0 : i32
    %c0_i32_1 = arith.constant 0 : i32
    return %c0_i32, %c0_i32_0 : i32, i32
  }
  func.func @transform_3(%arg0: i32, %arg1: i32) -> (i32, i32) {
    %c0_i32 = arith.constant 0 : i32
    %c0_i32_0 = arith.constant 0 : i32
    %c0_i32_1 = arith.constant 0 : i32
    return %c0_i32, %c0_i32_0 : i32, i32
  }
  func.func @transform_4(%arg0: i32, %arg1: i32) -> (i32, i32) {
    %c0_i32 = arith.constant 0 : i32
    %c0_i32_0 = arith.constant 0 : i32
    %c0_i32_1 = arith.constant 0 : i32
    return %c0_i32, %c0_i32_0 : i32, i32
  }
  func.func @transform_5(%arg0: i32, %arg1: i32) -> (i32, i32) {
    %c0_i32 = arith.constant 0 : i32
    %c0_i32_0 = arith.constant 0 : i32
    %c0_i32_1 = arith.constant 0 : i32
    return %c0_i32, %c0_i32_0 : i32, i32
  }
  func.func @transform_6(%arg0: i32, %arg1: i32) -> (i32, i32) {
    %c0_i32 = arith.constant 0 : i32
    %c0_i32_0 = arith.constant 0 : i32
    %c0_i32_1 = arith.constant 0 : i32
    return %c0_i32, %c0_i32_0 : i32, i32
  }
  func.func @transform_7(%arg0: i32, %arg1: i32) -> (i32, i32, i32) {
    %c0_i32 = arith.constant 0 : i32
    %c0_i32_0 = arith.constant 0 : i32
    %c0_i32_1 = arith.constant 0 : i32
    return %arg0, %c0_i32, %c0_i32_0 : i32, i32, i32
  }
}

</mosaic_0001>

<llo_original>
// kernel: tpu_custom_call.1
$region0: #{tpu_custom_call.1}
  #allocation0 [shape = 'u32[]', space=smem, size = 0x4, offset = 0x4, fixed_abs, tag = 'smem constant byte address 0x4 - core index']
  #allocation1 [shape = 'u32[72,128]{1,0:T(1,128)}', space=vmem, size = 0x9000, scoped, tag = 'internal scratch']
  #allocation2 [shape = 'f32[1024,1]{1,0:T(8,128)}', space=vmem, size = 0x80000, scoped, tag = 'scratch operand']
  %s0 = inlined_call_operand.vmem [shape: f32[2,6,512], index: 0, kind: input, shape index: {}]
  %s1 = inlined_call_operand.vmem [shape: bf16[64,6], index: 1, kind: input, shape index: {}]
  %s2 = inlined_call_operand.vmem [shape: f32[64,1], index: 2, kind: input, shape index: {}]
  %s3 = inlined_call_operand.vmem [shape: bf16[128,64], index: 3, kind: input, shape index: {}]
  %s4 = inlined_call_operand.vmem [shape: f32[128,1], index: 4, kind: input, shape index: {}]
  %s5 = inlined_call_operand.vmem [shape: bf16[1024,128], index: 5, kind: input, shape index: {}]
  %s6 = inlined_call_operand.vmem [shape: f32[1024,1], index: 6, kind: input, shape index: {}]
  %s7 = inlined_call_operand.vmem [shape: f32[2,1024,1], index: 7, kind: output, shape index: {}]
  %s8 = sld [smem:[#allocation0]]
  $region69: #{tpu_custom_call.1} parent=0
    _
  %s10 = ssub.s32 1, %s8
  %s11 = scalar_select 0, %s10, %s8
  loop: start=0, step=1, limit=10
  $region2: #{tpu_custom_call.1} parent=0 // loop_pre_header
    _
  $region3: #{tpu_custom_call.1} parent=0 // loop_header
    %s13 = sphi 0, %s17
    %p14 = scmp.ge.s32.totalorder %s13, 10
    %s20 = sphi 0, %s32
    %s21 = sphi 0, %s28
    %s22 = sphi 0, %s20
    %s23 = sphi 0, %s21
    %s24 = sphi 0, %s22
    %s25 = sphi 0, %s23
    %s37 = sphi 0, %s39
    %s40 = sphi 0, %s37
    %s41 = sphi 0, %s40
    %s57 = sphi 0, %s41
    %s61 = sphi 0, %s61
    %s63 = sphi 0, %s61
    %s64 = sphi 0, %s63
    %s78 = sphi 0, %s64
    %s82 = sphi 0, %s82
    %s84 = sphi 0, %s82
    %s85 = sphi 0, %s84
    %s99 = sphi 0, %s85
    %s103 = sphi 0, %s103
    %s105 = sphi 0, %s103
    %s106 = sphi 0, %s105
    %s120 = sphi 0, %s106
    %s124 = sphi 0, %s124
    %s126 = sphi 0, %s124
    %s127 = sphi 0, %s126
    %s141 = sphi 0, %s127
    %s145 = sphi 0, %s145
    %s147 = sphi 0, %s145
    %s148 = sphi 0, %s147
    %s162 = sphi 0, %s148
    %s166 = sphi 0, %s166
    %s168 = sphi 0, %s166
    %s169 = sphi 0, %s168
    %s183 = sphi 0, %s169
    %s189 = sphi 0, %s191
    %s192 = sphi 0, %s189
    %s193 = sphi 0, %s192
    %s209 = sphi 0, %s193
  $region4: #{tpu_custom_call.1} parent=0 // loop_header_branch
    %16 = sbr.rel (%p14) target = $region8
  $region5: #{tpu_custom_call.1} parent=0 // loop_body
    %s18 = ssub.s32 %s13, 1
    %s19 = ssub.s32 %s13, 2
    %s26 = sadd.s32 1, %s21
    %p27 = scmp.ge.s32.totalorder %s26, 4
    %s28 = scalar_select %p27, 0, %s26
    %s29 = sadd.s32 1, %s20
    %s30 = scalar_select %p27, %s29, %s20
    %p31 = scmp.ge.s32.totalorder %s30, 2
    %s32 = scalar_select %p31, 0, %s30
    %s33 = ssub.s32 %s20, %s32
    %s34 = ssub.s32 %s21, %s28
    %s35 = sor.u32 %s33, %s34
    %p36 = scmp.eq.s32.totalorder %s35, 0
    %s38 = sadd.s32 %s37, 1
    %s39 = scalar_select %p36, %s37, %s38
    %p42 = pneg %p36
    %p43 = scmp.eq.s32.totalorder %s13, 7
    %p44 = por %p42, %p43
    %p45 = scmp.ne.s32.totalorder %s37, %s40
    %p46 = scmp.eq.s32.totalorder %s13, 0
    %p47 = por %p45, %p46
    %p48 = scmp.ne.s32.totalorder %s37, %s40
    %p49 = scmp.eq.s32.totalorder %s18, 7
    %p50 = por %p48, %p49
    %p51 = scmp.ne.s32.totalorder %s40, %s41
    %p52 = scmp.eq.s32.totalorder %s18, 0
    %p53 = por %p51, %p52
    %p54 = scmp.ne.s32.totalorder %s40, %s41
    %p55 = scmp.eq.s32.totalorder %s19, 7
    %p56 = por %p54, %p55
    %p58 = scmp.ne.s32.totalorder %s41, %s57
    %p59 = scmp.eq.s32.totalorder %s19, 0
    %p60 = por %p58, %p59
    %s62 = sadd.s32 %s61, 1
    %p65 = scmp.eq.s32.totalorder %s13, 7
    %p66 = scmp.ne.s32.totalorder %s61, %s63
    %p67 = scmp.eq.s32.totalorder %s13, 0
    %p68 = por %p66, %p67
    %p69 = scmp.ne.s32.totalorder %s61, %s63
    %p70 = scmp.eq.s32.totalorder %s18, 7
    %p71 = por %p69, %p70
    %p72 = scmp.ne.s32.totalorder %s63, %s64
    %p73 = scmp.eq.s32.totalorder %s18, 0
    %p74 = por %p72, %p73
    %p75 = scmp.ne.s32.totalorder %s63, %s64
    %p76 = scmp.eq.s32.totalorder %s19, 7
    %p77 = por %p75, %p76
    %p79 = scmp.ne.s32.totalorder %s64, %s78
    %p80 = scmp.eq.s32.totalorder %s19, 0
    %p81 = por %p79, %p80
    %s83 = sadd.s32 %s82, 1
    %p86 = scmp.eq.s32.totalorder %s13, 7
    %p87 = scmp.ne.s32.totalorder %s82, %s84
    %p88 = scmp.eq.s32.totalorder %s13, 0
    %p89 = por %p87, %p88
    %p90 = scmp.ne.s32.totalorder %s82, %s84
    %p91 = scmp.eq.s32.totalorder %s18, 7
    %p92 = por %p90, %p91
    %p93 = scmp.ne.s32.totalorder %s84, %s85
    %p94 = scmp.eq.s32.totalorder %s18, 0
    %p95 = por %p93, %p94
    %p96 = scmp.ne.s32.totalorder %s84, %s85
    %p97 = scmp.eq.s32.totalorder %s19, 7
    %p98 = por %p96, %p97
    %p100 = scmp.ne.s32.totalorder %s85, %s99
    %p101 = scmp.eq.s32.totalorder %s19, 0
    %p102 = por %p100, %p101
    %s104 = sadd.s32 %s103, 1
    %p107 = scmp.eq.s32.totalorder %s13, 7
    %p108 = scmp.ne.s32.totalorder %s103, %s105
    %p109 = scmp.eq.s32.totalorder %s13, 0
    %p110 = por %p108, %p109
    %p111 = scmp.ne.s32.totalorder %s103, %s105
    %p112 = scmp.eq.s32.totalorder %s18, 7
    %p113 = por %p111, %p112
    %p114 = scmp.ne.s32.totalorder %s105, %s106
    %p115 = scmp.eq.s32.totalorder %s18, 0
    %p116 = por %p114, %p115
    %p117 = scmp.ne.s32.totalorder %s105, %s106
    %p118 = scmp.eq.s32.totalorder %s19, 7
    %p119 = por %p117, %p118
    %p121 = scmp.ne.s32.totalorder %s106, %s120
    %p122 = scmp.eq.s32.totalorder %s19, 0
    %p123 = por %p121, %p122
    %s125 = sadd.s32 %s124, 1
    %p128 = scmp.eq.s32.totalorder %s13, 7
    %p129 = scmp.ne.s32.totalorder %s124, %s126
    %p130 = scmp.eq.s32.totalorder %s13, 0
    %p131 = por %p129, %p130
    %p132 = scmp.ne.s32.totalorder %s124, %s126
    %p133 = scmp.eq.s32.totalorder %s18, 7
    %p134 = por %p132, %p133
    %p135 = scmp.ne.s32.totalorder %s126, %s127
    %p136 = scmp.eq.s32.totalorder %s18, 0
    %p137 = por %p135, %p136
    %p138 = scmp.ne.s32.totalorder %s126, %s127
    %p139 = scmp.eq.s32.totalorder %s19, 7
    %p140 = por %p138, %p139
    %p142 = scmp.ne.s32.totalorder %s127, %s141
    %p143 = scmp.eq.s32.totalorder %s19, 0
    %p144 = por %p142, %p143
    %s146 = sadd.s32 %s145, 1
    %p149 = scmp.eq.s32.totalorder %s13, 7
    %p150 = scmp.ne.s32.totalorder %s145, %s147
    %p151 = scmp.eq.s32.totalorder %s13, 0
    %p152 = por %p150, %p151
    %p153 = scmp.ne.s32.totalorder %s145, %s147
    %p154 = scmp.eq.s32.totalorder %s18, 7
    %p155 = por %p153, %p154
    %p156 = scmp.ne.s32.totalorder %s147, %s148
    %p157 = scmp.eq.s32.totalorder %s18, 0
    %p158 = por %p156, %p157
    %p159 = scmp.ne.s32.totalorder %s147, %s148
    %p160 = scmp.eq.s32.totalorder %s19, 7
    %p161 = por %p159, %p160
    %p163 = scmp.ne.s32.totalorder %s148, %s162
    %p164 = scmp.eq.s32.totalorder %s19, 0
    %p165 = por %p163, %p164
    %s167 = sadd.s32 %s166, 1
    %p170 = scmp.eq.s32.totalorder %s13, 7
    %p171 = scmp.ne.s32.totalorder %s166, %s168
    %p172 = scmp.eq.s32.totalorder %s13, 0
    %p173 = por %p171, %p172
    %p174 = scmp.ne.s32.totalorder %s166, %s168
    %p175 = scmp.eq.s32.totalorder %s18, 7
    %p176 = por %p174, %p175
    %p177 = scmp.ne.s32.totalorder %s168, %s169
    %p178 = scmp.eq.s32.totalorder %s18, 0
    %p179 = por %p177, %p178
    %p180 = scmp.ne.s32.totalorder %s168, %s169
    %p181 = scmp.eq.s32.totalorder %s19, 7
    %p182 = por %p180, %p181
    %p184 = scmp.ne.s32.totalorder %s169, %s183
    %p185 = scmp.eq.s32.totalorder %s19, 0
    %p186 = por %p184, %p185
    %s187 = ssub.s32 %s20, %s32
    %p188 = scmp.eq.s32.totalorder %s187, 0
    %s190 = sadd.s32 %s189, 1
    %s191 = scalar_select %p188, %s189, %s190
    %p194 = pneg %p188
    %p195 = scmp.eq.s32.totalorder %s13, 7
    %p196 = por %p194, %p195
    %p197 = scmp.ne.s32.totalorder %s189, %s192
    %p198 = scmp.eq.s32.totalorder %s13, 0
    %p199 = por %p197, %p198
    %p200 = scmp.ne.s32.totalorder %s189, %s192
    %p201 = scmp.eq.s32.totalorder %s18, 7
    %p202 = por %p200, %p201
    %p203 = scmp.ne.s32.totalorder %s192, %s193
    %p204 = scmp.eq.s32.totalorder %s18, 0
    %p205 = por %p203, %p204
    %p206 = scmp.ne.s32.totalorder %s192, %s193
    %p207 = scmp.eq.s32.totalorder %s19, 7
    %p208 = por %p206, %p207
    %p210 = scmp.ne.s32.totalorder %s193, %s209
    %p211 = scmp.eq.s32.totalorder %s19, 0
    %p212 = por %p210, %p211
    %p213 = scmp.le.s32.totalorder 1, %s13
    %p214 = scmp.lt.s32.totalorder %s13, 9
    %p215 = pnand %p213, %p214
    %p216 = pneg %p215
    // Predicated region
    $region9: #{tpu_custom_call.1} parent=5 // pred_check
      _
    $region10: #{tpu_custom_call.1} parent=5 // pred_check_branch
      %218 = sbr.rel (%p215) target = $region12
    $region11: #{tpu_custom_call.1} parent=5 // pred_region
      %s219 = ssub.s32 %s13, 1
      // Predicated region
      $region13: #{tpu_custom_call.1} parent=11 // pred_check
        %p220 = pneg %p74
      $region14: #{tpu_custom_call.1} parent=11 // pred_check_branch
        %222 = sbr.rel (%p220) target = $region16
      $region15: #{tpu_custom_call.1} parent=11 // pred_region
        _
      $region16: #{tpu_custom_call.1} parent=11 // pred_fallthru
        _
      // Predicated region
      $region17: #{tpu_custom_call.1} parent=11 // pred_check
        %p223 = pneg %p95
      $region18: #{tpu_custom_call.1} parent=11 // pred_check_branch
        %225 = sbr.rel (%p223) target = $region20
      $region19: #{tpu_custom_call.1} parent=11 // pred_region
        _
      $region20: #{tpu_custom_call.1} parent=11 // pred_fallthru
        _
      // Predicated region
      $region21: #{tpu_custom_call.1} parent=11 // pred_check
        %p226 = pneg %p116
      $region22: #{tpu_custom_call.1} parent=11 // pred_check_branch
        %228 = sbr.rel (%p226) target = $region24
      $region23: #{tpu_custom_call.1} parent=11 // pred_region
        _
      $region24: #{tpu_custom_call.1} parent=11 // pred_fallthru
        _
      // Predicated region
      $region25: #{tpu_custom_call.1} parent=11 // pred_check
        %p229 = pneg %p137
      $region26: #{tpu_custom_call.1} parent=11 // pred_check_branch
        %231 = sbr.rel (%p229) target = $region28
      $region27: #{tpu_custom_call.1} parent=11 // pred_region
        _
      $region28: #{tpu_custom_call.1} parent=11 // pred_fallthru
        _
      // Predicated region
      $region29: #{tpu_custom_call.1} parent=11 // pred_check
        %p232 = pneg %p158
      $region30: #{tpu_custom_call.1} parent=11 // pred_check_branch
        %234 = sbr.rel (%p232) target = $region32
      $region31: #{tpu_custom_call.1} parent=11 // pred_region
        _
      $region32: #{tpu_custom_call.1} parent=11 // pred_fallthru
        _
      // Predicated region
      $region33: #{tpu_custom_call.1} parent=11 // pred_check
        %p235 = pneg %p179
      $region34: #{tpu_custom_call.1} parent=11 // pred_check_branch
        %237 = sbr.rel (%p235) target = $region36
      $region35: #{tpu_custom_call.1} parent=11 // pred_region
        _
      $region36: #{tpu_custom_call.1} parent=11 // pred_fallthru
        _
    $region12: #{tpu_custom_call.1} parent=5 // pred_fallthru
      _
    %p238 = scmp.lt.s32.totalorder %s13, 8
    // Predicated region
    $region37: #{tpu_custom_call.1} parent=5 // pred_check
      %p239 = pneg %p238
    $region38: #{tpu_custom_call.1} parent=5 // pred_check_branch
      %241 = sbr.rel (%p239) target = $region40
    $region39: #{tpu_custom_call.1} parent=5 // pred_region
      // Predicated region
      $region41: #{tpu_custom_call.1} parent=39 // pred_check
        %p242 = pneg %p47
      $region42: #{tpu_custom_call.1} parent=39 // pred_check_branch
        %244 = sbr.rel (%p242) target = $region44
      $region43: #{tpu_custom_call.1} parent=39 // pred_region
        %p245 = scmp.lt.s32.totalorder %s20, 1
        %s246 = scalar_select %p245, %s20, 1
        %p247 = scmp.lt.s32.totalorder %s21, 3
        %s248 = scalar_select %p247, %s21, 3
        %s249 = smul.addr %s246, 4
        %s250 = sadd.s32 %s248, %s249
        %s251 = smul.addr %s250, 8
        %s252 = scalar_lea.vmem %s0, %s251
      $region44: #{tpu_custom_call.1} parent=39 // pred_fallthru
        _
    $region40: #{tpu_custom_call.1} parent=5 // pred_fallthru
      _
    %p253 = scmp.le.s32.totalorder 1, %s13
    %p254 = scmp.lt.s32.totalorder %s13, 9
    %p255 = pnand %p253, %p254
    %p256 = pneg %p255
    // Predicated region
    $region45: #{tpu_custom_call.1} parent=5 // pred_check
      _
    $region46: #{tpu_custom_call.1} parent=5 // pred_check_branch
      %258 = sbr.rel (%p255) target = $region48
    $region47: #{tpu_custom_call.1} parent=5 // pred_region
      %s259 = ssub.s32 %s13, 1
      %p260 = scmp.lt.s32.totalorder %s22, 1
      %s261 = scalar_select %p260, %s22, 1
      %p262 = scmp.lt.s32.totalorder %s23, 3
      %s263 = scalar_select %p262, %s23, 3
      %s264 = smul.addr %s261, 4
      %s265 = sadd.s32 %s263, %s264
      %s266 = smul.addr %s265, 8
      %s267 = scalar_lea.vmem %s0, %s266
      %p268 = pneg %p53
      %p269 = pneg %p50
      %p270 = pneg %p74
      %p271 = pneg %p71
      %p272 = pneg %p95
      %p273 = pneg %p92
      %p274 = pneg %p116
      %p275 = pneg %p113
      %p276 = pneg %p137
      %p277 = pneg %p134
      %p278 = pneg %p158
      %p279 = pneg %p155
      %p280 = pneg %p179
      %p281 = pneg %p176
      %p282 = pneg %p205
      %p283 = pneg %p202
      %p284 = scmp.lt.s32.totalorder %s22, 1
      %s285 = scalar_select %p284, %s22, 1
      %s286 = smul.addr %s285, 128
      %s287 = smul.addr %s286, 8
      %s288 = scalar_lea.vmem %s7, %s287
      %p289 = scmp.lt.s32.totalorder %s22, 1
      %s290 = scalar_select %p289, %s22, 1
      %p291 = scmp.lt.s32.totalorder %s23, 3
      %s292 = scalar_select %p291, %s23, 3
      %s293 = smul.addr %s290, 4
      %s294 = sadd.s32 %s292, %s293
      %s295 = smul.addr %s294, 8
      %s296 = scalar_lea.vmem %s0, %s295
      %p297 = scmp.lt.s32.totalorder %s22, 1
      %s298 = scalar_select %p297, %s22, 1
      %s299 = smul.addr %s298, 128
      %s300 = smul.addr %s299, 8
      %s301 = scalar_lea.vmem %s7, %s300
      %p303 = scmp.eq.s32.totalorder %s23, 0
      // Predicated region
      $region49: #{tpu_custom_call.1} parent=47 // pred_check
        %p304 = pneg %p303
      $region50: #{tpu_custom_call.1} parent=47 // pred_check_branch
        %306 = sbr.rel (%p304) target = $region52
      $region51: #{tpu_custom_call.1} parent=47 // pred_region
        %vm307 = vcmask 7168
        %308 = vst.msk [vmem:[#allocation2] sm:$0xff] %vm307, -inf
        %309 = vst.msk [vmem:[#allocation2 + $0x8] sm:$0xff] %vm307, -inf
        %310 = vst.msk [vmem:[#allocation2 + $0x10] sm:$0xff] %vm307, -inf
        %311 = vst.msk [vmem:[#allocation2 + $0x18] sm:$0xff] %vm307, -inf
        %312 = vst.msk [vmem:[#allocation2 + $0x20] sm:$0xff] %vm307, -inf
        %313 = vst.msk [vmem:[#allocation2 + $0x28] sm:$0xff] %vm307, -inf
        %314 = vst.msk [vmem:[#allocation2 + $0x30] sm:$0xff] %vm307, -inf
        %315 = vst.msk [vmem:[#allocation2 + $0x38] sm:$0xff] %vm307, -inf
        %316 = vst.msk [vmem:[#allocation2 + $0x40] sm:$0xff] %vm307, -inf
        %317 = vst.msk [vmem:[#allocation2 + $0x48] sm:$0xff] %vm307, -inf
        %318 = vst.msk [vmem:[#allocation2 + $0x50] sm:$0xff] %vm307, -inf
        %319 = vst.msk [vmem:[#allocation2 + $0x58] sm:$0xff] %vm307, -inf
        %320 = vst.msk [vmem:[#allocation2 + $0x60] sm:$0xff] %vm307, -inf
        %321 = vst.msk [vmem:[#allocation2 + $0x68] sm:$0xff] %vm307, -inf
        %322 = vst.msk [vmem:[#allocation2 + $0x70] sm:$0xff] %vm307, -inf
        %323 = vst.msk [vmem:[#allocation2 + $0x78] sm:$0xff] %vm307, -inf
        %324 = vst.msk [vmem:[#allocation2 + $0x80] sm:$0xff] %vm307, -inf
        %325 = vst.msk [vmem:[#allocation2 + $0x88] sm:$0xff] %vm307, -inf
        %326 = vst.msk [vmem:[#allocation2 + $0x90] sm:$0xff] %vm307, -inf
        %327 = vst.msk [vmem:[#allocation2 + $0x98] sm:$0xff] %vm307, -inf
        %328 = vst.msk [vmem:[#allocation2 + $0xa0] sm:$0xff] %vm307, -inf
        %329 = vst.msk [vmem:[#allocation2 + $0xa8] sm:$0xff] %vm307, -inf
        %330 = vst.msk [vmem:[#allocation2 + $0xb0] sm:$0xff] %vm307, -inf
        %331 = vst.msk [vmem:[#allocation2 + $0xb8] sm:$0xff] %vm307, -inf
        %332 = vst.msk [vmem:[#allocation2 + $0xc0] sm:$0xff] %vm307, -inf
        %333 = vst.msk [vmem:[#allocation2 + $0xc8] sm:$0xff] %vm307, -inf
        %334 = vst.msk [vmem:[#allocation2 + $0xd0] sm:$0xff] %vm307, -inf
        %335 = vst.msk [vmem:[#allocation2 + $0xd8] sm:$0xff] %vm307, -inf
        %336 = vst.msk [vmem:[#allocation2 + $0xe0] sm:$0xff] %vm307, -inf
        %337 = vst.msk [vmem:[#allocation2 + $0xe8] sm:$0xff] %vm307, -inf
        %338 = vst.msk [vmem:[#allocation2 + $0xf0] sm:$0xff] %vm307, -inf
        %339 = vst.msk [vmem:[#allocation2 + $0xf8] sm:$0xff] %vm307, -inf
        %340 = vst.msk [vmem:[#allocation2 + $0x100] sm:$0xff] %vm307, -inf
        %341 = vst.msk [vmem:[#allocation2 + $0x108] sm:$0xff] %vm307, -inf
        %342 = vst.msk [vmem:[#allocation2 + $0x110] sm:$0xff] %vm307, -inf
        %343 = vst.msk [vmem:[#allocation2 + $0x118] sm:$0xff] %vm307, -inf
        %344 = vst.msk [vmem:[#allocation2 + $0x120] sm:$0xff] %vm307, -inf
        %345 = vst.msk [vmem:[#allocation2 + $0x128] sm:$0xff] %vm307, -inf
        %346 = vst.msk [vmem:[#allocation2 + $0x130] sm:$0xff] %vm307, -inf
        %347 = vst.msk [vmem:[#allocation2 + $0x138] sm:$0xff] %vm307, -inf
        %348 = vst.msk [vmem:[#allocation2 + $0x140] sm:$0xff] %vm307, -inf
        %349 = vst.msk [vmem:[#allocation2 + $0x148] sm:$0xff] %vm307, -inf
        %350 = vst.msk [vmem:[#allocation2 + $0x150] sm:$0xff] %vm307, -inf
        %351 = vst.msk [vmem:[#allocation2 + $0x158] sm:$0xff] %vm307, -inf
        %352 = vst.msk [vmem:[#allocation2 + $0x160] sm:$0xff] %vm307, -inf
        %353 = vst.msk [vmem:[#allocation2 + $0x168] sm:$0xff] %vm307, -inf
        %354 = vst.msk [vmem:[#allocation2 + $0x170] sm:$0xff] %vm307, -inf
        %355 = vst.msk [vmem:[#allocation2 + $0x178] sm:$0xff] %vm307, -inf
        %356 = vst.msk [vmem:[#allocation2 + $0x180] sm:$0xff] %vm307, -inf
        %357 = vst.msk [vmem:[#allocation2 + $0x188] sm:$0xff] %vm307, -inf
        %358 = vst.msk [vmem:[#allocation2 + $0x190] sm:$0xff] %vm307, -inf
        %359 = vst.msk [vmem:[#allocation2 + $0x198] sm:$0xff] %vm307, -inf
        %360 = vst.msk [vmem:[#allocation2 + $0x1a0] sm:$0xff] %vm307, -inf
        %361 = vst.msk [vmem:[#allocation2 + $0x1a8] sm:$0xff] %vm307, -inf
        %362 = vst.msk [vmem:[#allocation2 + $0x1b0] sm:$0xff] %vm307, -inf
        %363 = vst.msk [vmem:[#allocation2 + $0x1b8] sm:$0xff] %vm307, -inf
        %364 = vst.msk [vmem:[#allocation2 + $0x1c0] sm:$0xff] %vm307, -inf
        %365 = vst.msk [vmem:[#allocation2 + $0x1c8] sm:$0xff] %vm307, -inf
        %366 = vst.msk [vmem:[#allocation2 + $0x1d0] sm:$0xff] %vm307, -inf
        %367 = vst.msk [vmem:[#allocation2 + $0x1d8] sm:$0xff] %vm307, -inf
        %368 = vst.msk [vmem:[#allocation2 + $0x1e0] sm:$0xff] %vm307, -inf
        %369 = vst.msk [vmem:[#allocation2 + $0x1e8] sm:$0xff] %vm307, -inf
        %370 = vst.msk [vmem:[#allocation2 + $0x1f0] sm:$0xff] %vm307, -inf
        %371 = vst.msk [vmem:[#allocation2 + $0x1f8] sm:$0xff] %vm307, -inf
        %372 = vst.msk [vmem:[#allocation2 + $0x200] sm:$0xff] %vm307, -inf
        %373 = vst.msk [vmem:[#allocation2 + $0x208] sm:$0xff] %vm307, -inf
        %374 = vst.msk [vmem:[#allocation2 + $0x210] sm:$0xff] %vm307, -inf
        %375 = vst.msk [vmem:[#allocation2 + $0x218] sm:$0xff] %vm307, -inf
        %376 = vst.msk [vmem:[#allocation2 + $0x220] sm:$0xff] %vm307, -inf
        %377 = vst.msk [vmem:[#allocation2 + $0x228] sm:$0xff] %vm307, -inf
        %378 = vst.msk [vmem:[#allocation2 + $0x230] sm:$0xff] %vm307, -inf
        %379 = vst.msk [vmem:[#allocation2 + $0x238] sm:$0xff] %vm307, -inf
        %380 = vst.msk [vmem:[#allocation2 + $0x240] sm:$0xff] %vm307, -inf
        %381 = vst.msk [vmem:[#allocation2 + $0x248] sm:$0xff] %vm307, -inf
        %382 = vst.msk [vmem:[#allocation2 + $0x250] sm:$0xff] %vm307, -inf
        %383 = vst.msk [vmem:[#allocation2 + $0x258] sm:$0xff] %vm307, -inf
        %384 = vst.msk [vmem:[#allocation2 + $0x260] sm:$0xff] %vm307, -inf
        %385 = vst.msk [vmem:[#allocation2 + $0x268] sm:$0xff] %vm307, -inf
        %386 = vst.msk [vmem:[#allocation2 + $0x270] sm:$0xff] %vm307, -inf
        %387 = vst.msk [vmem:[#allocation2 + $0x278] sm:$0xff] %vm307, -inf
        %388 = vst.msk [vmem:[#allocation2 + $0x280] sm:$0xff] %vm307, -inf
        %389 = vst.msk [vmem:[#allocation2 + $0x288] sm:$0xff] %vm307, -inf
        %390 = vst.msk [vmem:[#allocation2 + $0x290] sm:$0xff] %vm307, -inf
        %391 = vst.msk [vmem:[#allocation2 + $0x298] sm:$0xff] %vm307, -inf
        %392 = vst.msk [vmem:[#allocation2 + $0x2a0] sm:$0xff] %vm307, -inf
        %393 = vst.msk [vmem:[#allocation2 + $0x2a8] sm:$0xff] %vm307, -inf
        %394 = vst.msk [vmem:[#allocation2 + $0x2b0] sm:$0xff] %vm307, -inf
        %395 = vst.msk [vmem:[#allocation2 + $0x2b8] sm:$0xff] %vm307, -inf
        %396 = vst.msk [vmem:[#allocation2 + $0x2c0] sm:$0xff] %vm307, -inf
        %397 = vst.msk [vmem:[#allocation2 + $0x2c8] sm:$0xff] %vm307, -inf
        %398 = vst.msk [vmem:[#allocation2 + $0x2d0] sm:$0xff] %vm307, -inf
        %399 = vst.msk [vmem:[#allocation2 + $0x2d8] sm:$0xff] %vm307, -inf
        %400 = vst.msk [vmem:[#allocation2 + $0x2e0] sm:$0xff] %vm307, -inf
        %401 = vst.msk [vmem:[#allocation2 + $0x2e8] sm:$0xff] %vm307, -inf
        %402 = vst.msk [vmem:[#allocation2 + $0x2f0] sm:$0xff] %vm307, -inf
        %403 = vst.msk [vmem:[#allocation2 + $0x2f8] sm:$0xff] %vm307, -inf
        %404 = vst.msk [vmem:[#allocation2 + $0x300] sm:$0xff] %vm307, -inf
        %405 = vst.msk [vmem:[#allocation2 + $0x308] sm:$0xff] %vm307, -inf
        %406 = vst.msk [vmem:[#allocation2 + $0x310] sm:$0xff] %vm307, -inf
        %407 = vst.msk [vmem:[#allocation2 + $0x318] sm:$0xff] %vm307, -inf
        %408 = vst.msk [vmem:[#allocation2 + $0x320] sm:$0xff] %vm307, -inf
        %409 = vst.msk [vmem:[#allocation2 + $0x328] sm:$0xff] %vm307, -inf
        %410 = vst.msk [vmem:[#allocation2 + $0x330] sm:$0xff] %vm307, -inf
        %411 = vst.msk [vmem:[#allocation2 + $0x338] sm:$0xff] %vm307, -inf
        %412 = vst.msk [vmem:[#allocation2 + $0x340] sm:$0xff] %vm307, -inf
        %413 = vst.msk [vmem:[#allocation2 + $0x348] sm:$0xff] %vm307, -inf
        %414 = vst.msk [vmem:[#allocation2 + $0x350] sm:$0xff] %vm307, -inf
        %415 = vst.msk [vmem:[#allocation2 + $0x358] sm:$0xff] %vm307, -inf
        %416 = vst.msk [vmem:[#allocation2 + $0x360] sm:$0xff] %vm307, -inf
        %417 = vst.msk [vmem:[#allocation2 + $0x368] sm:$0xff] %vm307, -inf
        %418 = vst.msk [vmem:[#allocation2 + $0x370] sm:$0xff] %vm307, -inf
        %419 = vst.msk [vmem:[#allocation2 + $0x378] sm:$0xff] %vm307, -inf
        %420 = vst.msk [vmem:[#allocation2 + $0x380] sm:$0xff] %vm307, -inf
        %421 = vst.msk [vmem:[#allocation2 + $0x388] sm:$0xff] %vm307, -inf
        %422 = vst.msk [vmem:[#allocation2 + $0x390] sm:$0xff] %vm307, -inf
        %423 = vst.msk [vmem:[#allocation2 + $0x398] sm:$0xff] %vm307, -inf
        %424 = vst.msk [vmem:[#allocation2 + $0x3a0] sm:$0xff] %vm307, -inf
        %425 = vst.msk [vmem:[#allocation2 + $0x3a8] sm:$0xff] %vm307, -inf
        %426 = vst.msk [vmem:[#allocation2 + $0x3b0] sm:$0xff] %vm307, -inf
        %427 = vst.msk [vmem:[#allocation2 + $0x3b8] sm:$0xff] %vm307, -inf
        %428 = vst.msk [vmem:[#allocation2 + $0x3c0] sm:$0xff] %vm307, -inf
        %429 = vst.msk [vmem:[#allocation2 + $0x3c8] sm:$0xff] %vm307, -inf
        %430 = vst.msk [vmem:[#allocation2 + $0x3d0] sm:$0xff] %vm307, -inf
        %431 = vst.msk [vmem:[#allocation2 + $0x3d8] sm:$0xff] %vm307, -inf
        %432 = vst.msk [vmem:[#allocation2 + $0x3e0] sm:$0xff] %vm307, -inf
        %433 = vst.msk [vmem:[#allocation2 + $0x3e8] sm:$0xff] %vm307, -inf
        %434 = vst.msk [vmem:[#allocation2 + $0x3f0] sm:$0xff] %vm307, -inf
        %435 = vst.msk [vmem:[#allocation2 + $0x3f8] sm:$0xff] %vm307, -inf
      $region52: #{tpu_custom_call.1} parent=47 // pred_fallthru
        _
      %v436 = vld [vmem:[%s296] sm:$0x3f]
      %v437 = vpack.c.bf16 %v436, %v436
      %v438 = vld [vmem:[%s1] sm:$0xf]
      %v439 = vld [vmem:[%s1 + $0x4] sm:$0xf]
      %v440 = vld [vmem:[%s1 + $0x8] sm:$0xf]
      %v441 = vld [vmem:[%s1 + $0xc] sm:$0xf]
      %v442 = vld [vmem:[%s1 + $0x10] sm:$0xf]
      %v443 = vld [vmem:[%s1 + $0x14] sm:$0xf]
      %v444 = vld [vmem:[%s1 + $0x18] sm:$0xf]
      %v445 = vld [vmem:[%s1 + $0x1c] sm:$0xf]
      %v446 = vld [vmem:[%s2] sm:$0xff]
      %v447 = vld [vmem:[%s2 + $0x8] sm:$0xff]
      %v448 = vld [vmem:[%s2 + $0x10] sm:$0xff]
      %v449 = vld [vmem:[%s2 + $0x18] sm:$0xff]
      %v450 = vld [vmem:[%s2 + $0x20] sm:$0xff]
      %v451 = vld [vmem:[%s2 + $0x28] sm:$0xff]
      %v452 = vld [vmem:[%s2 + $0x30] sm:$0xff]
      %v453 = vld [vmem:[%s2 + $0x38] sm:$0xff]
      %455 = vset.pattern.permute.xlu0 0
      %456 = vperm.xlu0 %455, %v446
      %v457 = vpop.permute.xlu0 %456
      %460 = vset.pattern.permute.xlu0 0
      %461 = vperm.xlu0 %460, %v447
      %v462 = vpop.permute.xlu0 %461
      %465 = vset.pattern.permute.xlu0 0
      %466 = vperm.xlu0 %465, %v448
      %v467 = vpop.permute.xlu0 %466
      %470 = vset.pattern.permute.xlu0 0
      %471 = vperm.xlu0 %470, %v449
      %v472 = vpop.permute.xlu0 %471
      %475 = vset.pattern.permute.xlu0 0
      %476 = vperm.xlu0 %475, %v450
      %v477 = vpop.permute.xlu0 %476
      %480 = vset.pattern.permute.xlu0 0
      %481 = vperm.xlu0 %480, %v451
      %v482 = vpop.permute.xlu0 %481
      %485 = vset.pattern.permute.xlu0 0
      %486 = vperm.xlu0 %485, %v452
      %v487 = vpop.permute.xlu0 %486
      %490 = vset.pattern.permute.xlu0 0
      %491 = vperm.xlu0 %490, %v453
      %v492 = vpop.permute.xlu0 %491
      %v502 = vunpack.c.l.b16 %v438
      %v503 = vunpack.c.l.b16 %v439
      %v504 = vunpack.c.l.b16 %v440
      %v505 = vunpack.c.l.b16 %v441
      %v506 = vunpack.c.l.b16 %v442
      %v507 = vunpack.c.l.b16 %v443
      %v508 = vunpack.c.l.b16 %v444
      %v509 = vunpack.c.l.b16 %v445
      %v510 = vpack.c.b16 %v503, %v502
      %v511 = vpack.c.b16 %v505, %v504
      %v512 = vpack.c.b16 %v507, %v506
      %v513 = vpack.c.b16 %v509, %v508
      %vm514 = vcmask 48128
      %v516 = vsel %vm514, %v510, 0
      %v519 = vsel %vm514, %v511, 0
      %v522 = vsel %vm514, %v512, 0
      %v525 = vsel %vm514, %v513, 0
      %vm527 = vcmask 1042432
      %v529 = vsel %vm527, %v437, 0
      %531 = vmatpush.bf16.msra.mxu0 0
      %532 = vmatpush.bf16.msra.mxu0 0
      %533 = vmatpush.bf16.msra.mxu0 0
      %534 = vmatpush.bf16.msra.mxu0 0
      %535 = vmatpush.bf16.msra.mxu0 0
      %536 = vmatpush.bf16.msra.mxu0 0
      %537 = vmatpush.bf16.msra.mxu0 0
      %538 = vmatpush.bf16.msra.mxu0 %v529
      %539 = vmatmul.bf16.gmra.mxu0 %v516
      %v540 = vpop.f32.mrf.mxu0
      %v541 = vadd.f32 %v457, %v540
      %v542 = vpop.f32.mrf.mxu0
      %v543 = vadd.f32 %v462, %v542
      %544 = vmatmul.bf16.gmra.mxu0 %v519
      %v545 = vpop.f32.mrf.mxu0
      %v546 = vadd.f32 %v467, %v545
      %v547 = vpop.f32.mrf.mxu0
      %v548 = vadd.f32 %v472, %v547
      %549 = vmatmul.bf16.gmra.mxu0 %v522
      %v550 = vpop.f32.mrf.mxu0
      %v551 = vadd.f32 %v477, %v550
      %v552 = vpop.f32.mrf.mxu0
      %v553 = vadd.f32 %v482, %v552
      %554 = vmatmul.bf16.gmra.mxu0 %v525
      %v555 = vpop.f32.mrf.mxu0
      %v556 = vadd.f32 %v487, %v555
      %v557 = vpop.f32.mrf.mxu0
      %v558 = vadd.f32 %v492, %v557
      %559 = vdwg.mxu0
      %v560 = vmax.f32 %v541, 0.0
      %v561 = vmax.f32 %v543, 0.0
      %v562 = vmax.f32 %v546, 0.0
      %v563 = vmax.f32 %v548, 0.0
      %v564 = vmax.f32 %v551, 0.0
      %v565 = vmax.f32 %v553, 0.0
      %v566 = vmax.f32 %v556, 0.0
      %v567 = vmax.f32 %v558, 0.0
      %v568 = vpack.c.bf16 %v561, %v560
      %v569 = vpack.c.bf16 %v563, %v562
      %v570 = vpack.c.bf16 %v565, %v564
      %v571 = vpack.c.bf16 %v567, %v566
      %v572 = vld [vmem:[%s3] sm:$0xf]
      %v573 = vld [vmem:[%s3 + $0x4] sm:$0xf]
      %v574 = vld [vmem:[%s3 + $0x8] sm:$0xf]
      %v575 = vld [vmem:[%s3 + $0xc] sm:$0xf]
      %v576 = vld [vmem:[%s3 + $0x10] sm:$0xf]
      %v577 = vld [vmem:[%s3 + $0x14] sm:$0xf]
      %v578 = vld [vmem:[%s3 + $0x18] sm:$0xf]
      %v579 = vld [vmem:[%s3 + $0x1c] sm:$0xf]
      %v580 = vld [vmem:[%s3 + $0x20] sm:$0xf]
      %v581 = vld [vmem:[%s3 + $0x24] sm:$0xf]
      %v582 = vld [vmem:[%s3 + $0x28] sm:$0xf]
      %v583 = vld [vmem:[%s3 + $0x2c] sm:$0xf]
      %v584 = vld [vmem:[%s3 + $0x30] sm:$0xf]
      %v585 = vld [vmem:[%s3 + $0x34] sm:$0xf]
      %v586 = vld [vmem:[%s3 + $0x38] sm:$0xf]
      %v587 = vld [vmem:[%s3 + $0x3c] sm:$0xf]
      %v588 = vld [vmem:[%s4] sm:$0xff]
      %v589 = vld [vmem:[%s4 + $0x8] sm:$0xff]
      %v590 = vld [vmem:[%s4 + $0x10] sm:$0xff]
      %v591 = vld [vmem:[%s4 + $0x18] sm:$0xff]
      %v592 = vld [vmem:[%s4 + $0x20] sm:$0xff]
      %v593 = vld [vmem:[%s4 + $0x28] sm:$0xff]
      %v594 = vld [vmem:[%s4 + $0x30] sm:$0xff]
      %v595 = vld [vmem:[%s4 + $0x38] sm:$0xff]
      %v596 = vld [vmem:[%s4 + $0x40] sm:$0xff]
      %v597 = vld [vmem:[%s4 + $0x48] sm:$0xff]
      %v598 = vld [vmem:[%s4 + $0x50] sm:$0xff]
      %v599 = vld [vmem:[%s4 + $0x58] sm:$0xff]
      %v600 = vld [vmem:[%s4 + $0x60] sm:$0xff]
      %v601 = vld [vmem:[%s4 + $0x68] sm:$0xff]
      %v602 = vld [vmem:[%s4 + $0x70] sm:$0xff]
      %v603 = vld [vmem:[%s4 + $0x78] sm:$0xff]
      %605 = vset.pattern.permute.xlu0 0
      %606 = vperm.xlu0 %605, %v588
      %v607 = vpop.permute.xlu0 %606
      %610 = vset.pattern.permute.xlu0 0
      %611 = vperm.xlu0 %610, %v589
      %v612 = vpop.permute.xlu0 %611
      %615 = vset.pattern.permute.xlu0 0
      %616 = vperm.xlu0 %615, %v590
      %v617 = vpop.permute.xlu0 %616
      %620 = vset.pattern.permute.xlu0 0
      %621 = vperm.xlu0 %620, %v591
      %v622 = vpop.permute.xlu0 %621
      %625 = vset.pattern.permute.xlu0 0
      %626 = vperm.xlu0 %625, %v592
      %v627 = vpop.permute.xlu0 %626
      %630 = vset.pattern.permute.xlu0 0
      %631 = vperm.xlu0 %630, %v593
      %v632 = vpop.permute.xlu0 %631
      %635 = vset.pattern.permute.xlu0 0
      %636 = vperm.xlu0 %635, %v594
      %v637 = vpop.permute.xlu0 %636
      %640 = vset.pattern.permute.xlu0 0
      %641 = vperm.xlu0 %640, %v595
      %v642 = vpop.permute.xlu0 %641
      %645 = vset.pattern.permute.xlu0 0
      %646 = vperm.xlu0 %645, %v596
      %v647 = vpop.permute.xlu0 %646
      %650 = vset.pattern.permute.xlu0 0
      %651 = vperm.xlu0 %650, %v597
      %v652 = vpop.permute.xlu0 %651
      %655 = vset.pattern.permute.xlu0 0
      %656 = vperm.xlu0 %655, %v598
      %v657 = vpop.permute.xlu0 %656
      %660 = vset.pattern.permute.xlu0 0
      %661 = vperm.xlu0 %660, %v599
      %v662 = vpop.permute.xlu0 %661
      %665 = vset.pattern.permute.xlu0 0
      %666 = vperm.xlu0 %665, %v600
      %v667 = vpop.permute.xlu0 %666
      %670 = vset.pattern.permute.xlu0 0
      %671 = vperm.xlu0 %670, %v601
      %v672 = vpop.permute.xlu0 %671
      %675 = vset.pattern.permute.xlu0 0
      %676 = vperm.xlu0 %675, %v602
      %v677 = vpop.permute.xlu0 %676
      %680 = vset.pattern.permute.xlu0 0
      %681 = vperm.xlu0 %680, %v603
      %v682 = vpop.permute.xlu0 %681
      %v700 = vunpack.c.l.b16 %v572
      %v701 = vunpack.c.l.b16 %v573
      %v702 = vunpack.c.l.b16 %v574
      %v703 = vunpack.c.l.b16 %v575
      %v704 = vunpack.c.l.b16 %v576
      %v705 = vunpack.c.l.b16 %v577
      %v706 = vunpack.c.l.b16 %v578
      %v707 = vunpack.c.l.b16 %v579
      %v708 = vunpack.c.l.b16 %v580
      %v709 = vunpack.c.l.b16 %v581
      %v710 = vunpack.c.l.b16 %v582
      %v711 = vunpack.c.l.b16 %v583
      %v712 = vunpack.c.l.b16 %v584
      %v713 = vunpack.c.l.b16 %v585
      %v714 = vunpack.c.l.b16 %v586
      %v715 = vunpack.c.l.b16 %v587
      %v716 = vpack.c.b16 %v701, %v700
      %v717 = vpack.c.b16 %v703, %v702
      %v718 = vpack.c.b16 %v705, %v704
      %v719 = vpack.c.b16 %v707, %v706
      %v720 = vpack.c.b16 %v709, %v708
      %v721 = vpack.c.b16 %v711, %v710
      %v722 = vpack.c.b16 %v713, %v712
      %v723 = vpack.c.b16 %v715, %v714
      %vm724 = vcmask 523264
      %v726 = vsel %vm724, %v716, 0
      %v729 = vsel %vm724, %v717, 0
      %v732 = vsel %vm724, %v718, 0
      %v735 = vsel %vm724, %v719, 0
      %v738 = vsel %vm724, %v720, 0
      %v741 = vsel %vm724, %v721, 0
      %v744 = vsel %vm724, %v722, 0
      %v747 = vsel %vm724, %v723, 0
      %749 = vmatpush.bf16.msra.mxu0 0
      %750 = vmatpush.bf16.msra.mxu0 0
      %751 = vmatpush.bf16.msra.mxu0 0
      %752 = vmatpush.bf16.msra.mxu0 0
      %753 = vmatpush.bf16.msra.mxu0 %v571
      %754 = vmatpush.bf16.msra.mxu0 %v570
      %755 = vmatpush.bf16.msra.mxu0 %v569
      %756 = vmatpush.bf16.msra.mxu0 %v568
      %757 = vmatmul.bf16.gmra.mxu0 %v726
      %v758 = vpop.f32.mrf.mxu0
      %v759 = vadd.f32 %v607, %v758
      %v760 = vpop.f32.mrf.mxu0
      %v761 = vadd.f32 %v612, %v760
      %762 = vmatmul.bf16.gmra.mxu0 %v729
      %v763 = vpop.f32.mrf.mxu0
      %v764 = vadd.f32 %v617, %v763
      %v765 = vpop.f32.mrf.mxu0
      %v766 = vadd.f32 %v622, %v765
      %767 = vmatmul.bf16.gmra.mxu0 %v732
      %v768 = vpop.f32.mrf.mxu0
      %v769 = vadd.f32 %v627, %v768
      %v770 = vpop.f32.mrf.mxu0
      %v771 = vadd.f32 %v632, %v770
      %772 = vmatmul.bf16.gmra.mxu0 %v735
      %v773 = vpop.f32.mrf.mxu0
      %v774 = vadd.f32 %v637, %v773
      %v775 = vpop.f32.mrf.mxu0
      %v776 = vadd.f32 %v642, %v775
      %777 = vmatmul.bf16.gmra.mxu0 %v738
      %v778 = vpop.f32.mrf.mxu0
      %v779 = vadd.f32 %v647, %v778
      %v780 = vpop.f32.mrf.mxu0
      %v781 = vadd.f32 %v652, %v780
      %782 = vmatmul.bf16.gmra.mxu0 %v741
      %v783 = vpop.f32.mrf.mxu0
      %v784 = vadd.f32 %v657, %v783
      %v785 = vpop.f32.mrf.mxu0
      %v786 = vadd.f32 %v662, %v785
      %787 = vmatmul.bf16.gmra.mxu0 %v744
      %v788 = vpop.f32.mrf.mxu0
      %v789 = vadd.f32 %v667, %v788
      %v790 = vpop.f32.mrf.mxu0
      %v791 = vadd.f32 %v672, %v790
      %792 = vmatmul.bf16.gmra.mxu0 %v747
      %v793 = vpop.f32.mrf.mxu0
      %v794 = vadd.f32 %v677, %v793
      %v795 = vpop.f32.mrf.mxu0
      %v796 = vadd.f32 %v682, %v795
      %797 = vdwg.mxu0
      %v798 = vmax.f32 %v759, 0.0
      %v799 = vmax.f32 %v761, 0.0
      %v800 = vmax.f32 %v764, 0.0
      %v801 = vmax.f32 %v766, 0.0
      %v802 = vmax.f32 %v769, 0.0
      %v803 = vmax.f32 %v771, 0.0
      %v804 = vmax.f32 %v774, 0.0
      %v805 = vmax.f32 %v776, 0.0
      %v806 = vmax.f32 %v779, 0.0
      %v807 = vmax.f32 %v781, 0.0
      %v808 = vmax.f32 %v784, 0.0
      %v809 = vmax.f32 %v786, 0.0
      %v810 = vmax.f32 %v789, 0.0
      %v811 = vmax.f32 %v791, 0.0
      %v812 = vmax.f32 %v794, 0.0
      %v813 = vmax.f32 %v796, 0.0
      %v814 = vpack.c.bf16 %v799, %v798
      %v815 = vpack.c.bf16 %v801, %v800
      %v816 = vpack.c.bf16 %v803, %v802
      %v817 = vpack.c.bf16 %v805, %v804
      %v818 = vpack.c.bf16 %v807, %v806
      %v819 = vpack.c.bf16 %v809, %v808
      %v820 = vpack.c.bf16 %v811, %v810
      %v821 = vpack.c.bf16 %v813, %v812
      %v822 = vld [vmem:[%s5] sm:$0xf]
      %v823 = vld [vmem:[%s5 + $0x4] sm:$0xf]
      %v824 = vld [vmem:[%s5 + $0x8] sm:$0xf]
      %v825 = vld [vmem:[%s5 + $0xc] sm:$0xf]
      %v826 = vld [vmem:[%s5 + $0x10] sm:$0xf]
      %v827 = vld [vmem:[%s5 + $0x14] sm:$0xf]
      %v828 = vld [vmem:[%s5 + $0x18] sm:$0xf]
      %v829 = vld [vmem:[%s5 + $0x1c] sm:$0xf]
      %v830 = vld [vmem:[%s5 + $0x20] sm:$0xf]
      %v831 = vld [vmem:[%s5 + $0x24] sm:$0xf]
      %v832 = vld [vmem:[%s5 + $0x28] sm:$0xf]
      %v833 = vld [vmem:[%s5 + $0x2c] sm:$0xf]
      %v834 = vld [vmem:[%s5 + $0x30] sm:$0xf]
      %v835 = vld [vmem:[%s5 + $0x34] sm:$0xf]
      %v836 = vld [vmem:[%s5 + $0x38] sm:$0xf]
      %v837 = vld [vmem:[%s5 + $0x3c] sm:$0xf]
      %v838 = vld [vmem:[%s5 + $0x40] sm:$0xf]
      %v839 = vld [vmem:[%s5 + $0x44] sm:$0xf]
      %v840 = vld [vmem:[%s5 + $0x48] sm:$0xf]
      %v841 = vld [vmem:[%s5 + $0x4c] sm:$0xf]
      %v842 = vld [vmem:[%s5 + $0x50] sm:$0xf]
      %v843 = vld [vmem:[%s5 + $0x54] sm:$0xf]
      %v844 = vld [vmem:[%s5 + $0x58] sm:$0xf]
      %v845 = vld [vmem:[%s5 + $0x5c] sm:$0xf]
      %v846 = vld [vmem:[%s5 + $0x60] sm:$0xf]
      %v847 = vld [vmem:[%s5 + $0x64] sm:$0xf]
      %v848 = vld [vmem:[%s5 + $0x68] sm:$0xf]
      %v849 = vld [vmem:[%s5 + $0x6c] sm:$0xf]
      %v850 = vld [vmem:[%s5 + $0x70] sm:$0xf]
      %v851 = vld [vmem:[%s5 + $0x74] sm:$0xf]
      %v852 = vld [vmem:[%s5 + $0x78] sm:$0xf]
      %v853 = vld [vmem:[%s5 + $0x7c] sm:$0xf]
      %v854 = vld [vmem:[%s5 + $0x80] sm:$0xf]
      %v855 = vld [vmem:[%s5 + $0x84] sm:$0xf]
      %v856 = vld [vmem:[%s5 + $0x88] sm:$0xf]
      %v857 = vld [vmem:[%s5 + $0x8c] sm:$0xf]
      %v858 = vld [vmem:[%s5 + $0x90] sm:$0xf]
      %v859 = vld [vmem:[%s5 + $0x94] sm:$0xf]
      %v860 = vld [vmem:[%s5 + $0x98] sm:$0xf]
      %v861 = vld [vmem:[%s5 + $0x9c] sm:$0xf]
      %v862 = vld [vmem:[%s5 + $0xa0] sm:$0xf]
      %v863 = vld [vmem:[%s5 + $0xa4] sm:$0xf]
      %v864 = vld [vmem:[%s5 + $0xa8] sm:$0xf]
      %v865 = vld [vmem:[%s5 + $0xac] sm:$0xf]
      %v866 = vld [vmem:[%s5 + $0xb0] sm:$0xf]
      %v867 = vld [vmem:[%s5 + $0xb4] sm:$0xf]
      %v868 = vld [vmem:[%s5 + $0xb8] sm:$0xf]
      %v869 = vld [vmem:[%s5 + $0xbc] sm:$0xf]
      %v870 = vld [vmem:[%s5 + $0xc0] sm:$0xf]
      %v871 = vld [vmem:[%s5 + $0xc4] sm:$0xf]
      %v872 = vld [vmem:[%s5 + $0xc8] sm:$0xf]
      %v873 = vld [vmem:[%s5 + $0xcc] sm:$0xf]
      %v874 = vld [vmem:[%s5 + $0xd0] sm:$0xf]
      %v875 = vld [vmem:[%s5 + $0xd4] sm:$0xf]
      %v876 = vld [vmem:[%s5 + $0xd8] sm:$0xf]
      %v877 = vld [vmem:[%s5 + $0xdc] sm:$0xf]
      %v878 = vld [vmem:[%s5 + $0xe0] sm:$0xf]
      %v879 = vld [vmem:[%s5 + $0xe4] sm:$0xf]
      %v880 = vld [vmem:[%s5 + $0xe8] sm:$0xf]
      %v881 = vld [vmem:[%s5 + $0xec] sm:$0xf]
      %v882 = vld [vmem:[%s5 + $0xf0] sm:$0xf]
      %v883 = vld [vmem:[%s5 + $0xf4] sm:$0xf]
      %v884 = vld [vmem:[%s5 + $0xf8] sm:$0xf]
      %v885 = vld [vmem:[%s5 + $0xfc] sm:$0xf]
      %v886 = vld [vmem:[%s5 + $0x100] sm:$0xf]
      %v887 = vld [vmem:[%s5 + $0x104] sm:$0xf]
      %v888 = vld [vmem:[%s5 + $0x108] sm:$0xf]
      %v889 = vld [vmem:[%s5 + $0x10c] sm:$0xf]
      %v890 = vld [vmem:[%s5 + $0x110] sm:$0xf]
      %v891 = vld [vmem:[%s5 + $0x114] sm:$0xf]
      %v892 = vld [vmem:[%s5 + $0x118] sm:$0xf]
      %v893 = vld [vmem:[%s5 + $0x11c] sm:$0xf]
      %v894 = vld [vmem:[%s5 + $0x120] sm:$0xf]
      %v895 = vld [vmem:[%s5 + $0x124] sm:$0xf]
      %v896 = vld [vmem:[%s5 + $0x128] sm:$0xf]
      %v897 = vld [vmem:[%s5 + $0x12c] sm:$0xf]
      %v898 = vld [vmem:[%s5 + $0x130] sm:$0xf]
      %v899 = vld [vmem:[%s5 + $0x134] sm:$0xf]
      %v900 = vld [vmem:[%s5 + $0x138] sm:$0xf]
      %v901 = vld [vmem:[%s5 + $0x13c] sm:$0xf]
      %v902 = vld [vmem:[%s5 + $0x140] sm:$0xf]
      %v903 = vld [vmem:[%s5 + $0x144] sm:$0xf]
      %v904 = vld [vmem:[%s5 + $0x148] sm:$0xf]
      %v905 = vld [vmem:[%s5 + $0x14c] sm:$0xf]
      %v906 = vld [vmem:[%s5 + $0x150] sm:$0xf]
      %v907 = vld [vmem:[%s5 + $0x154] sm:$0xf]
      %v908 = vld [vmem:[%s5 + $0x158] sm:$0xf]
      %v909 = vld [vmem:[%s5 + $0x15c] sm:$0xf]
      %v910 = vld [vmem:[%s5 + $0x160] sm:$0xf]
      %v911 = vld [vmem:[%s5 + $0x164] sm:$0xf]
      %v912 = vld [vmem:[%s5 + $0x168] sm:$0xf]
      %v913 = vld [vmem:[%s5 + $0x16c] sm:$0xf]
      %v914 = vld [vmem:[%s5 + $0x170] sm:$0xf]
      %v915 = vld [vmem:[%s5 + $0x174] sm:$0xf]
      %v916 = vld [vmem:[%s5 + $0x178] sm:$0xf]
      %v917 = vld [vmem:[%s5 + $0x17c] sm:$0xf]
      %v918 = vld [vmem:[%s5 + $0x180] sm:$0xf]
      %v919 = vld [vmem:[%s5 + $0x184] sm:$0xf]
      %v920 = vld [vmem:[%s5 + $0x188] sm:$0xf]
      %v921 = vld [vmem:[%s5 + $0x18c] sm:$0xf]
      %v922 = vld [vmem:[%s5 + $0x190] sm:$0xf]
      %v923 = vld [vmem:[%s5 + $0x194] sm:$0xf]
      %v924 = vld [vmem:[%s5 + $0x198] sm:$0xf]
      %v925 = vld [vmem:[%s5 + $0x19c] sm:$0xf]
      %v926 = vld [vmem:[%s5 + $0x1a0] sm:$0xf]
      %v927 = vld [vmem:[%s5 + $0x1a4] sm:$0xf]
      %v928 = vld [vmem:[%s5 + $0x1a8] sm:$0xf]
      %v929 = vld [vmem:[%s5 + $0x1ac] sm:$0xf]
      %v930 = vld [vmem:[%s5 + $0x1b0] sm:$0xf]
      %v931 = vld [vmem:[%s5 + $0x1b4] sm:$0xf]
      %v932 = vld [vmem:[%s5 + $0x1b8] sm:$0xf]
      %v933 = vld [vmem:[%s5 + $0x1bc] sm:$0xf]
      %v934 = vld [vmem:[%s5 + $0x1c0] sm:$0xf]
      %v935 = vld [vmem:[%s5 + $0x1c4] sm:$0xf]
      %v936 = vld [vmem:[%s5 + $0x1c8] sm:$0xf]
      %v937 = vld [vmem:[%s5 + $0x1cc] sm:$0xf]
      %v938 = vld [vmem:[%s5 + $0x1d0] sm:$0xf]
      %v939 = vld [vmem:[%s5 + $0x1d4] sm:$0xf]
      %v940 = vld [vmem:[%s5 + $0x1d8] sm:$0xf]
      %v941 = vld [vmem:[%s5 + $0x1dc] sm:$0xf]
      %v942 = vld [vmem:[%s5 + $0x1e0] sm:$0xf]
      %v943 = vld [vmem:[%s5 + $0x1e4] sm:$0xf]
      %v944 = vld [vmem:[%s5 + $0x1e8] sm:$0xf]
      %v945 = vld [vmem:[%s5 + $0x1ec] sm:$0xf]
      %v946 = vld [vmem:[%s5 + $0x1f0] sm:$0xf]
      %v947 = vld [vmem:[%s5 + $0x1f4] sm:$0xf]
      %v948 = vld [vmem:[%s5 + $0x1f8] sm:$0xf]
      %v949 = vld [vmem:[%s5 + $0x1fc] sm:$0xf]
      %v950 = vld [vmem:[%s6] sm:$0xff]
      %v951 = vld [vmem:[%s6 + $0x8] sm:$0xff]
      %v952 = vld [vmem:[%s6 + $0x10] sm:$0xff]
      %v953 = vld [vmem:[%s6 + $0x18] sm:$0xff]
      %v954 = vld [vmem:[%s6 + $0x20] sm:$0xff]
      %v955 = vld [vmem:[%s6 + $0x28] sm:$0xff]
      %v956 = vld [vmem:[%s6 + $0x30] sm:$0xff]
      %v957 = vld [vmem:[%s6 + $0x38] sm:$0xff]
      %v958 = vld [vmem:[%s6 + $0x40] sm:$0xff]
      %v959 = vld [vmem:[%s6 + $0x48] sm:$0xff]
      %v960 = vld [vmem:[%s6 + $0x50] sm:$0xff]
      %v961 = vld [vmem:[%s6 + $0x58] sm:$0xff]
      %v962 = vld [vmem:[%s6 + $0x60] sm:$0xff]
      %v963 = vld [vmem:[%s6 + $0x68] sm:$0xff]
      %v964 = vld [vmem:[%s6 + $0x70] sm:$0xff]
      %v965 = vld [vmem:[%s6 + $0x78] sm:$0xff]
      %v966 = vld [vmem:[%s6 + $0x80] sm:$0xff]
      %v967 = vld [vmem:[%s6 + $0x88] sm:$0xff]
      %v968 = vld [vmem:[%s6 + $0x90] sm:$0xff]
      %v969 = vld [vmem:[%s6 + $0x98] sm:$0xff]
      %v970 = vld [vmem:[%s6 + $0xa0] sm:$0xff]
      %v971 = vld [vmem:[%s6 + $0xa8] sm:$0xff]
      %v972 = vld [vmem:[%s6 + $0xb0] sm:$0xff]
      %v973 = vld [vmem:[%s6 + $0xb8] sm:$0xff]
      %v974 = vld [vmem:[%s6 + $0xc0] sm:$0xff]
      %v975 = vld [vmem:[%s6 + $0xc8] sm:$0xff]
      %v976 = vld [vmem:[%s6 + $0xd0] sm:$0xff]
      %v977 = vld [vmem:[%s6 + $0xd8] sm:$0xff]
      %v978 = vld [vmem:[%s6 + $0xe0] sm:$0xff]
      %v979 = vld [vmem:[%s6 + $0xe8] sm:$0xff]
      %v980 = vld [vmem:[%s6 + $0xf0] sm:$0xff]
      %v981 = vld [vmem:[%s6 + $0xf8] sm:$0xff]
      %v982 = vld [vmem:[%s6 + $0x100] sm:$0xff]
      %v983 = vld [vmem:[%s6 + $0x108] sm:$0xff]
      %v984 = vld [vmem:[%s6 + $0x110] sm:$0xff]
      %v985 = vld [vmem:[%s6 + $0x118] sm:$0xff]
      %v986 = vld [vmem:[%s6 + $0x120] sm:$0xff]
      %v987 = vld [vmem:[%s6 + $0x128] sm:$0xff]
      %v988 = vld [vmem:[%s6 + $0x130] sm:$0xff]
      %v989 = vld [vmem:[%s6 + $0x138] sm:$0xff]
      %v990 = vld [vmem:[%s6 + $0x140] sm:$0xff]
      %v991 = vld [vmem:[%s6 + $0x148] sm:$0xff]
      %v992 = vld [vmem:[%s6 + $0x150] sm:$0xff]
      %v993 = vld [vmem:[%s6 + $0x158] sm:$0xff]
      %v994 = vld [vmem:[%s6 + $0x160] sm:$0xff]
      %v995 = vld [vmem:[%s6 + $0x168] sm:$0xff]
      %v996 = vld [vmem:[%s6 + $0x170] sm:$0xff]
      %v997 = vld [vmem:[%s6 + $0x178] sm:$0xff]
      %v998 = vld [vmem:[%s6 + $0x180] sm:$0xff]
      %v999 = vld [vmem:[%s6 + $0x188] sm:$0xff]
      %v1000 = vld [vmem:[%s6 + $0x190] sm:$0xff]
      %v1001 = vld [vmem:[%s6 + $0x198] sm:$0xff]
      %v1002 = vld [vmem:[%s6 + $0x1a0] sm:$0xff]
      %v1003 = vld [vmem:[%s6 + $0x1a8] sm:$0xff]
      %v1004 = vld [vmem:[%s6 + $0x1b0] sm:$0xff]
      %v1005 = vld [vmem:[%s6 + $0x1b8] sm:$0xff]
      %v1006 = vld [vmem:[%s6 + $0x1c0] sm:$0xff]
      %v1007 = vld [vmem:[%s6 + $0x1c8] sm:$0xff]
      %v1008 = vld [vmem:[%s6 + $0x1d0] sm:$0xff]
      %v1009 = vld [vmem:[%s6 + $0x1d8] sm:$0xff]
      %v1010 = vld [vmem:[%s6 + $0x1e0] sm:$0xff]
      %v1011 = vld [vmem:[%s6 + $0x1e8] sm:$0xff]
      %v1012 = vld [vmem:[%s6 + $0x1f0] sm:$0xff]
      %v1013 = vld [vmem:[%s6 + $0x1f8] sm:$0xff]
      %v1014 = vld [vmem:[%s6 + $0x200] sm:$0xff]
      %v1015 = vld [vmem:[%s6 + $0x208] sm:$0xff]
      %v1016 = vld [vmem:[%s6 + $0x210] sm:$0xff]
      %v1017 = vld [vmem:[%s6 + $0x218] sm:$0xff]
      %v1018 = vld [vmem:[%s6 + $0x220] sm:$0xff]
      %v1019 = vld [vmem:[%s6 + $0x228] sm:$0xff]
      %v1020 = vld [vmem:[%s6 + $0x230] sm:$0xff]
      %v1021 = vld [vmem:[%s6 + $0x238] sm:$0xff]
      %v1022 = vld [vmem:[%s6 + $0x240] sm:$0xff]
      %v1023 = vld [vmem:[%s6 + $0x248] sm:$0xff]
      %v1024 = vld [vmem:[%s6 + $0x250] sm:$0xff]
      %v1025 = vld [vmem:[%s6 + $0x258] sm:$0xff]
      %v1026 = vld [vmem:[%s6 + $0x260] sm:$0xff]
      %v1027 = vld [vmem:[%s6 + $0x268] sm:$0xff]
      %v1028 = vld [vmem:[%s6 + $0x270] sm:$0xff]
      %v1029 = vld [vmem:[%s6 + $0x278] sm:$0xff]
      %v1030 = vld [vmem:[%s6 + $0x280] sm:$0xff]
      %v1031 = vld [vmem:[%s6 + $0x288] sm:$0xff]
      %v1032 = vld [vmem:[%s6 + $0x290] sm:$0xff]
      %v1033 = vld [vmem:[%s6 + $0x298] sm:$0xff]
      %v1034 = vld [vmem:[%s6 + $0x2a0] sm:$0xff]
      %v1035 = vld [vmem:[%s6 + $0x2a8] sm:$0xff]
      %v1036 = vld [vmem:[%s6 + $0x2b0] sm:$0xff]
      %v1037 = vld [vmem:[%s6 + $0x2b8] sm:$0xff]
      %v1038 = vld [vmem:[%s6 + $0x2c0] sm:$0xff]
      %v1039 = vld [vmem:[%s6 + $0x2c8] sm:$0xff]
      %v1040 = vld [vmem:[%s6 + $0x2d0] sm:$0xff]
      %v1041 = vld [vmem:[%s6 + $0x2d8] sm:$0xff]
      %v1042 = vld [vmem:[%s6 + $0x2e0] sm:$0xff]
      %v1043 = vld [vmem:[%s6 + $0x2e8] sm:$0xff]
      %v1044 = vld [vmem:[%s6 + $0x2f0] sm:$0xff]
      %v1045 = vld [vmem:[%s6 + $0x2f8] sm:$0xff]
      %v1046 = vld [vmem:[%s6 + $0x300] sm:$0xff]
      %v1047 = vld [vmem:[%s6 + $0x308] sm:$0xff]
      %v1048 = vld [vmem:[%s6 + $0x310] sm:$0xff]
      %v1049 = vld [vmem:[%s6 + $0x318] sm:$0xff]
      %v1050 = vld [vmem:[%s6 + $0x320] sm:$0xff]
      %v1051 = vld [vmem:[%s6 + $0x328] sm:$0xff]
      %v1052 = vld [vmem:[%s6 + $0x330] sm:$0xff]
      %v1053 = vld [vmem:[%s6 + $0x338] sm:$0xff]
      %v1054 = vld [vmem:[%s6 + $0x340] sm:$0xff]
      %v1055 = vld [vmem:[%s6 + $0x348] sm:$0xff]
      %v1056 = vld [vmem:[%s6 + $0x350] sm:$0xff]
      %v1057 = vld [vmem:[%s6 + $0x358] sm:$0xff]
      %v1058 = vld [vmem:[%s6 + $0x360] sm:$0xff]
      %v1059 = vld [vmem:[%s6 + $0x368] sm:$0xff]
      %v1060 = vld [vmem:[%s6 + $0x370] sm:$0xff]
      %v1061 = vld [vmem:[%s6 + $0x378] sm:$0xff]
      %v1062 = vld [vmem:[%s6 + $0x380] sm:$0xff]
      %v1063 = vld [vmem:[%s6 + $0x388] sm:$0xff]
      %v1064 = vld [vmem:[%s6 + $0x390] sm:$0xff]
      %v1065 = vld [vmem:[%s6 + $0x398] sm:$0xff]
      %v1066 = vld [vmem:[%s6 + $0x3a0] sm:$0xff]
      %v1067 = vld [vmem:[%s6 + $0x3a8] sm:$0xff]
      %v1068 = vld [vmem:[%s6 + $0x3b0] sm:$0xff]
      %v1069 = vld [vmem:[%s6 + $0x3b8] sm:$0xff]
      %v1070 = vld [vmem:[%s6 + $0x3c0] sm:$0xff]
      %v1071 = vld [vmem:[%s6 + $0x3c8] sm:$0xff]
      %v1072 = vld [vmem:[%s6 + $0x3d0] sm:$0xff]
      %v1073 = vld [vmem:[%s6 + $0x3d8] sm:$0xff]
      %v1074 = vld [vmem:[%s6 + $0x3e0] sm:$0xff]
      %v1075 = vld [vmem:[%s6 + $0x3e8] sm:$0xff]
      %v1076 = vld [vmem:[%s6 + $0x3f0] sm:$0xff]
      %v1077 = vld [vmem:[%s6 + $0x3f8] sm:$0xff]
      %1079 = vset.pattern.permute.xlu0 0
      %1080 = vperm.xlu0 %1079, %v950
      %v1081 = vpop.permute.xlu0 %1080
      %1084 = vset.pattern.permute.xlu0 0
      %1085 = vperm.xlu0 %1084, %v951
      %v1086 = vpop.permute.xlu0 %1085
      %1089 = vset.pattern.permute.xlu0 0
      %1090 = vperm.xlu0 %1089, %v952
      %v1091 = vpop.permute.xlu0 %1090
      %1094 = vset.pattern.permute.xlu0 0
      %1095 = vperm.xlu0 %1094, %v953
      %v1096 = vpop.permute.xlu0 %1095
      %1099 = vset.pattern.permute.xlu0 0
      %1100 = vperm.xlu0 %1099, %v954
      %v1101 = vpop.permute.xlu0 %1100
      %1104 = vset.pattern.permute.xlu0 0
      %1105 = vperm.xlu0 %1104, %v955
      %v1106 = vpop.permute.xlu0 %1105
      %1109 = vset.pattern.permute.xlu0 0
      %1110 = vperm.xlu0 %1109, %v956
      %v1111 = vpop.permute.xlu0 %1110
      %1114 = vset.pattern.permute.xlu0 0
      %1115 = vperm.xlu0 %1114, %v957
      %v1116 = vpop.permute.xlu0 %1115
      %1119 = vset.pattern.permute.xlu0 0
      %1120 = vperm.xlu0 %1119, %v958
      %v1121 = vpop.permute.xlu0 %1120
      %1124 = vset.pattern.permute.xlu0 0
      %1125 = vperm.xlu0 %1124, %v959
      %v1126 = vpop.permute.xlu0 %1125
      %1129 = vset.pattern.permute.xlu0 0
      %1130 = vperm.xlu0 %1129, %v960
      %v1131 = vpop.permute.xlu0 %1130
      %1134 = vset.pattern.permute.xlu0 0
      %1135 = vperm.xlu0 %1134, %v961
      %v1136 = vpop.permute.xlu0 %1135
      %1139 = vset.pattern.permute.xlu0 0
      %1140 = vperm.xlu0 %1139, %v962
      %v1141 = vpop.permute.xlu0 %1140
      %1144 = vset.pattern.permute.xlu0 0
      %1145 = vperm.xlu0 %1144, %v963
      %v1146 = vpop.permute.xlu0 %1145
      %1149 = vset.pattern.permute.xlu0 0
      %1150 = vperm.xlu0 %1149, %v964
      %v1151 = vpop.permute.xlu0 %1150
      %1154 = vset.pattern.permute.xlu0 0
      %1155 = vperm.xlu0 %1154, %v965
      %v1156 = vpop.permute.xlu0 %1155
      %1159 = vset.pattern.permute.xlu0 0
      %1160 = vperm.xlu0 %1159, %v966
      %v1161 = vpop.permute.xlu0 %1160
      %1164 = vset.pattern.permute.xlu0 0
      %1165 = vperm.xlu0 %1164, %v967
      %v1166 = vpop.permute.xlu0 %1165
      %1169 = vset.pattern.permute.xlu0 0
      %1170 = vperm.xlu0 %1169, %v968
      %v1171 = vpop.permute.xlu0 %1170
      %1174 = vset.pattern.permute.xlu0 0
      %1175 = vperm.xlu0 %1174, %v969
      %v1176 = vpop.permute.xlu0 %1175
      %1179 = vset.pattern.permute.xlu0 0
      %1180 = vperm.xlu0 %1179, %v970
      %v1181 = vpop.permute.xlu0 %1180
      %1184 = vset.pattern.permute.xlu0 0
      %1185 = vperm.xlu0 %1184, %v971
      %v1186 = vpop.permute.xlu0 %1185
      %1189 = vset.pattern.permute.xlu0 0
      %1190 = vperm.xlu0 %1189, %v972
      %v1191 = vpop.permute.xlu0 %1190
      %1194 = vset.pattern.permute.xlu0 0
      %1195 = vperm.xlu0 %1194, %v973
      %v1196 = vpop.permute.xlu0 %1195
      %1199 = vset.pattern.permute.xlu0 0
      %1200 = vperm.xlu0 %1199, %v974
      %v1201 = vpop.permute.xlu0 %1200
      %1204 = vset.pattern.permute.xlu0 0
      %1205 = vperm.xlu0 %1204, %v975
      %v1206 = vpop.permute.xlu0 %1205
      %1209 = vset.pattern.permute.xlu0 0
      %1210 = vperm.xlu0 %1209, %v976
      %v1211 = vpop.permute.xlu0 %1210
      %1214 = vset.pattern.permute.xlu0 0
      %1215 = vperm.xlu0 %1214, %v977
      %v1216 = vpop.permute.xlu0 %1215
      %1219 = vset.pattern.permute.xlu0 0
      %1220 = vperm.xlu0 %1219, %v978
      %v1221 = vpop.permute.xlu0 %1220
      %1224 = vset.pattern.permute.xlu0 0
      %1225 = vperm.xlu0 %1224, %v979
      %v1226 = vpop.permute.xlu0 %1225
      %1229 = vset.pattern.permute.xlu0 0
      %1230 = vperm.xlu0 %1229, %v980
      %v1231 = vpop.permute.xlu0 %1230
      %1234 = vset.pattern.permute.xlu0 0
      %1235 = vperm.xlu0 %1234, %v981
      %v1236 = vpop.permute.xlu0 %1235
      %1239 = vset.pattern.permute.xlu0 0
      %1240 = vperm.xlu0 %1239, %v982
      %v1241 = vpop.permute.xlu0 %1240
      %1244 = vset.pattern.permute.xlu0 0
      %1245 = vperm.xlu0 %1244, %v983
      %v1246 = vpop.permute.xlu0 %1245
      %1249 = vset.pattern.permute.xlu0 0
      %1250 = vperm.xlu0 %1249, %v984
      %v1251 = vpop.permute.xlu0 %1250
      %1254 = vset.pattern.permute.xlu0 0
      %1255 = vperm.xlu0 %1254, %v985
      %v1256 = vpop.permute.xlu0 %1255
      %1259 = vset.pattern.permute.xlu0 0
      %1260 = vperm.xlu0 %1259, %v986
      %v1261 = vpop.permute.xlu0 %1260
      %1264 = vset.pattern.permute.xlu0 0
      %1265 = vperm.xlu0 %1264, %v987
      %v1266 = vpop.permute.xlu0 %1265
      %1269 = vset.pattern.permute.xlu0 0
      %1270 = vperm.xlu0 %1269, %v988
      %v1271 = vpop.permute.xlu0 %1270
      %1274 = vset.pattern.permute.xlu0 0
      %1275 = vperm.xlu0 %1274, %v989
      %v1276 = vpop.permute.xlu0 %1275
      %1279 = vset.pattern.permute.xlu0 0
      %1280 = vperm.xlu0 %1279, %v990
      %v1281 = vpop.permute.xlu0 %1280
      %1284 = vset.pattern.permute.xlu0 0
      %1285 = vperm.xlu0 %1284, %v991
      %v1286 = vpop.permute.xlu0 %1285
      %1289 = vset.pattern.permute.xlu0 0
      %1290 = vperm.xlu0 %1289, %v992
      %v1291 = vpop.permute.xlu0 %1290
      %1294 = vset.pattern.permute.xlu0 0
      %1295 = vperm.xlu0 %1294, %v993
      %v1296 = vpop.permute.xlu0 %1295
      %1299 = vset.pattern.permute.xlu0 0
      %1300 = vperm.xlu0 %1299, %v994
      %v1301 = vpop.permute.xlu0 %1300
      %1304 = vset.pattern.permute.xlu0 0
      %1305 = vperm.xlu0 %1304, %v995
      %v1306 = vpop.permute.xlu0 %1305
      %1309 = vset.pattern.permute.xlu0 0
      %1310 = vperm.xlu0 %1309, %v996
      %v1311 = vpop.permute.xlu0 %1310
      %1314 = vset.pattern.permute.xlu0 0
      %1315 = vperm.xlu0 %1314, %v997
      %v1316 = vpop.permute.xlu0 %1315
      %1319 = vset.pattern.permute.xlu0 0
      %1320 = vperm.xlu0 %1319, %v998
      %v1321 = vpop.permute.xlu0 %1320
      %1324 = vset.pattern.permute.xlu0 0
      %1325 = vperm.xlu0 %1324, %v999
      %v1326 = vpop.permute.xlu0 %1325
      %1329 = vset.pattern.permute.xlu0 0
      %1330 = vperm.xlu0 %1329, %v1000
      %v1331 = vpop.permute.xlu0 %1330
      %1334 = vset.pattern.permute.xlu0 0
      %1335 = vperm.xlu0 %1334, %v1001
      %v1336 = vpop.permute.xlu0 %1335
      %1339 = vset.pattern.permute.xlu0 0
      %1340 = vperm.xlu0 %1339, %v1002
      %v1341 = vpop.permute.xlu0 %1340
      %1344 = vset.pattern.permute.xlu0 0
      %1345 = vperm.xlu0 %1344, %v1003
      %v1346 = vpop.permute.xlu0 %1345
      %1349 = vset.pattern.permute.xlu0 0
      %1350 = vperm.xlu0 %1349, %v1004
      %v1351 = vpop.permute.xlu0 %1350
      %1354 = vset.pattern.permute.xlu0 0
      %1355 = vperm.xlu0 %1354, %v1005
      %v1356 = vpop.permute.xlu0 %1355
      %1359 = vset.pattern.permute.xlu0 0
      %1360 = vperm.xlu0 %1359, %v1006
      %v1361 = vpop.permute.xlu0 %1360
      %1364 = vset.pattern.permute.xlu0 0
      %1365 = vperm.xlu0 %1364, %v1007
      %v1366 = vpop.permute.xlu0 %1365
      %1369 = vset.pattern.permute.xlu0 0
      %1370 = vperm.xlu0 %1369, %v1008
      %v1371 = vpop.permute.xlu0 %1370
      %1374 = vset.pattern.permute.xlu0 0
      %1375 = vperm.xlu0 %1374, %v1009
      %v1376 = vpop.permute.xlu0 %1375
      %1379 = vset.pattern.permute.xlu0 0
      %1380 = vperm.xlu0 %1379, %v1010
      %v1381 = vpop.permute.xlu0 %1380
      %1384 = vset.pattern.permute.xlu0 0
      %1385 = vperm.xlu0 %1384, %v1011
      %v1386 = vpop.permute.xlu0 %1385
      %1389 = vset.pattern.permute.xlu0 0
      %1390 = vperm.xlu0 %1389, %v1012
      %v1391 = vpop.permute.xlu0 %1390
      %1394 = vset.pattern.permute.xlu0 0
      %1395 = vperm.xlu0 %1394, %v1013
      %v1396 = vpop.permute.xlu0 %1395
      %1399 = vset.pattern.permute.xlu0 0
      %1400 = vperm.xlu0 %1399, %v1014
      %v1401 = vpop.permute.xlu0 %1400
      %1404 = vset.pattern.permute.xlu0 0
      %1405 = vperm.xlu0 %1404, %v1015
      %v1406 = vpop.permute.xlu0 %1405
      %1409 = vset.pattern.permute.xlu0 0
      %1410 = vperm.xlu0 %1409, %v1016
      %v1411 = vpop.permute.xlu0 %1410
      %1414 = vset.pattern.permute.xlu0 0
      %1415 = vperm.xlu0 %1414, %v1017
      %v1416 = vpop.permute.xlu0 %1415
      %1419 = vset.pattern.permute.xlu0 0
      %1420 = vperm.xlu0 %1419, %v1018
      %v1421 = vpop.permute.xlu0 %1420
      %1424 = vset.pattern.permute.xlu0 0
      %1425 = vperm.xlu0 %1424, %v1019
      %v1426 = vpop.permute.xlu0 %1425
      %1429 = vset.pattern.permute.xlu0 0
      %1430 = vperm.xlu0 %1429, %v1020
      %v1431 = vpop.permute.xlu0 %1430
      %1434 = vset.pattern.permute.xlu0 0
      %1435 = vperm.xlu0 %1434, %v1021
      %v1436 = vpop.permute.xlu0 %1435
      %1439 = vset.pattern.permute.xlu0 0
      %1440 = vperm.xlu0 %1439, %v1022
      %v1441 = vpop.permute.xlu0 %1440
      %1444 = vset.pattern.permute.xlu0 0
      %1445 = vperm.xlu0 %1444, %v1023
      %v1446 = vpop.permute.xlu0 %1445
      %1449 = vset.pattern.permute.xlu0 0
      %1450 = vperm.xlu0 %1449, %v1024
      %v1451 = vpop.permute.xlu0 %1450
      %1454 = vset.pattern.permute.xlu0 0
      %1455 = vperm.xlu0 %1454, %v1025
      %v1456 = vpop.permute.xlu0 %1455
      %1459 = vset.pattern.permute.xlu0 0
      %1460 = vperm.xlu0 %1459, %v1026
      %v1461 = vpop.permute.xlu0 %1460
      %1464 = vset.pattern.permute.xlu0 0
      %1465 = vperm.xlu0 %1464, %v1027
      %v1466 = vpop.permute.xlu0 %1465
      %1469 = vset.pattern.permute.xlu0 0
      %1470 = vperm.xlu0 %1469, %v1028
      %v1471 = vpop.permute.xlu0 %1470
      %1474 = vset.pattern.permute.xlu0 0
      %1475 = vperm.xlu0 %1474, %v1029
      %v1476 = vpop.permute.xlu0 %1475
      %1479 = vset.pattern.permute.xlu0 0
      %1480 = vperm.xlu0 %1479, %v1030
      %v1481 = vpop.permute.xlu0 %1480
      %1484 = vset.pattern.permute.xlu0 0
      %1485 = vperm.xlu0 %1484, %v1031
      %v1486 = vpop.permute.xlu0 %1485
      %1489 = vset.pattern.permute.xlu0 0
      %1490 = vperm.xlu0 %1489, %v1032
      %v1491 = vpop.permute.xlu0 %1490
      %1494 = vset.pattern.permute.xlu0 0
      %1495 = vperm.xlu0 %1494, %v1033
      %v1496 = vpop.permute.xlu0 %1495
      %1499 = vset.pattern.permute.xlu0 0
      %1500 = vperm.xlu0 %1499, %v1034
      %v1501 = vpop.permute.xlu0 %1500
      %1504 = vset.pattern.permute.xlu0 0
      %1505 = vperm.xlu0 %1504, %v1035
      %v1506 = vpop.permute.xlu0 %1505
      %1509 = vset.pattern.permute.xlu0 0
      %1510 = vperm.xlu0 %1509, %v1036
      %v1511 = vpop.permute.xlu0 %1510
      %1514 = vset.pattern.permute.xlu0 0
      %1515 = vperm.xlu0 %1514, %v1037
      %v1516 = vpop.permute.xlu0 %1515
      %1519 = vset.pattern.permute.xlu0 0
      %1520 = vperm.xlu0 %1519, %v1038
      %v1521 = vpop.permute.xlu0 %1520
      %1524 = vset.pattern.permute.xlu0 0
      %1525 = vperm.xlu0 %1524, %v1039
      %v1526 = vpop.permute.xlu0 %1525
      %1529 = vset.pattern.permute.xlu0 0
      %1530 = vperm.xlu0 %1529, %v1040
      %v1531 = vpop.permute.xlu0 %1530
      %1534 = vset.pattern.permute.xlu0 0
      %1535 = vperm.xlu0 %1534, %v1041
      %v1536 = vpop.permute.xlu0 %1535
      %1539 = vset.pattern.permute.xlu0 0
      %1540 = vperm.xlu0 %1539, %v1042
      %v1541 = vpop.permute.xlu0 %1540
      %1544 = vset.pattern.permute.xlu0 0
      %1545 = vperm.xlu0 %1544, %v1043
      %v1546 = vpop.permute.xlu0 %1545
      %1549 = vset.pattern.permute.xlu0 0
      %1550 = vperm.xlu0 %1549, %v1044
      %v1551 = vpop.permute.xlu0 %1550
      %1554 = vset.pattern.permute.xlu0 0
      %1555 = vperm.xlu0 %1554, %v1045
      %v1556 = vpop.permute.xlu0 %1555
      %1559 = vset.pattern.permute.xlu0 0
      %1560 = vperm.xlu0 %1559, %v1046
      %v1561 = vpop.permute.xlu0 %1560
      %1564 = vset.pattern.permute.xlu0 0
      %1565 = vperm.xlu0 %1564, %v1047
      %v1566 = vpop.permute.xlu0 %1565
      %1569 = vset.pattern.permute.xlu0 0
      %1570 = vperm.xlu0 %1569, %v1048
      %v1571 = vpop.permute.xlu0 %1570
      %1574 = vset.pattern.permute.xlu0 0
      %1575 = vperm.xlu0 %1574, %v1049
      %v1576 = vpop.permute.xlu0 %1575
      %1579 = vset.pattern.permute.xlu0 0
      %1580 = vperm.xlu0 %1579, %v1050
      %v1581 = vpop.permute.xlu0 %1580
      %1584 = vset.pattern.permute.xlu0 0
      %1585 = vperm.xlu0 %1584, %v1051
      %v1586 = vpop.permute.xlu0 %1585
      %1589 = vset.pattern.permute.xlu0 0
      %1590 = vperm.xlu0 %1589, %v1052
      %v1591 = vpop.permute.xlu0 %1590
      %1594 = vset.pattern.permute.xlu0 0
      %1595 = vperm.xlu0 %1594, %v1053
      %v1596 = vpop.permute.xlu0 %1595
      %1599 = vset.pattern.permute.xlu0 0
      %1600 = vperm.xlu0 %1599, %v1054
      %v1601 = vpop.permute.xlu0 %1600
      %1604 = vset.pattern.permute.xlu0 0
      %1605 = vperm.xlu0 %1604, %v1055
      %v1606 = vpop.permute.xlu0 %1605
      %1609 = vset.pattern.permute.xlu0 0
      %1610 = vperm.xlu0 %1609, %v1056
      %v1611 = vpop.permute.xlu0 %1610
      %1614 = vset.pattern.permute.xlu0 0
      %1615 = vperm.xlu0 %1614, %v1057
      %v1616 = vpop.permute.xlu0 %1615
      %1619 = vset.pattern.permute.xlu0 0
      %1620 = vperm.xlu0 %1619, %v1058
      %v1621 = vpop.permute.xlu0 %1620
      %1624 = vset.pattern.permute.xlu0 0
      %1625 = vperm.xlu0 %1624, %v1059
      %v1626 = vpop.permute.xlu0 %1625
      %1629 = vset.pattern.permute.xlu0 0
      %1630 = vperm.xlu0 %1629, %v1060
      %v1631 = vpop.permute.xlu0 %1630
      %1634 = vset.pattern.permute.xlu0 0
      %1635 = vperm.xlu0 %1634, %v1061
      %v1636 = vpop.permute.xlu0 %1635
      %1639 = vset.pattern.permute.xlu0 0
      %1640 = vperm.xlu0 %1639, %v1062
      %v1641 = vpop.permute.xlu0 %1640
      %1644 = vset.pattern.permute.xlu0 0
      %1645 = vperm.xlu0 %1644, %v1063
      %v1646 = vpop.permute.xlu0 %1645
      %1649 = vset.pattern.permute.xlu0 0
      %1650 = vperm.xlu0 %1649, %v1064
      %v1651 = vpop.permute.xlu0 %1650
      %1654 = vset.pattern.permute.xlu0 0
      %1655 = vperm.xlu0 %1654, %v1065
      %v1656 = vpop.permute.xlu0 %1655
      %1659 = vset.pattern.permute.xlu0 0
      %1660 = vperm.xlu0 %1659, %v1066
      %v1661 = vpop.permute.xlu0 %1660
      %1664 = vset.pattern.permute.xlu0 0
      %1665 = vperm.xlu0 %1664, %v1067
      %v1666 = vpop.permute.xlu0 %1665
      %1669 = vset.pattern.permute.xlu0 0
      %1670 = vperm.xlu0 %1669, %v1068
      %v1671 = vpop.permute.xlu0 %1670
      %1674 = vset.pattern.permute.xlu0 0
      %1675 = vperm.xlu0 %1674, %v1069
      %v1676 = vpop.permute.xlu0 %1675
      %1679 = vset.pattern.permute.xlu0 0
      %1680 = vperm.xlu0 %1679, %v1070
      %v1681 = vpop.permute.xlu0 %1680
      %1684 = vset.pattern.permute.xlu0 0
      %1685 = vperm.xlu0 %1684, %v1071
      %v1686 = vpop.permute.xlu0 %1685
      %1689 = vset.pattern.permute.xlu0 0
      %1690 = vperm.xlu0 %1689, %v1072
      %v1691 = vpop.permute.xlu0 %1690
      %1694 = vset.pattern.permute.xlu0 0
      %1695 = vperm.xlu0 %1694, %v1073
      %v1696 = vpop.permute.xlu0 %1695
      %1699 = vset.pattern.permute.xlu0 0
      %1700 = vperm.xlu0 %1699, %v1074
      %v1701 = vpop.permute.xlu0 %1700
      %1704 = vset.pattern.permute.xlu0 0
      %1705 = vperm.xlu0 %1704, %v1075
      %v1706 = vpop.permute.xlu0 %1705
      %1709 = vset.pattern.permute.xlu0 0
      %1710 = vperm.xlu0 %1709, %v1076
      %v1711 = vpop.permute.xlu0 %1710
      %1714 = vset.pattern.permute.xlu0 0
      %1715 = vperm.xlu0 %1714, %v1077
      %v1716 = vpop.permute.xlu0 %1715
      %v1846 = vunpack.c.l.b16 %v822
      %v1847 = vunpack.c.l.b16 %v823
      %v1848 = vunpack.c.l.b16 %v824
      %v1849 = vunpack.c.l.b16 %v825
      %v1850 = vunpack.c.l.b16 %v826
      %v1851 = vunpack.c.l.b16 %v827
      %v1852 = vunpack.c.l.b16 %v828
      %v1853 = vunpack.c.l.b16 %v829
      %v1854 = vunpack.c.l.b16 %v830
      %v1855 = vunpack.c.l.b16 %v831
      %v1856 = vunpack.c.l.b16 %v832
      %v1857 = vunpack.c.l.b16 %v833
      %v1858 = vunpack.c.l.b16 %v834
      %v1859 = vunpack.c.l.b16 %v835
      %v1860 = vunpack.c.l.b16 %v836
      %v1861 = vunpack.c.l.b16 %v837
      %v1862 = vunpack.c.l.b16 %v838
      %v1863 = vunpack.c.l.b16 %v839
      %v1864 = vunpack.c.l.b16 %v840
      %v1865 = vunpack.c.l.b16 %v841
      %v1866 = vunpack.c.l.b16 %v842
      %v1867 = vunpack.c.l.b16 %v843
      %v1868 = vunpack.c.l.b16 %v844
      %v1869 = vunpack.c.l.b16 %v845
      %v1870 = vunpack.c.l.b16 %v846
      %v1871 = vunpack.c.l.b16 %v847
      %v1872 = vunpack.c.l.b16 %v848
      %v1873 = vunpack.c.l.b16 %v849
      %v1874 = vunpack.c.l.b16 %v850
      %v1875 = vunpack.c.l.b16 %v851
      %v1876 = vunpack.c.l.b16 %v852
      %v1877 = vunpack.c.l.b16 %v853
      %v1878 = vunpack.c.l.b16 %v854
      %v1879 = vunpack.c.l.b16 %v855
      %v1880 = vunpack.c.l.b16 %v856
      %v1881 = vunpack.c.l.b16 %v857
      %v1882 = vunpack.c.l.b16 %v858
      %v1883 = vunpack.c.l.b16 %v859
      %v1884 = vunpack.c.l.b16 %v860
      %v1885 = vunpack.c.l.b16 %v861
      %v1886 = vunpack.c.l.b16 %v862
      %v1887 = vunpack.c.l.b16 %v863
      %v1888 = vunpack.c.l.b16 %v864
      %v1889 = vunpack.c.l.b16 %v865
      %v1890 = vunpack.c.l.b16 %v866
      %v1891 = vunpack.c.l.b16 %v867
      %v1892 = vunpack.c.l.b16 %v868
      %v1893 = vunpack.c.l.b16 %v869
      %v1894 = vunpack.c.l.b16 %v870
      %v1895 = vunpack.c.l.b16 %v871
      %v1896 = vunpack.c.l.b16 %v872
      %v1897 = vunpack.c.l.b16 %v873
      %v1898 = vunpack.c.l.b16 %v874
      %v1899 = vunpack.c.l.b16 %v875
      %v1900 = vunpack.c.l.b16 %v876
      %v1901 = vunpack.c.l.b16 %v877
      %v1902 = vunpack.c.l.b16 %v878
      %v1903 = vunpack.c.l.b16 %v879
      %v1904 = vunpack.c.l.b16 %v880
      %v1905 = vunpack.c.l.b16 %v881
      %v1906 = vunpack.c.l.b16 %v882
      %v1907 = vunpack.c.l.b16 %v883
      %v1908 = vunpack.c.l.b16 %v884
      %v1909 = vunpack.c.l.b16 %v885
      %v1910 = vunpack.c.l.b16 %v886
      %v1911 = vunpack.c.l.b16 %v887
      %v1912 = vunpack.c.l.b16 %v888
      %v1913 = vunpack.c.l.b16 %v889
      %v1914 = vunpack.c.l.b16 %v890
      %v1915 = vunpack.c.l.b16 %v891
      %v1916 = vunpack.c.l.b16 %v892
      %v1917 = vunpack.c.l.b16 %v893
      %v1918 = vunpack.c.l.b16 %v894
      %v1919 = vunpack.c.l.b16 %v895
      %v1920 = vunpack.c.l.b16 %v896
      %v1921 = vunpack.c.l.b16 %v897
      %v1922 = vunpack.c.l.b16 %v898
      %v1923 = vunpack.c.l.b16 %v899
      %v1924 = vunpack.c.l.b16 %v900
      %v1925 = vunpack.c.l.b16 %v901
      %v1926 = vunpack.c.l.b16 %v902
      %v1927 = vunpack.c.l.b16 %v903
      %v1928 = vunpack.c.l.b16 %v904
      %v1929 = vunpack.c.l.b16 %v905
      %v1930 = vunpack.c.l.b16 %v906
      %v1931 = vunpack.c.l.b16 %v907
      %v1932 = vunpack.c.l.b16 %v908
      %v1933 = vunpack.c.l.b16 %v909
      %v1934 = vunpack.c.l.b16 %v910
      %v1935 = vunpack.c.l.b16 %v911
      %v1936 = vunpack.c.l.b16 %v912
      %v1937 = vunpack.c.l.b16 %v913
      %v1938 = vunpack.c.l.b16 %v914
      %v1939 = vunpack.c.l.b16 %v915
      %v1940 = vunpack.c.l.b16 %v916
      %v1941 = vunpack.c.l.b16 %v917
      %v1942 = vunpack.c.l.b16 %v918
      %v1943 = vunpack.c.l.b16 %v919
      %v1944 = vunpack.c.l.b16 %v920
      %v1945 = vunpack.c.l.b16 %v921
      %v1946 = vunpack.c.l.b16 %v922
      %v1947 = vunpack.c.l.b16 %v923
      %v1948 = vunpack.c.l.b16 %v924
      %v1949 = vunpack.c.l.b16 %v925
      %v1950 = vunpack.c.l.b16 %v926
      %v1951 = vunpack.c.l.b16 %v927
      %v1952 = vunpack.c.l.b16 %v928
      %v1953 = vunpack.c.l.b16 %v929
      %v1954 = vunpack.c.l.b16 %v930
      %v1955 = vunpack.c.l.b16 %v931
      %v1956 = vunpack.c.l.b16 %v932
      %v1957 = vunpack.c.l.b16 %v933
      %v1958 = vunpack.c.l.b16 %v934
      %v1959 = vunpack.c.l.b16 %v935
      %v1960 = vunpack.c.l.b16 %v936
      %v1961 = vunpack.c.l.b16 %v937
      %v1962 = vunpack.c.l.b16 %v938
      %v1963 = vunpack.c.l.b16 %v939
      %v1964 = vunpack.c.l.b16 %v940
      %v1965 = vunpack.c.l.b16 %v941
      %v1966 = vunpack.c.l.b16 %v942
      %v1967 = vunpack.c.l.b16 %v943
      %v1968 = vunpack.c.l.b16 %v944
      %v1969 = vunpack.c.l.b16 %v945
      %v1970 = vunpack.c.l.b16 %v946
      %v1971 = vunpack.c.l.b16 %v947
      %v1972 = vunpack.c.l.b16 %v948
      %v1973 = vunpack.c.l.b16 %v949
      %v1974 = vpack.c.b16 %v1847, %v1846
      %v1975 = vpack.c.b16 %v1849, %v1848
      %v1976 = vpack.c.b16 %v1851, %v1850
      %v1977 = vpack.c.b16 %v1853, %v1852
      %v1978 = vpack.c.b16 %v1855, %v1854
      %v1979 = vpack.c.b16 %v1857, %v1856
      %v1980 = vpack.c.b16 %v1859, %v1858
      %v1981 = vpack.c.b16 %v1861, %v1860
      %v1982 = vpack.c.b16 %v1863, %v1862
      %v1983 = vpack.c.b16 %v1865, %v1864
      %v1984 = vpack.c.b16 %v1867, %v1866
      %v1985 = vpack.c.b16 %v1869, %v1868
      %v1986 = vpack.c.b16 %v1871, %v1870
      %v1987 = vpack.c.b16 %v1873, %v1872
      %v1988 = vpack.c.b16 %v1875, %v1874
      %v1989 = vpack.c.b16 %v1877, %v1876
      %v1990 = vpack.c.b16 %v1879, %v1878
      %v1991 = vpack.c.b16 %v1881, %v1880
      %v1992 = vpack.c.b16 %v1883, %v1882
      %v1993 = vpack.c.b16 %v1885, %v1884
      %v1994 = vpack.c.b16 %v1887, %v1886
      %v1995 = vpack.c.b16 %v1889, %v1888
      %v1996 = vpack.c.b16 %v1891, %v1890
      %v1997 = vpack.c.b16 %v1893, %v1892
      %v1998 = vpack.c.b16 %v1895, %v1894
      %v1999 = vpack.c.b16 %v1897, %v1896
      %v2000 = vpack.c.b16 %v1899, %v1898
      %v2001 = vpack.c.b16 %v1901, %v1900
      %v2002 = vpack.c.b16 %v1903, %v1902
      %v2003 = vpack.c.b16 %v1905, %v1904
      %v2004 = vpack.c.b16 %v1907, %v1906
      %v2005 = vpack.c.b16 %v1909, %v1908
      %v2006 = vpack.c.b16 %v1911, %v1910
      %v2007 = vpack.c.b16 %v1913, %v1912
      %v2008 = vpack.c.b16 %v1915, %v1914
      %v2009 = vpack.c.b16 %v1917, %v1916
      %v2010 = vpack.c.b16 %v1919, %v1918
      %v2011 = vpack.c.b16 %v1921, %v1920
      %v2012 = vpack.c.b16 %v1923, %v1922
      %v2013 = vpack.c.b16 %v1925, %v1924
      %v2014 = vpack.c.b16 %v1927, %v1926
      %v2015 = vpack.c.b16 %v1929, %v1928
      %v2016 = vpack.c.b16 %v1931, %v1930
      %v2017 = vpack.c.b16 %v1933, %v1932
      %v2018 = vpack.c.b16 %v1935, %v1934
      %v2019 = vpack.c.b16 %v1937, %v1936
      %v2020 = vpack.c.b16 %v1939, %v1938
      %v2021 = vpack.c.b16 %v1941, %v1940
      %v2022 = vpack.c.b16 %v1943, %v1942
      %v2023 = vpack.c.b16 %v1945, %v1944
      %v2024 = vpack.c.b16 %v1947, %v1946
      %v2025 = vpack.c.b16 %v1949, %v1948
      %v2026 = vpack.c.b16 %v1951, %v1950
      %v2027 = vpack.c.b16 %v1953, %v1952
      %v2028 = vpack.c.b16 %v1955, %v1954
      %v2029 = vpack.c.b16 %v1957, %v1956
      %v2030 = vpack.c.b16 %v1959, %v1958
      %v2031 = vpack.c.b16 %v1961, %v1960
      %v2032 = vpack.c.b16 %v1963, %v1962
      %v2033 = vpack.c.b16 %v1965, %v1964
      %v2034 = vpack.c.b16 %v1967, %v1966
      %v2035 = vpack.c.b16 %v1969, %v1968
      %v2036 = vpack.c.b16 %v1971, %v1970
      %v2037 = vpack.c.b16 %v1973, %v1972
      %2102 = vmatpush.bf16.msra.mxu0 %v821
      %2103 = vmatpush.bf16.msra.mxu0 %v820
      %2104 = vmatpush.bf16.msra.mxu0 %v819
      %2105 = vmatpush.bf16.msra.mxu0 %v818
      %2106 = vmatpush.bf16.msra.mxu0 %v817
      %2107 = vmatpush.bf16.msra.mxu0 %v816
      %2108 = vmatpush.bf16.msra.mxu0 %v815
      %2109 = vmatpush.bf16.msra.mxu0 %v814
      %2110 = vmatmul.bf16.gmra.mxu0 %v1974
      %v2111 = vpop.f32.mrf.mxu0
      %v2112 = vadd.f32 %v1081, %v2111
      %v2113 = vpop.f32.mrf.mxu0
      %v2114 = vadd.f32 %v1086, %v2113
      %2115 = vmatmul.bf16.gmra.mxu0 %v1975
      %v2116 = vpop.f32.mrf.mxu0
      %v2117 = vadd.f32 %v1091, %v2116
      %v2118 = vpop.f32.mrf.mxu0
      %v2119 = vadd.f32 %v1096, %v2118
      %2120 = vmatmul.bf16.gmra.mxu0 %v1976
      %v2121 = vpop.f32.mrf.mxu0
      %v2122 = vadd.f32 %v1101, %v2121
      %v2123 = vpop.f32.mrf.mxu0
      %v2124 = vadd.f32 %v1106, %v2123
      %2125 = vmatmul.bf16.gmra.mxu0 %v1977
      %v2126 = vpop.f32.mrf.mxu0
      %v2127 = vadd.f32 %v1111, %v2126
      %v2128 = vpop.f32.mrf.mxu0
      %v2129 = vadd.f32 %v1116, %v2128
      %2130 = vmatmul.bf16.gmra.mxu0 %v1978
      %v2131 = vpop.f32.mrf.mxu0
      %v2132 = vadd.f32 %v1121, %v2131
      %v2133 = vpop.f32.mrf.mxu0
      %v2134 = vadd.f32 %v1126, %v2133
      %2135 = vmatmul.bf16.gmra.mxu0 %v1979
      %v2136 = vpop.f32.mrf.mxu0
      %v2137 = vadd.f32 %v1131, %v2136
      %v2138 = vpop.f32.mrf.mxu0
      %v2139 = vadd.f32 %v1136, %v2138
      %2140 = vmatmul.bf16.gmra.mxu0 %v1980
      %v2141 = vpop.f32.mrf.mxu0
      %v2142 = vadd.f32 %v1141, %v2141
      %v2143 = vpop.f32.mrf.mxu0
      %v2144 = vadd.f32 %v1146, %v2143
      %2145 = vmatmul.bf16.gmra.mxu0 %v1981
      %v2146 = vpop.f32.mrf.mxu0
      %v2147 = vadd.f32 %v1151, %v2146
      %v2148 = vpop.f32.mrf.mxu0
      %v2149 = vadd.f32 %v1156, %v2148
      %2150 = vmatmul.bf16.gmra.mxu0 %v1982
      %v2151 = vpop.f32.mrf.mxu0
      %v2152 = vadd.f32 %v1161, %v2151
      %v2153 = vpop.f32.mrf.mxu0
      %v2154 = vadd.f32 %v1166, %v2153
      %2155 = vmatmul.bf16.gmra.mxu0 %v1983
      %v2156 = vpop.f32.mrf.mxu0
      %v2157 = vadd.f32 %v1171, %v2156
      %v2158 = vpop.f32.mrf.mxu0
      %v2159 = vadd.f32 %v1176, %v2158
      %2160 = vmatmul.bf16.gmra.mxu0 %v1984
      %v2161 = vpop.f32.mrf.mxu0
      %v2162 = vadd.f32 %v1181, %v2161
      %v2163 = vpop.f32.mrf.mxu0
      %v2164 = vadd.f32 %v1186, %v2163
      %2165 = vmatmul.bf16.gmra.mxu0 %v1985
      %v2166 = vpop.f32.mrf.mxu0
      %v2167 = vadd.f32 %v1191, %v2166
      %v2168 = vpop.f32.mrf.mxu0
      %v2169 = vadd.f32 %v1196, %v2168
      %2170 = vmatmul.bf16.gmra.mxu0 %v1986
      %v2171 = vpop.f32.mrf.mxu0
      %v2172 = vadd.f32 %v1201, %v2171
      %v2173 = vpop.f32.mrf.mxu0
      %v2174 = vadd.f32 %v1206, %v2173
      %2175 = vmatmul.bf16.gmra.mxu0 %v1987
      %v2176 = vpop.f32.mrf.mxu0
      %v2177 = vadd.f32 %v1211, %v2176
      %v2178 = vpop.f32.mrf.mxu0
      %v2179 = vadd.f32 %v1216, %v2178
      %2180 = vmatmul.bf16.gmra.mxu0 %v1988
      %v2181 = vpop.f32.mrf.mxu0
      %v2182 = vadd.f32 %v1221, %v2181
      %v2183 = vpop.f32.mrf.mxu0
      %v2184 = vadd.f32 %v1226, %v2183
      %2185 = vmatmul.bf16.gmra.mxu0 %v1989
      %v2186 = vpop.f32.mrf.mxu0
      %v2187 = vadd.f32 %v1231, %v2186
      %v2188 = vpop.f32.mrf.mxu0
      %v2189 = vadd.f32 %v1236, %v2188
      %2190 = vmatmul.bf16.gmra.mxu0 %v1990
      %v2191 = vpop.f32.mrf.mxu0
      %v2192 = vadd.f32 %v1241, %v2191
      %v2193 = vpop.f32.mrf.mxu0
      %v2194 = vadd.f32 %v1246, %v2193
      %2195 = vmatmul.bf16.gmra.mxu0 %v1991
      %v2196 = vpop.f32.mrf.mxu0
      %v2197 = vadd.f32 %v1251, %v2196
      %v2198 = vpop.f32.mrf.mxu0
      %v2199 = vadd.f32 %v1256, %v2198
      %2200 = vmatmul.bf16.gmra.mxu0 %v1992
      %v2201 = vpop.f32.mrf.mxu0
      %v2202 = vadd.f32 %v1261, %v2201
      %v2203 = vpop.f32.mrf.mxu0
      %v2204 = vadd.f32 %v1266, %v2203
      %2205 = vmatmul.bf16.gmra.mxu0 %v1993
      %v2206 = vpop.f32.mrf.mxu0
      %v2207 = vadd.f32 %v1271, %v2206
      %v2208 = vpop.f32.mrf.mxu0
      %v2209 = vadd.f32 %v1276, %v2208
      %2210 = vmatmul.bf16.gmra.mxu0 %v1994
      %v2211 = vpop.f32.mrf.mxu0
      %v2212 = vadd.f32 %v1281, %v2211
      %v2213 = vpop.f32.mrf.mxu0
      %v2214 = vadd.f32 %v1286, %v2213
      %2215 = vmatmul.bf16.gmra.mxu0 %v1995
      %v2216 = vpop.f32.mrf.mxu0
      %v2217 = vadd.f32 %v1291, %v2216
      %v2218 = vpop.f32.mrf.mxu0
      %v2219 = vadd.f32 %v1296, %v2218
      %2220 = vmatmul.bf16.gmra.mxu0 %v1996
      %v2221 = vpop.f32.mrf.mxu0
      %v2222 = vadd.f32 %v1301, %v2221
      %v2223 = vpop.f32.mrf.mxu0
      %v2224 = vadd.f32 %v1306, %v2223
      %2225 = vmatmul.bf16.gmra.mxu0 %v1997
      %v2226 = vpop.f32.mrf.mxu0
      %v2227 = vadd.f32 %v1311, %v2226
      %v2228 = vpop.f32.mrf.mxu0
      %v2229 = vadd.f32 %v1316, %v2228
      %2230 = vmatmul.bf16.gmra.mxu0 %v1998
      %v2231 = vpop.f32.mrf.mxu0
      %v2232 = vadd.f32 %v1321, %v2231
      %v2233 = vpop.f32.mrf.mxu0
      %v2234 = vadd.f32 %v1326, %v2233
      %2235 = vmatmul.bf16.gmra.mxu0 %v1999
      %v2236 = vpop.f32.mrf.mxu0
      %v2237 = vadd.f32 %v1331, %v2236
      %v2238 = vpop.f32.mrf.mxu0
      %v2239 = vadd.f32 %v1336, %v2238
      %2240 = vmatmul.bf16.gmra.mxu0 %v2000
      %v2241 = vpop.f32.mrf.mxu0
      %v2242 = vadd.f32 %v1341, %v2241
      %v2243 = vpop.f32.mrf.mxu0
      %v2244 = vadd.f32 %v1346, %v2243
      %2245 = vmatmul.bf16.gmra.mxu0 %v2001
      %v2246 = vpop.f32.mrf.mxu0
      %v2247 = vadd.f32 %v1351, %v2246
      %v2248 = vpop.f32.mrf.mxu0
      %v2249 = vadd.f32 %v1356, %v2248
      %2250 = vmatmul.bf16.gmra.mxu0 %v2002
      %v2251 = vpop.f32.mrf.mxu0
      %v2252 = vadd.f32 %v1361, %v2251
      %v2253 = vpop.f32.mrf.mxu0
      %v2254 = vadd.f32 %v1366, %v2253
      %2255 = vmatmul.bf16.gmra.mxu0 %v2003
      %v2256 = vpop.f32.mrf.mxu0
      %v2257 = vadd.f32 %v1371, %v2256
      %v2258 = vpop.f32.mrf.mxu0
      %v2259 = vadd.f32 %v1376, %v2258
      %2260 = vmatmul.bf16.gmra.mxu0 %v2004
      %v2261 = vpop.f32.mrf.mxu0
      %v2262 = vadd.f32 %v1381, %v2261
      %v2263 = vpop.f32.mrf.mxu0
      %v2264 = vadd.f32 %v1386, %v2263
      %2265 = vmatmul.bf16.gmra.mxu0 %v2005
      %v2266 = vpop.f32.mrf.mxu0
      %v2267 = vadd.f32 %v1391, %v2266
      %v2268 = vpop.f32.mrf.mxu0
      %v2269 = vadd.f32 %v1396, %v2268
      %2270 = vmatmul.bf16.gmra.mxu0 %v2006
      %v2271 = vpop.f32.mrf.mxu0
      %v2272 = vadd.f32 %v1401, %v2271
      %v2273 = vpop.f32.mrf.mxu0
      %v2274 = vadd.f32 %v1406, %v2273
      %2275 = vmatmul.bf16.gmra.mxu0 %v2007
      %v2276 = vpop.f32.mrf.mxu0
      %v2277 = vadd.f32 %v1411, %v2276
      %v2278 = vpop.f32.mrf.mxu0
      %v2279 = vadd.f32 %v1416, %v2278
      %2280 = vmatmul.bf16.gmra.mxu0 %v2008
      %v2281 = vpop.f32.mrf.mxu0
      %v2282 = vadd.f32 %v1421, %v2281
      %v2283 = vpop.f32.mrf.mxu0
      %v2284 = vadd.f32 %v1426, %v2283
      %2285 = vmatmul.bf16.gmra.mxu0 %v2009
      %v2286 = vpop.f32.mrf.mxu0
      %v2287 = vadd.f32 %v1431, %v2286
      %v2288 = vpop.f32.mrf.mxu0
      %v2289 = vadd.f32 %v1436, %v2288
      %2290 = vmatmul.bf16.gmra.mxu0 %v2010
      %v2291 = vpop.f32.mrf.mxu0
      %v2292 = vadd.f32 %v1441, %v2291
      %v2293 = vpop.f32.mrf.mxu0
      %v2294 = vadd.f32 %v1446, %v2293
      %2295 = vmatmul.bf16.gmra.mxu0 %v2011
      %v2296 = vpop.f32.mrf.mxu0
      %v2297 = vadd.f32 %v1451, %v2296
      %v2298 = vpop.f32.mrf.mxu0
      %v2299 = vadd.f32 %v1456, %v2298
      %2300 = vmatmul.bf16.gmra.mxu0 %v2012
      %v2301 = vpop.f32.mrf.mxu0
      %v2302 = vadd.f32 %v1461, %v2301
      %v2303 = vpop.f32.mrf.mxu0
      %v2304 = vadd.f32 %v1466, %v2303
      %2305 = vmatmul.bf16.gmra.mxu0 %v2013
      %v2306 = vpop.f32.mrf.mxu0
      %v2307 = vadd.f32 %v1471, %v2306
      %v2308 = vpop.f32.mrf.mxu0
      %v2309 = vadd.f32 %v1476, %v2308
      %2310 = vmatmul.bf16.gmra.mxu0 %v2014
      %v2311 = vpop.f32.mrf.mxu0
      %v2312 = vadd.f32 %v1481, %v2311
      %v2313 = vpop.f32.mrf.mxu0
      %v2314 = vadd.f32 %v1486, %v2313
      %2315 = vmatmul.bf16.gmra.mxu0 %v2015
      %v2316 = vpop.f32.mrf.mxu0
      %v2317 = vadd.f32 %v1491, %v2316
      %v2318 = vpop.f32.mrf.mxu0
      %v2319 = vadd.f32 %v1496, %v2318
      %2320 = vmatmul.bf16.gmra.mxu0 %v2016
      %v2321 = vpop.f32.mrf.mxu0
      %v2322 = vadd.f32 %v1501, %v2321
      %v2323 = vpop.f32.mrf.mxu0
      %v2324 = vadd.f32 %v1506, %v2323
      %2325 = vmatmul.bf16.gmra.mxu0 %v2017
      %v2326 = vpop.f32.mrf.mxu0
      %v2327 = vadd.f32 %v1511, %v2326
      %v2328 = vpop.f32.mrf.mxu0
      %v2329 = vadd.f32 %v1516, %v2328
      %2330 = vmatmul.bf16.gmra.mxu0 %v2018
      %v2331 = vpop.f32.mrf.mxu0
      %v2332 = vadd.f32 %v1521, %v2331
      %v2333 = vpop.f32.mrf.mxu0
      %v2334 = vadd.f32 %v1526, %v2333
      %2335 = vmatmul.bf16.gmra.mxu0 %v2019
      %v2336 = vpop.f32.mrf.mxu0
      %v2337 = vadd.f32 %v1531, %v2336
      %v2338 = vpop.f32.mrf.mxu0
      %v2339 = vadd.f32 %v1536, %v2338
      %2340 = vmatmul.bf16.gmra.mxu0 %v2020
      %v2341 = vpop.f32.mrf.mxu0
      %v2342 = vadd.f32 %v1541, %v2341
      %v2343 = vpop.f32.mrf.mxu0
      %v2344 = vadd.f32 %v1546, %v2343
      %2345 = vmatmul.bf16.gmra.mxu0 %v2021
      %v2346 = vpop.f32.mrf.mxu0
      %v2347 = vadd.f32 %v1551, %v2346
      %v2348 = vpop.f32.mrf.mxu0
      %v2349 = vadd.f32 %v1556, %v2348
      %2350 = vmatmul.bf16.gmra.mxu0 %v2022
      %v2351 = vpop.f32.mrf.mxu0
      %v2352 = vadd.f32 %v1561, %v2351
      %v2353 = vpop.f32.mrf.mxu0
      %v2354 = vadd.f32 %v1566, %v2353
      %2355 = vmatmul.bf16.gmra.mxu0 %v2023
      %v2356 = vpop.f32.mrf.mxu0
      %v2357 = vadd.f32 %v1571, %v2356
      %v2358 = vpop.f32.mrf.mxu0
      %v2359 = vadd.f32 %v1576, %v2358
      %2360 = vmatmul.bf16.gmra.mxu0 %v2024
      %v2361 = vpop.f32.mrf.mxu0
      %v2362 = vadd.f32 %v1581, %v2361
      %v2363 = vpop.f32.mrf.mxu0
      %v2364 = vadd.f32 %v1586, %v2363
      %2365 = vmatmul.bf16.gmra.mxu0 %v2025
      %v2366 = vpop.f32.mrf.mxu0
      %v2367 = vadd.f32 %v1591, %v2366
      %v2368 = vpop.f32.mrf.mxu0
      %v2369 = vadd.f32 %v1596, %v2368
      %2370 = vmatmul.bf16.gmra.mxu0 %v2026
      %v2371 = vpop.f32.mrf.mxu0
      %v2372 = vadd.f32 %v1601, %v2371
      %v2373 = vpop.f32.mrf.mxu0
      %v2374 = vadd.f32 %v1606, %v2373
      %2375 = vmatmul.bf16.gmra.mxu0 %v2027
      %v2376 = vpop.f32.mrf.mxu0
      %v2377 = vadd.f32 %v1611, %v2376
      %v2378 = vpop.f32.mrf.mxu0
      %v2379 = vadd.f32 %v1616, %v2378
      %2380 = vmatmul.bf16.gmra.mxu0 %v2028
      %v2381 = vpop.f32.mrf.mxu0
      %v2382 = vadd.f32 %v1621, %v2381
      %v2383 = vpop.f32.mrf.mxu0
      %v2384 = vadd.f32 %v1626, %v2383
      %2385 = vmatmul.bf16.gmra.mxu0 %v2029
      %v2386 = vpop.f32.mrf.mxu0
      %v2387 = vadd.f32 %v1631, %v2386
      %v2388 = vpop.f32.mrf.mxu0
      %v2389 = vadd.f32 %v1636, %v2388
      %2390 = vmatmul.bf16.gmra.mxu0 %v2030
      %v2391 = vpop.f32.mrf.mxu0
      %v2392 = vadd.f32 %v1641, %v2391
      %v2393 = vpop.f32.mrf.mxu0
      %v2394 = vadd.f32 %v1646, %v2393
      %2395 = vmatmul.bf16.gmra.mxu0 %v2031
      %v2396 = vpop.f32.mrf.mxu0
      %v2397 = vadd.f32 %v1651, %v2396
      %v2398 = vpop.f32.mrf.mxu0
      %v2399 = vadd.f32 %v1656, %v2398
      %2400 = vmatmul.bf16.gmra.mxu0 %v2032
      %v2401 = vpop.f32.mrf.mxu0
      %v2402 = vadd.f32 %v1661, %v2401
      %v2403 = vpop.f32.mrf.mxu0
      %v2404 = vadd.f32 %v1666, %v2403
      %2405 = vmatmul.bf16.gmra.mxu0 %v2033
      %v2406 = vpop.f32.mrf.mxu0
      %v2407 = vadd.f32 %v1671, %v2406
      %v2408 = vpop.f32.mrf.mxu0
      %v2409 = vadd.f32 %v1676, %v2408
      %2410 = vmatmul.bf16.gmra.mxu0 %v2034
      %v2411 = vpop.f32.mrf.mxu0
      %v2412 = vadd.f32 %v1681, %v2411
      %v2413 = vpop.f32.mrf.mxu0
      %v2414 = vadd.f32 %v1686, %v2413
      %2415 = vmatmul.bf16.gmra.mxu0 %v2035
      %v2416 = vpop.f32.mrf.mxu0
      %v2417 = vadd.f32 %v1691, %v2416
      %v2418 = vpop.f32.mrf.mxu0
      %v2419 = vadd.f32 %v1696, %v2418
      %2420 = vmatmul.bf16.gmra.mxu0 %v2036
      %v2421 = vpop.f32.mrf.mxu0
      %v2422 = vadd.f32 %v1701, %v2421
      %v2423 = vpop.f32.mrf.mxu0
      %v2424 = vadd.f32 %v1706, %v2423
      %2425 = vmatmul.bf16.gmra.mxu0 %v2037
      %v2426 = vpop.f32.mrf.mxu0
      %v2427 = vadd.f32 %v1711, %v2426
      %v2428 = vpop.f32.mrf.mxu0
      %v2429 = vadd.f32 %v1716, %v2428
      %2430 = vdwg.mxu0
      %v2431 = vmax.f32 %v2112, 0.0
      %v2432 = vmax.f32 %v2114, 0.0
      %v2433 = vmax.f32 %v2117, 0.0
      %v2434 = vmax.f32 %v2119, 0.0
      %v2435 = vmax.f32 %v2122, 0.0
      %v2436 = vmax.f32 %v2124, 0.0
      %v2437 = vmax.f32 %v2127, 0.0
      %v2438 = vmax.f32 %v2129, 0.0
      %v2439 = vmax.f32 %v2132, 0.0
      %v2440 = vmax.f32 %v2134, 0.0
      %v2441 = vmax.f32 %v2137, 0.0
      %v2442 = vmax.f32 %v2139, 0.0
      %v2443 = vmax.f32 %v2142, 0.0
      %v2444 = vmax.f32 %v2144, 0.0
      %v2445 = vmax.f32 %v2147, 0.0
      %v2446 = vmax.f32 %v2149, 0.0
      %v2447 = vmax.f32 %v2152, 0.0
      %v2448 = vmax.f32 %v2154, 0.0
      %v2449 = vmax.f32 %v2157, 0.0
      %v2450 = vmax.f32 %v2159, 0.0
      %v2451 = vmax.f32 %v2162, 0.0
      %v2452 = vmax.f32 %v2164, 0.0
      %v2453 = vmax.f32 %v2167, 0.0
      %v2454 = vmax.f32 %v2169, 0.0
      %v2455 = vmax.f32 %v2172, 0.0
      %v2456 = vmax.f32 %v2174, 0.0
      %v2457 = vmax.f32 %v2177, 0.0
      %v2458 = vmax.f32 %v2179, 0.0
      %v2459 = vmax.f32 %v2182, 0.0
      %v2460 = vmax.f32 %v2184, 0.0
      %v2461 = vmax.f32 %v2187, 0.0
      %v2462 = vmax.f32 %v2189, 0.0
      %v2463 = vmax.f32 %v2192, 0.0
      %v2464 = vmax.f32 %v2194, 0.0
      %v2465 = vmax.f32 %v2197, 0.0
      %v2466 = vmax.f32 %v2199, 0.0
      %v2467 = vmax.f32 %v2202, 0.0
      %v2468 = vmax.f32 %v2204, 0.0
      %v2469 = vmax.f32 %v2207, 0.0
      %v2470 = vmax.f32 %v2209, 0.0
      %v2471 = vmax.f32 %v2212, 0.0
      %v2472 = vmax.f32 %v2214, 0.0
      %v2473 = vmax.f32 %v2217, 0.0
      %v2474 = vmax.f32 %v2219, 0.0
      %v2475 = vmax.f32 %v2222, 0.0
      %v2476 = vmax.f32 %v2224, 0.0
      %v2477 = vmax.f32 %v2227, 0.0
      %v2478 = vmax.f32 %v2229, 0.0
      %v2479 = vmax.f32 %v2232, 0.0
      %v2480 = vmax.f32 %v2234, 0.0
      %v2481 = vmax.f32 %v2237, 0.0
      %v2482 = vmax.f32 %v2239, 0.0
      %v2483 = vmax.f32 %v2242, 0.0
      %v2484 = vmax.f32 %v2244, 0.0
      %v2485 = vmax.f32 %v2247, 0.0
      %v2486 = vmax.f32 %v2249, 0.0
      %v2487 = vmax.f32 %v2252, 0.0
      %v2488 = vmax.f32 %v2254, 0.0
      %v2489 = vmax.f32 %v2257, 0.0
      %v2490 = vmax.f32 %v2259, 0.0
      %v2491 = vmax.f32 %v2262, 0.0
      %v2492 = vmax.f32 %v2264, 0.0
      %v2493 = vmax.f32 %v2267, 0.0
      %v2494 = vmax.f32 %v2269, 0.0
      %v2495 = vmax.f32 %v2272, 0.0
      %v2496 = vmax.f32 %v2274, 0.0
      %v2497 = vmax.f32 %v2277, 0.0
      %v2498 = vmax.f32 %v2279, 0.0
      %v2499 = vmax.f32 %v2282, 0.0
      %v2500 = vmax.f32 %v2284, 0.0
      %v2501 = vmax.f32 %v2287, 0.0
      %v2502 = vmax.f32 %v2289, 0.0
      %v2503 = vmax.f32 %v2292, 0.0
      %v2504 = vmax.f32 %v2294, 0.0
      %v2505 = vmax.f32 %v2297, 0.0
      %v2506 = vmax.f32 %v2299, 0.0
      %v2507 = vmax.f32 %v2302, 0.0
      %v2508 = vmax.f32 %v2304, 0.0
      %v2509 = vmax.f32 %v2307, 0.0
      %v2510 = vmax.f32 %v2309, 0.0
      %v2511 = vmax.f32 %v2312, 0.0
      %v2512 = vmax.f32 %v2314, 0.0
      %v2513 = vmax.f32 %v2317, 0.0
      %v2514 = vmax.f32 %v2319, 0.0
      %v2515 = vmax.f32 %v2322, 0.0
      %v2516 = vmax.f32 %v2324, 0.0
      %v2517 = vmax.f32 %v2327, 0.0
      %v2518 = vmax.f32 %v2329, 0.0
      %v2519 = vmax.f32 %v2332, 0.0
      %v2520 = vmax.f32 %v2334, 0.0
      %v2521 = vmax.f32 %v2337, 0.0
      %v2522 = vmax.f32 %v2339, 0.0
      %v2523 = vmax.f32 %v2342, 0.0
      %v2524 = vmax.f32 %v2344, 0.0
      %v2525 = vmax.f32 %v2347, 0.0
      %v2526 = vmax.f32 %v2349, 0.0
      %v2527 = vmax.f32 %v2352, 0.0
      %v2528 = vmax.f32 %v2354, 0.0
      %v2529 = vmax.f32 %v2357, 0.0
      %v2530 = vmax.f32 %v2359, 0.0
      %v2531 = vmax.f32 %v2362, 0.0
      %v2532 = vmax.f32 %v2364, 0.0
      %v2533 = vmax.f32 %v2367, 0.0
      %v2534 = vmax.f32 %v2369, 0.0
      %v2535 = vmax.f32 %v2372, 0.0
      %v2536 = vmax.f32 %v2374, 0.0
      %v2537 = vmax.f32 %v2377, 0.0
      %v2538 = vmax.f32 %v2379, 0.0
      %v2539 = vmax.f32 %v2382, 0.0
      %v2540 = vmax.f32 %v2384, 0.0
      %v2541 = vmax.f32 %v2387, 0.0
      %v2542 = vmax.f32 %v2389, 0.0
      %v2543 = vmax.f32 %v2392, 0.0
      %v2544 = vmax.f32 %v2394, 0.0
      %v2545 = vmax.f32 %v2397, 0.0
      %v2546 = vmax.f32 %v2399, 0.0
      %v2547 = vmax.f32 %v2402, 0.0
      %v2548 = vmax.f32 %v2404, 0.0
      %v2549 = vmax.f32 %v2407, 0.0
      %v2550 = vmax.f32 %v2409, 0.0
      %v2551 = vmax.f32 %v2412, 0.0
      %v2552 = vmax.f32 %v2414, 0.0
      %v2553 = vmax.f32 %v2417, 0.0
      %v2554 = vmax.f32 %v2419, 0.0
      %v2555 = vmax.f32 %v2422, 0.0
      %v2556 = vmax.f32 %v2424, 0.0
      %v2557 = vmax.f32 %v2427, 0.0
      %v2558 = vmax.f32 %v2429, 0.0
      %v2559 = vld [vmem:[#allocation2] sm:$0xff]
      %v2560 = vld [vmem:[#allocation2 + $0x8] sm:$0xff]
      %v2561 = vld [vmem:[#allocation2 + $0x10] sm:$0xff]
      %v2562 = vld [vmem:[#allocation2 + $0x18] sm:$0xff]
      %v2563 = vld [vmem:[#allocation2 + $0x20] sm:$0xff]
      %v2564 = vld [vmem:[#allocation2 + $0x28] sm:$0xff]
      %v2565 = vld [vmem:[#allocation2 + $0x30] sm:$0xff]
      %v2566 = vld [vmem:[#allocation2 + $0x38] sm:$0xff]
      %v2567 = vld [vmem:[#allocation2 + $0x40] sm:$0xff]
      %v2568 = vld [vmem:[#allocation2 + $0x48] sm:$0xff]
      %v2569 = vld [vmem:[#allocation2 + $0x50] sm:$0xff]
      %v2570 = vld [vmem:[#allocation2 + $0x58] sm:$0xff]
      %v2571 = vld [vmem:[#allocation2 + $0x60] sm:$0xff]
      %v2572 = vld [vmem:[#allocation2 + $0x68] sm:$0xff]
      %v2573 = vld [vmem:[#allocation2 + $0x70] sm:$0xff]
      %v2574 = vld [vmem:[#allocation2 + $0x78] sm:$0xff]
      %v2575 = vld [vmem:[#allocation2 + $0x80] sm:$0xff]
      %v2576 = vld [vmem:[#allocation2 + $0x88] sm:$0xff]
      %v2577 = vld [vmem:[#allocation2 + $0x90] sm:$0xff]
      %v2578 = vld [vmem:[#allocation2 + $0x98] sm:$0xff]
      %v2579 = vld [vmem:[#allocation2 + $0xa0] sm:$0xff]
      %v2580 = vld [vmem:[#allocation2 + $0xa8] sm:$0xff]
      %v2581 = vld [vmem:[#allocation2 + $0xb0] sm:$0xff]
      %v2582 = vld [vmem:[#allocation2 + $0xb8] sm:$0xff]
      %v2583 = vld [vmem:[#allocation2 + $0xc0] sm:$0xff]
      %v2584 = vld [vmem:[#allocation2 + $0xc8] sm:$0xff]
      %v2585 = vld [vmem:[#allocation2 + $0xd0] sm:$0xff]
      %v2586 = vld [vmem:[#allocation2 + $0xd8] sm:$0xff]
      %v2587 = vld [vmem:[#allocation2 + $0xe0] sm:$0xff]
      %v2588 = vld [vmem:[#allocation2 + $0xe8] sm:$0xff]
      %v2589 = vld [vmem:[#allocation2 + $0xf0] sm:$0xff]
      %v2590 = vld [vmem:[#allocation2 + $0xf8] sm:$0xff]
      %v2591 = vld [vmem:[#allocation2 + $0x100] sm:$0xff]
      %v2592 = vld [vmem:[#allocation2 + $0x108] sm:$0xff]
      %v2593 = vld [vmem:[#allocation2 + $0x110] sm:$0xff]
      %v2594 = vld [vmem:[#allocation2 + $0x118] sm:$0xff]
      %v2595 = vld [vmem:[#allocation2 + $0x120] sm:$0xff]
      %v2596 = vld [vmem:[#allocation2 + $0x128] sm:$0xff]
      %v2597 = vld [vmem:[#allocation2 + $0x130] sm:$0xff]
      %v2598 = vld [vmem:[#allocation2 + $0x138] sm:$0xff]
      %v2599 = vld [vmem:[#allocation2 + $0x140] sm:$0xff]
      %v2600 = vld [vmem:[#allocation2 + $0x148] sm:$0xff]
      %v2601 = vld [vmem:[#allocation2 + $0x150] sm:$0xff]
      %v2602 = vld [vmem:[#allocation2 + $0x158] sm:$0xff]
      %v2603 = vld [vmem:[#allocation2 + $0x160] sm:$0xff]
      %v2604 = vld [vmem:[#allocation2 + $0x168] sm:$0xff]
      %v2605 = vld [vmem:[#allocation2 + $0x170] sm:$0xff]
      %v2606 = vld [vmem:[#allocation2 + $0x178] sm:$0xff]
      %v2607 = vld [vmem:[#allocation2 + $0x180] sm:$0xff]
      %v2608 = vld [vmem:[#allocation2 + $0x188] sm:$0xff]
      %v2609 = vld [vmem:[#allocation2 + $0x190] sm:$0xff]
      %v2610 = vld [vmem:[#allocation2 + $0x198] sm:$0xff]
      %v2611 = vld [vmem:[#allocation2 + $0x1a0] sm:$0xff]
      %v2612 = vld [vmem:[#allocation2 + $0x1a8] sm:$0xff]
      %v2613 = vld [vmem:[#allocation2 + $0x1b0] sm:$0xff]
      %v2614 = vld [vmem:[#allocation2 + $0x1b8] sm:$0xff]
      %v2615 = vld [vmem:[#allocation2 + $0x1c0] sm:$0xff]
      %v2616 = vld [vmem:[#allocation2 + $0x1c8] sm:$0xff]
      %v2617 = vld [vmem:[#allocation2 + $0x1d0] sm:$0xff]
      %v2618 = vld [vmem:[#allocation2 + $0x1d8] sm:$0xff]
      %v2619 = vld [vmem:[#allocation2 + $0x1e0] sm:$0xff]
      %v2620 = vld [vmem:[#allocation2 + $0x1e8] sm:$0xff]
      %v2621 = vld [vmem:[#allocation2 + $0x1f0] sm:$0xff]
      %v2622 = vld [vmem:[#allocation2 + $0x1f8] sm:$0xff]
      %v2623 = vld [vmem:[#allocation2 + $0x200] sm:$0xff]
      %v2624 = vld [vmem:[#allocation2 + $0x208] sm:$0xff]
      %v2625 = vld [vmem:[#allocation2 + $0x210] sm:$0xff]
      %v2626 = vld [vmem:[#allocation2 + $0x218] sm:$0xff]
      %v2627 = vld [vmem:[#allocation2 + $0x220] sm:$0xff]
      %v2628 = vld [vmem:[#allocation2 + $0x228] sm:$0xff]
      %v2629 = vld [vmem:[#allocation2 + $0x230] sm:$0xff]
      %v2630 = vld [vmem:[#allocation2 + $0x238] sm:$0xff]
      %v2631 = vld [vmem:[#allocation2 + $0x240] sm:$0xff]
      %v2632 = vld [vmem:[#allocation2 + $0x248] sm:$0xff]
      %v2633 = vld [vmem:[#allocation2 + $0x250] sm:$0xff]
      %v2634 = vld [vmem:[#allocation2 + $0x258] sm:$0xff]
      %v2635 = vld [vmem:[#allocation2 + $0x260] sm:$0xff]
      %v2636 = vld [vmem:[#allocation2 + $0x268] sm:$0xff]
      %v2637 = vld [vmem:[#allocation2 + $0x270] sm:$0xff]
      %v2638 = vld [vmem:[#allocation2 + $0x278] sm:$0xff]
      %v2639 = vld [vmem:[#allocation2 + $0x280] sm:$0xff]
      %v2640 = vld [vmem:[#allocation2 + $0x288] sm:$0xff]
      %v2641 = vld [vmem:[#allocation2 + $0x290] sm:$0xff]
      %v2642 = vld [vmem:[#allocation2 + $0x298] sm:$0xff]
      %v2643 = vld [vmem:[#allocation2 + $0x2a0] sm:$0xff]
      %v2644 = vld [vmem:[#allocation2 + $0x2a8] sm:$0xff]
      %v2645 = vld [vmem:[#allocation2 + $0x2b0] sm:$0xff]
      %v2646 = vld [vmem:[#allocation2 + $0x2b8] sm:$0xff]
      %v2647 = vld [vmem:[#allocation2 + $0x2c0] sm:$0xff]
      %v2648 = vld [vmem:[#allocation2 + $0x2c8] sm:$0xff]
      %v2649 = vld [vmem:[#allocation2 + $0x2d0] sm:$0xff]
      %v2650 = vld [vmem:[#allocation2 + $0x2d8] sm:$0xff]
      %v2651 = vld [vmem:[#allocation2 + $0x2e0] sm:$0xff]
      %v2652 = vld [vmem:[#allocation2 + $0x2e8] sm:$0xff]
      %v2653 = vld [vmem:[#allocation2 + $0x2f0] sm:$0xff]
      %v2654 = vld [vmem:[#allocation2 + $0x2f8] sm:$0xff]
      %v2655 = vld [vmem:[#allocation2 + $0x300] sm:$0xff]
      %v2656 = vld [vmem:[#allocation2 + $0x308] sm:$0xff]
      %v2657 = vld [vmem:[#allocation2 + $0x310] sm:$0xff]
      %v2658 = vld [vmem:[#allocation2 + $0x318] sm:$0xff]
      %v2659 = vld [vmem:[#allocation2 + $0x320] sm:$0xff]
      %v2660 = vld [vmem:[#allocation2 + $0x328] sm:$0xff]
      %v2661 = vld [vmem:[#allocation2 + $0x330] sm:$0xff]
      %v2662 = vld [vmem:[#allocation2 + $0x338] sm:$0xff]
      %v2663 = vld [vmem:[#allocation2 + $0x340] sm:$0xff]
      %v2664 = vld [vmem:[#allocation2 + $0x348] sm:$0xff]
      %v2665 = vld [vmem:[#allocation2 + $0x350] sm:$0xff]
      %v2666 = vld [vmem:[#allocation2 + $0x358] sm:$0xff]
      %v2667 = vld [vmem:[#allocation2 + $0x360] sm:$0xff]
      %v2668 = vld [vmem:[#allocation2 + $0x368] sm:$0xff]
      %v2669 = vld [vmem:[#allocation2 + $0x370] sm:$0xff]
      %v2670 = vld [vmem:[#allocation2 + $0x378] sm:$0xff]
      %v2671 = vld [vmem:[#allocation2 + $0x380] sm:$0xff]
      %v2672 = vld [vmem:[#allocation2 + $0x388] sm:$0xff]
      %v2673 = vld [vmem:[#allocation2 + $0x390] sm:$0xff]
      %v2674 = vld [vmem:[#allocation2 + $0x398] sm:$0xff]
      %v2675 = vld [vmem:[#allocation2 + $0x3a0] sm:$0xff]
      %v2676 = vld [vmem:[#allocation2 + $0x3a8] sm:$0xff]
      %v2677 = vld [vmem:[#allocation2 + $0x3b0] sm:$0xff]
      %v2678 = vld [vmem:[#allocation2 + $0x3b8] sm:$0xff]
      %v2679 = vld [vmem:[#allocation2 + $0x3c0] sm:$0xff]
      %v2680 = vld [vmem:[#allocation2 + $0x3c8] sm:$0xff]
      %v2681 = vld [vmem:[#allocation2 + $0x3d0] sm:$0xff]
      %v2682 = vld [vmem:[#allocation2 + $0x3d8] sm:$0xff]
      %v2683 = vld [vmem:[#allocation2 + $0x3e0] sm:$0xff]
      %v2684 = vld [vmem:[#allocation2 + $0x3e8] sm:$0xff]
      %v2685 = vld [vmem:[#allocation2 + $0x3f0] sm:$0xff]
      %v2686 = vld [vmem:[#allocation2 + $0x3f8] sm:$0xff]
      %2687 = vmax.xlane.f32.xlu0 %v2431
      %v2688 = vpop.xlane.xlu0 %2687
      %2689 = vmax.xlane.f32.xlu0 %v2432
      %v2690 = vpop.xlane.xlu0 %2689
      %2691 = vmax.xlane.f32.xlu0 %v2433
      %v2692 = vpop.xlane.xlu0 %2691
      %2693 = vmax.xlane.f32.xlu0 %v2434
      %v2694 = vpop.xlane.xlu0 %2693
      %2695 = vmax.xlane.f32.xlu0 %v2435
      %v2696 = vpop.xlane.xlu0 %2695
      %2697 = vmax.xlane.f32.xlu0 %v2436
      %v2698 = vpop.xlane.xlu0 %2697
      %2699 = vmax.xlane.f32.xlu0 %v2437
      %v2700 = vpop.xlane.xlu0 %2699
      %2701 = vmax.xlane.f32.xlu0 %v2438
      %v2702 = vpop.xlane.xlu0 %2701
      %2703 = vmax.xlane.f32.xlu0 %v2439
      %v2704 = vpop.xlane.xlu0 %2703
      %2705 = vmax.xlane.f32.xlu0 %v2440
      %v2706 = vpop.xlane.xlu0 %2705
      %2707 = vmax.xlane.f32.xlu0 %v2441
      %v2708 = vpop.xlane.xlu0 %2707
      %2709 = vmax.xlane.f32.xlu0 %v2442
      %v2710 = vpop.xlane.xlu0 %2709
      %2711 = vmax.xlane.f32.xlu0 %v2443
      %v2712 = vpop.xlane.xlu0 %2711
      %2713 = vmax.xlane.f32.xlu0 %v2444
      %v2714 = vpop.xlane.xlu0 %2713
      %2715 = vmax.xlane.f32.xlu0 %v2445
      %v2716 = vpop.xlane.xlu0 %2715
      %2717 = vmax.xlane.f32.xlu0 %v2446
      %v2718 = vpop.xlane.xlu0 %2717
      %2719 = vmax.xlane.f32.xlu0 %v2447
      %v2720 = vpop.xlane.xlu0 %2719
      %2721 = vmax.xlane.f32.xlu0 %v2448
      %v2722 = vpop.xlane.xlu0 %2721
      %2723 = vmax.xlane.f32.xlu0 %v2449
      %v2724 = vpop.xlane.xlu0 %2723
      %2725 = vmax.xlane.f32.xlu0 %v2450
      %v2726 = vpop.xlane.xlu0 %2725
      %2727 = vmax.xlane.f32.xlu0 %v2451
      %v2728 = vpop.xlane.xlu0 %2727
      %2729 = vmax.xlane.f32.xlu0 %v2452
      %v2730 = vpop.xlane.xlu0 %2729
      %2731 = vmax.xlane.f32.xlu0 %v2453
      %v2732 = vpop.xlane.xlu0 %2731
      %2733 = vmax.xlane.f32.xlu0 %v2454
      %v2734 = vpop.xlane.xlu0 %2733
      %2735 = vmax.xlane.f32.xlu0 %v2455
      %v2736 = vpop.xlane.xlu0 %2735
      %2737 = vmax.xlane.f32.xlu0 %v2456
      %v2738 = vpop.xlane.xlu0 %2737
      %2739 = vmax.xlane.f32.xlu0 %v2457
      %v2740 = vpop.xlane.xlu0 %2739
      %2741 = vmax.xlane.f32.xlu0 %v2458
      %v2742 = vpop.xlane.xlu0 %2741
      %2743 = vmax.xlane.f32.xlu0 %v2459
      %v2744 = vpop.xlane.xlu0 %2743
      %2745 = vmax.xlane.f32.xlu0 %v2460
      %v2746 = vpop.xlane.xlu0 %2745
      %2747 = vmax.xlane.f32.xlu0 %v2461
      %v2748 = vpop.xlane.xlu0 %2747
      %2749 = vmax.xlane.f32.xlu0 %v2462
      %v2750 = vpop.xlane.xlu0 %2749
      %2751 = vmax.xlane.f32.xlu0 %v2463
      %v2752 = vpop.xlane.xlu0 %2751
      %2753 = vmax.xlane.f32.xlu0 %v2464
      %v2754 = vpop.xlane.xlu0 %2753
      %2755 = vmax.xlane.f32.xlu0 %v2465
      %v2756 = vpop.xlane.xlu0 %2755
      %2757 = vmax.xlane.f32.xlu0 %v2466
      %v2758 = vpop.xlane.xlu0 %2757
      %2759 = vmax.xlane.f32.xlu0 %v2467
      %v2760 = vpop.xlane.xlu0 %2759
      %2761 = vmax.xlane.f32.xlu0 %v2468
      %v2762 = vpop.xlane.xlu0 %2761
      %2763 = vmax.xlane.f32.xlu0 %v2469
      %v2764 = vpop.xlane.xlu0 %2763
      %2765 = vmax.xlane.f32.xlu0 %v2470
      %v2766 = vpop.xlane.xlu0 %2765
      %2767 = vmax.xlane.f32.xlu0 %v2471
      %v2768 = vpop.xlane.xlu0 %2767
      %2769 = vmax.xlane.f32.xlu0 %v2472
      %v2770 = vpop.xlane.xlu0 %2769
      %2771 = vmax.xlane.f32.xlu0 %v2473
      %v2772 = vpop.xlane.xlu0 %2771
      %2773 = vmax.xlane.f32.xlu0 %v2474
      %v2774 = vpop.xlane.xlu0 %2773
      %2775 = vmax.xlane.f32.xlu0 %v2475
      %v2776 = vpop.xlane.xlu0 %2775
      %2777 = vmax.xlane.f32.xlu0 %v2476
      %v2778 = vpop.xlane.xlu0 %2777
      %2779 = vmax.xlane.f32.xlu0 %v2477
      %v2780 = vpop.xlane.xlu0 %2779
      %2781 = vmax.xlane.f32.xlu0 %v2478
      %v2782 = vpop.xlane.xlu0 %2781
      %2783 = vmax.xlane.f32.xlu0 %v2479
      %v2784 = vpop.xlane.xlu0 %2783
      %2785 = vmax.xlane.f32.xlu0 %v2480
      %v2786 = vpop.xlane.xlu0 %2785
      %2787 = vmax.xlane.f32.xlu0 %v2481
      %v2788 = vpop.xlane.xlu0 %2787
      %2789 = vmax.xlane.f32.xlu0 %v2482
      %v2790 = vpop.xlane.xlu0 %2789
      %2791 = vmax.xlane.f32.xlu0 %v2483
      %v2792 = vpop.xlane.xlu0 %2791
      %2793 = vmax.xlane.f32.xlu0 %v2484
      %v2794 = vpop.xlane.xlu0 %2793
      %2795 = vmax.xlane.f32.xlu0 %v2485
      %v2796 = vpop.xlane.xlu0 %2795
      %2797 = vmax.xlane.f32.xlu0 %v2486
      %v2798 = vpop.xlane.xlu0 %2797
      %2799 = vmax.xlane.f32.xlu0 %v2487
      %v2800 = vpop.xlane.xlu0 %2799
      %2801 = vmax.xlane.f32.xlu0 %v2488
      %v2802 = vpop.xlane.xlu0 %2801
      %2803 = vmax.xlane.f32.xlu0 %v2489
      %v2804 = vpop.xlane.xlu0 %2803
      %2805 = vmax.xlane.f32.xlu0 %v2490
      %v2806 = vpop.xlane.xlu0 %2805
      %2807 = vmax.xlane.f32.xlu0 %v2491
      %v2808 = vpop.xlane.xlu0 %2807
      %2809 = vmax.xlane.f32.xlu0 %v2492
      %v2810 = vpop.xlane.xlu0 %2809
      %2811 = vmax.xlane.f32.xlu0 %v2493
      %v2812 = vpop.xlane.xlu0 %2811
      %2813 = vmax.xlane.f32.xlu0 %v2494
      %v2814 = vpop.xlane.xlu0 %2813
      %2815 = vmax.xlane.f32.xlu0 %v2495
      %v2816 = vpop.xlane.xlu0 %2815
      %2817 = vmax.xlane.f32.xlu0 %v2496
      %v2818 = vpop.xlane.xlu0 %2817
      %2819 = vmax.xlane.f32.xlu0 %v2497
      %v2820 = vpop.xlane.xlu0 %2819
      %2821 = vmax.xlane.f32.xlu0 %v2498
      %v2822 = vpop.xlane.xlu0 %2821
      %2823 = vmax.xlane.f32.xlu0 %v2499
      %v2824 = vpop.xlane.xlu0 %2823
      %2825 = vmax.xlane.f32.xlu0 %v2500
      %v2826 = vpop.xlane.xlu0 %2825
      %2827 = vmax.xlane.f32.xlu0 %v2501
      %v2828 = vpop.xlane.xlu0 %2827
      %2829 = vmax.xlane.f32.xlu0 %v2502
      %v2830 = vpop.xlane.xlu0 %2829
      %2831 = vmax.xlane.f32.xlu0 %v2503
      %v2832 = vpop.xlane.xlu0 %2831
      %2833 = vmax.xlane.f32.xlu0 %v2504
      %v2834 = vpop.xlane.xlu0 %2833
      %2835 = vmax.xlane.f32.xlu0 %v2505
      %v2836 = vpop.xlane.xlu0 %2835
      %2837 = vmax.xlane.f32.xlu0 %v2506
      %v2838 = vpop.xlane.xlu0 %2837
      %2839 = vmax.xlane.f32.xlu0 %v2507
      %v2840 = vpop.xlane.xlu0 %2839
      %2841 = vmax.xlane.f32.xlu0 %v2508
      %v2842 = vpop.xlane.xlu0 %2841
      %2843 = vmax.xlane.f32.xlu0 %v2509
      %v2844 = vpop.xlane.xlu0 %2843
      %2845 = vmax.xlane.f32.xlu0 %v2510
      %v2846 = vpop.xlane.xlu0 %2845
      %2847 = vmax.xlane.f32.xlu0 %v2511
      %v2848 = vpop.xlane.xlu0 %2847
      %2849 = vmax.xlane.f32.xlu0 %v2512
      %v2850 = vpop.xlane.xlu0 %2849
      %2851 = vmax.xlane.f32.xlu0 %v2513
      %v2852 = vpop.xlane.xlu0 %2851
      %2853 = vmax.xlane.f32.xlu0 %v2514
      %v2854 = vpop.xlane.xlu0 %2853
      %2855 = vmax.xlane.f32.xlu0 %v2515
      %v2856 = vpop.xlane.xlu0 %2855
      %2857 = vmax.xlane.f32.xlu0 %v2516
      %v2858 = vpop.xlane.xlu0 %2857
      %2859 = vmax.xlane.f32.xlu0 %v2517
      %v2860 = vpop.xlane.xlu0 %2859
      %2861 = vmax.xlane.f32.xlu0 %v2518
      %v2862 = vpop.xlane.xlu0 %2861
      %2863 = vmax.xlane.f32.xlu0 %v2519
      %v2864 = vpop.xlane.xlu0 %2863
      %2865 = vmax.xlane.f32.xlu0 %v2520
      %v2866 = vpop.xlane.xlu0 %2865
      %2867 = vmax.xlane.f32.xlu0 %v2521
      %v2868 = vpop.xlane.xlu0 %2867
      %2869 = vmax.xlane.f32.xlu0 %v2522
      %v2870 = vpop.xlane.xlu0 %2869
      %2871 = vmax.xlane.f32.xlu0 %v2523
      %v2872 = vpop.xlane.xlu0 %2871
      %2873 = vmax.xlane.f32.xlu0 %v2524
      %v2874 = vpop.xlane.xlu0 %2873
      %2875 = vmax.xlane.f32.xlu0 %v2525
      %v2876 = vpop.xlane.xlu0 %2875
      %2877 = vmax.xlane.f32.xlu0 %v2526
      %v2878 = vpop.xlane.xlu0 %2877
      %2879 = vmax.xlane.f32.xlu0 %v2527
      %v2880 = vpop.xlane.xlu0 %2879
      %2881 = vmax.xlane.f32.xlu0 %v2528
      %v2882 = vpop.xlane.xlu0 %2881
      %2883 = vmax.xlane.f32.xlu0 %v2529
      %v2884 = vpop.xlane.xlu0 %2883
      %2885 = vmax.xlane.f32.xlu0 %v2530
      %v2886 = vpop.xlane.xlu0 %2885
      %2887 = vmax.xlane.f32.xlu0 %v2531
      %v2888 = vpop.xlane.xlu0 %2887
      %2889 = vmax.xlane.f32.xlu0 %v2532
      %v2890 = vpop.xlane.xlu0 %2889
      %2891 = vmax.xlane.f32.xlu0 %v2533
      %v2892 = vpop.xlane.xlu0 %2891
      %2893 = vmax.xlane.f32.xlu0 %v2534
      %v2894 = vpop.xlane.xlu0 %2893
      %2895 = vmax.xlane.f32.xlu0 %v2535
      %v2896 = vpop.xlane.xlu0 %2895
      %2897 = vmax.xlane.f32.xlu0 %v2536
      %v2898 = vpop.xlane.xlu0 %2897
      %2899 = vmax.xlane.f32.xlu0 %v2537
      %v2900 = vpop.xlane.xlu0 %2899
      %2901 = vmax.xlane.f32.xlu0 %v2538
      %v2902 = vpop.xlane.xlu0 %2901
      %2903 = vmax.xlane.f32.xlu0 %v2539
      %v2904 = vpop.xlane.xlu0 %2903
      %2905 = vmax.xlane.f32.xlu0 %v2540
      %v2906 = vpop.xlane.xlu0 %2905
      %2907 = vmax.xlane.f32.xlu0 %v2541
      %v2908 = vpop.xlane.xlu0 %2907
      %2909 = vmax.xlane.f32.xlu0 %v2542
      %v2910 = vpop.xlane.xlu0 %2909
      %2911 = vmax.xlane.f32.xlu0 %v2543
      %v2912 = vpop.xlane.xlu0 %2911
      %2913 = vmax.xlane.f32.xlu0 %v2544
      %v2914 = vpop.xlane.xlu0 %2913
      %2915 = vmax.xlane.f32.xlu0 %v2545
      %v2916 = vpop.xlane.xlu0 %2915
      %2917 = vmax.xlane.f32.xlu0 %v2546
      %v2918 = vpop.xlane.xlu0 %2917
      %2919 = vmax.xlane.f32.xlu0 %v2547
      %v2920 = vpop.xlane.xlu0 %2919
      %2921 = vmax.xlane.f32.xlu0 %v2548
      %v2922 = vpop.xlane.xlu0 %2921
      %2923 = vmax.xlane.f32.xlu0 %v2549
      %v2924 = vpop.xlane.xlu0 %2923
      %2925 = vmax.xlane.f32.xlu0 %v2550
      %v2926 = vpop.xlane.xlu0 %2925
      %2927 = vmax.xlane.f32.xlu0 %v2551
      %v2928 = vpop.xlane.xlu0 %2927
      %2929 = vmax.xlane.f32.xlu0 %v2552
      %v2930 = vpop.xlane.xlu0 %2929
      %2931 = vmax.xlane.f32.xlu0 %v2553
      %v2932 = vpop.xlane.xlu0 %2931
      %2933 = vmax.xlane.f32.xlu0 %v2554
      %v2934 = vpop.xlane.xlu0 %2933
      %2935 = vmax.xlane.f32.xlu0 %v2555
      %v2936 = vpop.xlane.xlu0 %2935
      %2937 = vmax.xlane.f32.xlu0 %v2556
      %v2938 = vpop.xlane.xlu0 %2937
      %2939 = vmax.xlane.f32.xlu0 %v2557
      %v2940 = vpop.xlane.xlu0 %2939
      %2941 = vmax.xlane.f32.xlu0 %v2558
      %v2942 = vpop.xlane.xlu0 %2941
      %v2943 = vmax.f32 %v2559, %v2688
      %v2944 = vmax.f32 %v2560, %v2690
      %v2945 = vmax.f32 %v2561, %v2692
      %v2946 = vmax.f32 %v2562, %v2694
      %v2947 = vmax.f32 %v2563, %v2696
      %v2948 = vmax.f32 %v2564, %v2698
      %v2949 = vmax.f32 %v2565, %v2700
      %v2950 = vmax.f32 %v2566, %v2702
      %v2951 = vmax.f32 %v2567, %v2704
      %v2952 = vmax.f32 %v2568, %v2706
      %v2953 = vmax.f32 %v2569, %v2708
      %v2954 = vmax.f32 %v2570, %v2710
      %v2955 = vmax.f32 %v2571, %v2712
      %v2956 = vmax.f32 %v2572, %v2714
      %v2957 = vmax.f32 %v2573, %v2716
      %v2958 = vmax.f32 %v2574, %v2718
      %v2959 = vmax.f32 %v2575, %v2720
      %v2960 = vmax.f32 %v2576, %v2722
      %v2961 = vmax.f32 %v2577, %v2724
      %v2962 = vmax.f32 %v2578, %v2726
      %v2963 = vmax.f32 %v2579, %v2728
      %v2964 = vmax.f32 %v2580, %v2730
      %v2965 = vmax.f32 %v2581, %v2732
      %v2966 = vmax.f32 %v2582, %v2734
      %v2967 = vmax.f32 %v2583, %v2736
      %v2968 = vmax.f32 %v2584, %v2738
      %v2969 = vmax.f32 %v2585, %v2740
      %v2970 = vmax.f32 %v2586, %v2742
      %v2971 = vmax.f32 %v2587, %v2744
      %v2972 = vmax.f32 %v2588, %v2746
      %v2973 = vmax.f32 %v2589, %v2748
      %v2974 = vmax.f32 %v2590, %v2750
      %v2975 = vmax.f32 %v2591, %v2752
      %v2976 = vmax.f32 %v2592, %v2754
      %v2977 = vmax.f32 %v2593, %v2756
      %v2978 = vmax.f32 %v2594, %v2758
      %v2979 = vmax.f32 %v2595, %v2760
      %v2980 = vmax.f32 %v2596, %v2762
      %v2981 = vmax.f32 %v2597, %v2764
      %v2982 = vmax.f32 %v2598, %v2766
      %v2983 = vmax.f32 %v2599, %v2768
      %v2984 = vmax.f32 %v2600, %v2770
      %v2985 = vmax.f32 %v2601, %v2772
      %v2986 = vmax.f32 %v2602, %v2774
      %v2987 = vmax.f32 %v2603, %v2776
      %v2988 = vmax.f32 %v2604, %v2778
      %v2989 = vmax.f32 %v2605, %v2780
      %v2990 = vmax.f32 %v2606, %v2782
      %v2991 = vmax.f32 %v2607, %v2784
      %v2992 = vmax.f32 %v2608, %v2786
      %v2993 = vmax.f32 %v2609, %v2788
      %v2994 = vmax.f32 %v2610, %v2790
      %v2995 = vmax.f32 %v2611, %v2792
      %v2996 = vmax.f32 %v2612, %v2794
      %v2997 = vmax.f32 %v2613, %v2796
      %v2998 = vmax.f32 %v2614, %v2798
      %v2999 = vmax.f32 %v2615, %v2800
      %v3000 = vmax.f32 %v2616, %v2802
      %v3001 = vmax.f32 %v2617, %v2804
      %v3002 = vmax.f32 %v2618, %v2806
      %v3003 = vmax.f32 %v2619, %v2808
      %v3004 = vmax.f32 %v2620, %v2810
      %v3005 = vmax.f32 %v2621, %v2812
      %v3006 = vmax.f32 %v2622, %v2814
      %v3007 = vmax.f32 %v2623, %v2816
      %v3008 = vmax.f32 %v2624, %v2818
      %v3009 = vmax.f32 %v2625, %v2820
      %v3010 = vmax.f32 %v2626, %v2822
      %v3011 = vmax.f32 %v2627, %v2824
      %v3012 = vmax.f32 %v2628, %v2826
      %v3013 = vmax.f32 %v2629, %v2828
      %v3014 = vmax.f32 %v2630, %v2830
      %v3015 = vmax.f32 %v2631, %v2832
      %v3016 = vmax.f32 %v2632, %v2834
      %v3017 = vmax.f32 %v2633, %v2836
      %v3018 = vmax.f32 %v2634, %v2838
      %v3019 = vmax.f32 %v2635, %v2840
      %v3020 = vmax.f32 %v2636, %v2842
      %v3021 = vmax.f32 %v2637, %v2844
      %v3022 = vmax.f32 %v2638, %v2846
      %v3023 = vmax.f32 %v2639, %v2848
      %v3024 = vmax.f32 %v2640, %v2850
      %v3025 = vmax.f32 %v2641, %v2852
      %v3026 = vmax.f32 %v2642, %v2854
      %v3027 = vmax.f32 %v2643, %v2856
      %v3028 = vmax.f32 %v2644, %v2858
      %v3029 = vmax.f32 %v2645, %v2860
      %v3030 = vmax.f32 %v2646, %v2862
      %v3031 = vmax.f32 %v2647, %v2864
      %v3032 = vmax.f32 %v2648, %v2866
      %v3033 = vmax.f32 %v2649, %v2868
      %v3034 = vmax.f32 %v2650, %v2870
      %v3035 = vmax.f32 %v2651, %v2872
      %v3036 = vmax.f32 %v2652, %v2874
      %v3037 = vmax.f32 %v2653, %v2876
      %v3038 = vmax.f32 %v2654, %v2878
      %v3039 = vmax.f32 %v2655, %v2880
      %v3040 = vmax.f32 %v2656, %v2882
      %v3041 = vmax.f32 %v2657, %v2884
      %v3042 = vmax.f32 %v2658, %v2886
      %v3043 = vmax.f32 %v2659, %v2888
      %v3044 = vmax.f32 %v2660, %v2890
      %v3045 = vmax.f32 %v2661, %v2892
      %v3046 = vmax.f32 %v2662, %v2894
      %v3047 = vmax.f32 %v2663, %v2896
      %v3048 = vmax.f32 %v2664, %v2898
      %v3049 = vmax.f32 %v2665, %v2900
      %v3050 = vmax.f32 %v2666, %v2902
      %v3051 = vmax.f32 %v2667, %v2904
      %v3052 = vmax.f32 %v2668, %v2906
      %v3053 = vmax.f32 %v2669, %v2908
      %v3054 = vmax.f32 %v2670, %v2910
      %v3055 = vmax.f32 %v2671, %v2912
      %v3056 = vmax.f32 %v2672, %v2914
      %v3057 = vmax.f32 %v2673, %v2916
      %v3058 = vmax.f32 %v2674, %v2918
      %v3059 = vmax.f32 %v2675, %v2920
      %v3060 = vmax.f32 %v2676, %v2922
      %v3061 = vmax.f32 %v2677, %v2924
      %v3062 = vmax.f32 %v2678, %v2926
      %v3063 = vmax.f32 %v2679, %v2928
      %v3064 = vmax.f32 %v2680, %v2930
      %v3065 = vmax.f32 %v2681, %v2932
      %v3066 = vmax.f32 %v2682, %v2934
      %v3067 = vmax.f32 %v2683, %v2936
      %v3068 = vmax.f32 %v2684, %v2938
      %v3069 = vmax.f32 %v2685, %v2940
      %v3070 = vmax.f32 %v2686, %v2942
      %vm3071 = vcmask 7168
      %3072 = vst.msk [vmem:[#allocation2] sm:$0xff] %vm3071, %v2943
      %3073 = vst.msk [vmem:[#allocation2 + $0x8] sm:$0xff] %vm3071, %v2944
      %3074 = vst.msk [vmem:[#allocation2 + $0x10] sm:$0xff] %vm3071, %v2945
      %3075 = vst.msk [vmem:[#allocation2 + $0x18] sm:$0xff] %vm3071, %v2946
      %3076 = vst.msk [vmem:[#allocation2 + $0x20] sm:$0xff] %vm3071, %v2947
      %3077 = vst.msk [vmem:[#allocation2 + $0x28] sm:$0xff] %vm3071, %v2948
      %3078 = vst.msk [vmem:[#allocation2 + $0x30] sm:$0xff] %vm3071, %v2949
      %3079 = vst.msk [vmem:[#allocation2 + $0x38] sm:$0xff] %vm3071, %v2950
      %3080 = vst.msk [vmem:[#allocation2 + $0x40] sm:$0xff] %vm3071, %v2951
      %3081 = vst.msk [vmem:[#allocation2 + $0x48] sm:$0xff] %vm3071, %v2952
      %3082 = vst.msk [vmem:[#allocation2 + $0x50] sm:$0xff] %vm3071, %v2953
      %3083 = vst.msk [vmem:[#allocation2 + $0x58] sm:$0xff] %vm3071, %v2954
      %3084 = vst.msk [vmem:[#allocation2 + $0x60] sm:$0xff] %vm3071, %v2955
      %3085 = vst.msk [vmem:[#allocation2 + $0x68] sm:$0xff] %vm3071, %v2956
      %3086 = vst.msk [vmem:[#allocation2 + $0x70] sm:$0xff] %vm3071, %v2957
      %3087 = vst.msk [vmem:[#allocation2 + $0x78] sm:$0xff] %vm3071, %v2958
      %3088 = vst.msk [vmem:[#allocation2 + $0x80] sm:$0xff] %vm3071, %v2959
      %3089 = vst.msk [vmem:[#allocation2 + $0x88] sm:$0xff] %vm3071, %v2960
      %3090 = vst.msk [vmem:[#allocation2 + $0x90] sm:$0xff] %vm3071, %v2961
      %3091 = vst.msk [vmem:[#allocation2 + $0x98] sm:$0xff] %vm3071, %v2962
      %3092 = vst.msk [vmem:[#allocation2 + $0xa0] sm:$0xff] %vm3071, %v2963
      %3093 = vst.msk [vmem:[#allocation2 + $0xa8] sm:$0xff] %vm3071, %v2964
      %3094 = vst.msk [vmem:[#allocation2 + $0xb0] sm:$0xff] %vm3071, %v2965
      %3095 = vst.msk [vmem:[#allocation2 + $0xb8] sm:$0xff] %vm3071, %v2966
      %3096 = vst.msk [vmem:[#allocation2 + $0xc0] sm:$0xff] %vm3071, %v2967
      %3097 = vst.msk [vmem:[#allocation2 + $0xc8] sm:$0xff] %vm3071, %v2968
      %3098 = vst.msk [vmem:[#allocation2 + $0xd0] sm:$0xff] %vm3071, %v2969
      %3099 = vst.msk [vmem:[#allocation2 + $0xd8] sm:$0xff] %vm3071, %v2970
      %3100 = vst.msk [vmem:[#allocation2 + $0xe0] sm:$0xff] %vm3071, %v2971
      %3101 = vst.msk [vmem:[#allocation2 + $0xe8] sm:$0xff] %vm3071, %v2972
      %3102 = vst.msk [vmem:[#allocation2 + $0xf0] sm:$0xff] %vm3071, %v2973
      %3103 = vst.msk [vmem:[#allocation2 + $0xf8] sm:$0xff] %vm3071, %v2974
      %3104 = vst.msk [vmem:[#allocation2 + $0x100] sm:$0xff] %vm3071, %v2975
      %3105 = vst.msk [vmem:[#allocation2 + $0x108] sm:$0xff] %vm3071, %v2976
      %3106 = vst.msk [vmem:[#allocation2 + $0x110] sm:$0xff] %vm3071, %v2977
      %3107 = vst.msk [vmem:[#allocation2 + $0x118] sm:$0xff] %vm3071, %v2978
      %3108 = vst.msk [vmem:[#allocation2 + $0x120] sm:$0xff] %vm3071, %v2979
      %3109 = vst.msk [vmem:[#allocation2 + $0x128] sm:$0xff] %vm3071, %v2980
      %3110 = vst.msk [vmem:[#allocation2 + $0x130] sm:$0xff] %vm3071, %v2981
      %3111 = vst.msk [vmem:[#allocation2 + $0x138] sm:$0xff] %vm3071, %v2982
      %3112 = vst.msk [vmem:[#allocation2 + $0x140] sm:$0xff] %vm3071, %v2983
      %3113 = vst.msk [vmem:[#allocation2 + $0x148] sm:$0xff] %vm3071, %v2984
      %3114 = vst.msk [vmem:[#allocation2 + $0x150] sm:$0xff] %vm3071, %v2985
      %3115 = vst.msk [vmem:[#allocation2 + $0x158] sm:$0xff] %vm3071, %v2986
      %3116 = vst.msk [vmem:[#allocation2 + $0x160] sm:$0xff] %vm3071, %v2987
      %3117 = vst.msk [vmem:[#allocation2 + $0x168] sm:$0xff] %vm3071, %v2988
      %3118 = vst.msk [vmem:[#allocation2 + $0x170] sm:$0xff] %vm3071, %v2989
      %3119 = vst.msk [vmem:[#allocation2 + $0x178] sm:$0xff] %vm3071, %v2990
      %3120 = vst.msk [vmem:[#allocation2 + $0x180] sm:$0xff] %vm3071, %v2991
      %3121 = vst.msk [vmem:[#allocation2 + $0x188] sm:$0xff] %vm3071, %v2992
      %3122 = vst.msk [vmem:[#allocation2 + $0x190] sm:$0xff] %vm3071, %v2993
      %3123 = vst.msk [vmem:[#allocation2 + $0x198] sm:$0xff] %vm3071, %v2994
      %3124 = vst.msk [vmem:[#allocation2 + $0x1a0] sm:$0xff] %vm3071, %v2995
      %3125 = vst.msk [vmem:[#allocation2 + $0x1a8] sm:$0xff] %vm3071, %v2996
      %3126 = vst.msk [vmem:[#allocation2 + $0x1b0] sm:$0xff] %vm3071, %v2997
      %3127 = vst.msk [vmem:[#allocation2 + $0x1b8] sm:$0xff] %vm3071, %v2998
      %3128 = vst.msk [vmem:[#allocation2 + $0x1c0] sm:$0xff] %vm3071, %v2999
      %3129 = vst.msk [vmem:[#allocation2 + $0x1c8] sm:$0xff] %vm3071, %v3000
      %3130 = vst.msk [vmem:[#allocation2 + $0x1d0] sm:$0xff] %vm3071, %v3001
      %3131 = vst.msk [vmem:[#allocation2 + $0x1d8] sm:$0xff] %vm3071, %v3002
      %3132 = vst.msk [vmem:[#allocation2 + $0x1e0] sm:$0xff] %vm3071, %v3003
      %3133 = vst.msk [vmem:[#allocation2 + $0x1e8] sm:$0xff] %vm3071, %v3004
      %3134 = vst.msk [vmem:[#allocation2 + $0x1f0] sm:$0xff] %vm3071, %v3005
      %3135 = vst.msk [vmem:[#allocation2 + $0x1f8] sm:$0xff] %vm3071, %v3006
      %3136 = vst.msk [vmem:[#allocation2 + $0x200] sm:$0xff] %vm3071, %v3007
      %3137 = vst.msk [vmem:[#allocation2 + $0x208] sm:$0xff] %vm3071, %v3008
      %3138 = vst.msk [vmem:[#allocation2 + $0x210] sm:$0xff] %vm3071, %v3009
      %3139 = vst.msk [vmem:[#allocation2 + $0x218] sm:$0xff] %vm3071, %v3010
      %3140 = vst.msk [vmem:[#allocation2 + $0x220] sm:$0xff] %vm3071, %v3011
      %3141 = vst.msk [vmem:[#allocation2 + $0x228] sm:$0xff] %vm3071, %v3012
      %3142 = vst.msk [vmem:[#allocation2 + $0x230] sm:$0xff] %vm3071, %v3013
      %3143 = vst.msk [vmem:[#allocation2 + $0x238] sm:$0xff] %vm3071, %v3014
      %3144 = vst.msk [vmem:[#allocation2 + $0x240] sm:$0xff] %vm3071, %v3015
      %3145 = vst.msk [vmem:[#allocation2 + $0x248] sm:$0xff] %vm3071, %v3016
      %3146 = vst.msk [vmem:[#allocation2 + $0x250] sm:$0xff] %vm3071, %v3017
      %3147 = vst.msk [vmem:[#allocation2 + $0x258] sm:$0xff] %vm3071, %v3018
      %3148 = vst.msk [vmem:[#allocation2 + $0x260] sm:$0xff] %vm3071, %v3019
      %3149 = vst.msk [vmem:[#allocation2 + $0x268] sm:$0xff] %vm3071, %v3020
      %3150 = vst.msk [vmem:[#allocation2 + $0x270] sm:$0xff] %vm3071, %v3021
      %3151 = vst.msk [vmem:[#allocation2 + $0x278] sm:$0xff] %vm3071, %v3022
      %3152 = vst.msk [vmem:[#allocation2 + $0x280] sm:$0xff] %vm3071, %v3023
      %3153 = vst.msk [vmem:[#allocation2 + $0x288] sm:$0xff] %vm3071, %v3024
      %3154 = vst.msk [vmem:[#allocation2 + $0x290] sm:$0xff] %vm3071, %v3025
      %3155 = vst.msk [vmem:[#allocation2 + $0x298] sm:$0xff] %vm3071, %v3026
      %3156 = vst.msk [vmem:[#allocation2 + $0x2a0] sm:$0xff] %vm3071, %v3027
      %3157 = vst.msk [vmem:[#allocation2 + $0x2a8] sm:$0xff] %vm3071, %v3028
      %3158 = vst.msk [vmem:[#allocation2 + $0x2b0] sm:$0xff] %vm3071, %v3029
      %3159 = vst.msk [vmem:[#allocation2 + $0x2b8] sm:$0xff] %vm3071, %v3030
      %3160 = vst.msk [vmem:[#allocation2 + $0x2c0] sm:$0xff] %vm3071, %v3031
      %3161 = vst.msk [vmem:[#allocation2 + $0x2c8] sm:$0xff] %vm3071, %v3032
      %3162 = vst.msk [vmem:[#allocation2 + $0x2d0] sm:$0xff] %vm3071, %v3033
      %3163 = vst.msk [vmem:[#allocation2 + $0x2d8] sm:$0xff] %vm3071, %v3034
      %3164 = vst.msk [vmem:[#allocation2 + $0x2e0] sm:$0xff] %vm3071, %v3035
      %3165 = vst.msk [vmem:[#allocation2 + $0x2e8] sm:$0xff] %vm3071, %v3036
      %3166 = vst.msk [vmem:[#allocation2 + $0x2f0] sm:$0xff] %vm3071, %v3037
      %3167 = vst.msk [vmem:[#allocation2 + $0x2f8] sm:$0xff] %vm3071, %v3038
      %3168 = vst.msk [vmem:[#allocation2 + $0x300] sm:$0xff] %vm3071, %v3039
      %3169 = vst.msk [vmem:[#allocation2 + $0x308] sm:$0xff] %vm3071, %v3040
      %3170 = vst.msk [vmem:[#allocation2 + $0x310] sm:$0xff] %vm3071, %v3041
      %3171 = vst.msk [vmem:[#allocation2 + $0x318] sm:$0xff] %vm3071, %v3042
      %3172 = vst.msk [vmem:[#allocation2 + $0x320] sm:$0xff] %vm3071, %v3043
      %3173 = vst.msk [vmem:[#allocation2 + $0x328] sm:$0xff] %vm3071, %v3044
      %3174 = vst.msk [vmem:[#allocation2 + $0x330] sm:$0xff] %vm3071, %v3045
      %3175 = vst.msk [vmem:[#allocation2 + $0x338] sm:$0xff] %vm3071, %v3046
      %3176 = vst.msk [vmem:[#allocation2 + $0x340] sm:$0xff] %vm3071, %v3047
      %3177 = vst.msk [vmem:[#allocation2 + $0x348] sm:$0xff] %vm3071, %v3048
      %3178 = vst.msk [vmem:[#allocation2 + $0x350] sm:$0xff] %vm3071, %v3049
      %3179 = vst.msk [vmem:[#allocation2 + $0x358] sm:$0xff] %vm3071, %v3050
      %3180 = vst.msk [vmem:[#allocation2 + $0x360] sm:$0xff] %vm3071, %v3051
      %3181 = vst.msk [vmem:[#allocation2 + $0x368] sm:$0xff] %vm3071, %v3052
      %3182 = vst.msk [vmem:[#allocation2 + $0x370] sm:$0xff] %vm3071, %v3053
      %3183 = vst.msk [vmem:[#allocation2 + $0x378] sm:$0xff] %vm3071, %v3054
      %3184 = vst.msk [vmem:[#allocation2 + $0x380] sm:$0xff] %vm3071, %v3055
      %3185 = vst.msk [vmem:[#allocation2 + $0x388] sm:$0xff] %vm3071, %v3056
      %3186 = vst.msk [vmem:[#allocation2 + $0x390] sm:$0xff] %vm3071, %v3057
      %3187 = vst.msk [vmem:[#allocation2 + $0x398] sm:$0xff] %vm3071, %v3058
      %3188 = vst.msk [vmem:[#allocation2 + $0x3a0] sm:$0xff] %vm3071, %v3059
      %3189 = vst.msk [vmem:[#allocation2 + $0x3a8] sm:$0xff] %vm3071, %v3060
      %3190 = vst.msk [vmem:[#allocation2 + $0x3b0] sm:$0xff] %vm3071, %v3061
      %3191 = vst.msk [vmem:[#allocation2 + $0x3b8] sm:$0xff] %vm3071, %v3062
      %3192 = vst.msk [vmem:[#allocation2 + $0x3c0] sm:$0xff] %vm3071, %v3063
      %3193 = vst.msk [vmem:[#allocation2 + $0x3c8] sm:$0xff] %vm3071, %v3064
      %3194 = vst.msk [vmem:[#allocation2 + $0x3d0] sm:$0xff] %vm3071, %v3065
      %3195 = vst.msk [vmem:[#allocation2 + $0x3d8] sm:$0xff] %vm3071, %v3066
      %3196 = vst.msk [vmem:[#allocation2 + $0x3e0] sm:$0xff] %vm3071, %v3067
      %3197 = vst.msk [vmem:[#allocation2 + $0x3e8] sm:$0xff] %vm3071, %v3068
      %3198 = vst.msk [vmem:[#allocation2 + $0x3f0] sm:$0xff] %vm3071, %v3069
      %3199 = vst.msk [vmem:[#allocation2 + $0x3f8] sm:$0xff] %vm3071, %v3070
      %p3200 = scmp.eq.s32.totalorder %s23, 3
      // Predicated region
      $region53: #{tpu_custom_call.1} parent=47 // pred_check
        %p3201 = pneg %p3200
      $region54: #{tpu_custom_call.1} parent=47 // pred_check_branch
        %3203 = sbr.rel (%p3201) target = $region56
      $region55: #{tpu_custom_call.1} parent=47 // pred_region
        %v3204 = vld [vmem:[#allocation2] sm:$0xff]
        %v3205 = vld [vmem:[#allocation2 + $0x8] sm:$0xff]
        %v3206 = vld [vmem:[#allocation2 + $0x10] sm:$0xff]
        %v3207 = vld [vmem:[#allocation2 + $0x18] sm:$0xff]
        %v3208 = vld [vmem:[#allocation2 + $0x20] sm:$0xff]
        %v3209 = vld [vmem:[#allocation2 + $0x28] sm:$0xff]
        %v3210 = vld [vmem:[#allocation2 + $0x30] sm:$0xff]
        %v3211 = vld [vmem:[#allocation2 + $0x38] sm:$0xff]
        %v3212 = vld [vmem:[#allocation2 + $0x40] sm:$0xff]
        %v3213 = vld [vmem:[#allocation2 + $0x48] sm:$0xff]
        %v3214 = vld [vmem:[#allocation2 + $0x50] sm:$0xff]
        %v3215 = vld [vmem:[#allocation2 + $0x58] sm:$0xff]
        %v3216 = vld [vmem:[#allocation2 + $0x60] sm:$0xff]
        %v3217 = vld [vmem:[#allocation2 + $0x68] sm:$0xff]
        %v3218 = vld [vmem:[#allocation2 + $0x70] sm:$0xff]
        %v3219 = vld [vmem:[#allocation2 + $0x78] sm:$0xff]
        %v3220 = vld [vmem:[#allocation2 + $0x80] sm:$0xff]
        %v3221 = vld [vmem:[#allocation2 + $0x88] sm:$0xff]
        %v3222 = vld [vmem:[#allocation2 + $0x90] sm:$0xff]
        %v3223 = vld [vmem:[#allocation2 + $0x98] sm:$0xff]
        %v3224 = vld [vmem:[#allocation2 + $0xa0] sm:$0xff]
        %v3225 = vld [vmem:[#allocation2 + $0xa8] sm:$0xff]
        %v3226 = vld [vmem:[#allocation2 + $0xb0] sm:$0xff]
        %v3227 = vld [vmem:[#allocation2 + $0xb8] sm:$0xff]
        %v3228 = vld [vmem:[#allocation2 + $0xc0] sm:$0xff]
        %v3229 = vld [vmem:[#allocation2 + $0xc8] sm:$0xff]
        %v3230 = vld [vmem:[#allocation2 + $0xd0] sm:$0xff]
        %v3231 = vld [vmem:[#allocation2 + $0xd8] sm:$0xff]
        %v3232 = vld [vmem:[#allocation2 + $0xe0] sm:$0xff]
        %v3233 = vld [vmem:[#allocation2 + $0xe8] sm:$0xff]
        %v3234 = vld [vmem:[#allocation2 + $0xf0] sm:$0xff]
        %v3235 = vld [vmem:[#allocation2 + $0xf8] sm:$0xff]
        %v3236 = vld [vmem:[#allocation2 + $0x100] sm:$0xff]
        %v3237 = vld [vmem:[#allocation2 + $0x108] sm:$0xff]
        %v3238 = vld [vmem:[#allocation2 + $0x110] sm:$0xff]
        %v3239 = vld [vmem:[#allocation2 + $0x118] sm:$0xff]
        %v3240 = vld [vmem:[#allocation2 + $0x120] sm:$0xff]
        %v3241 = vld [vmem:[#allocation2 + $0x128] sm:$0xff]
        %v3242 = vld [vmem:[#allocation2 + $0x130] sm:$0xff]
        %v3243 = vld [vmem:[#allocation2 + $0x138] sm:$0xff]
        %v3244 = vld [vmem:[#allocation2 + $0x140] sm:$0xff]
        %v3245 = vld [vmem:[#allocation2 + $0x148] sm:$0xff]
        %v3246 = vld [vmem:[#allocation2 + $0x150] sm:$0xff]
        %v3247 = vld [vmem:[#allocation2 + $0x158] sm:$0xff]
        %v3248 = vld [vmem:[#allocation2 + $0x160] sm:$0xff]
        %v3249 = vld [vmem:[#allocation2 + $0x168] sm:$0xff]
        %v3250 = vld [vmem:[#allocation2 + $0x170] sm:$0xff]
        %v3251 = vld [vmem:[#allocation2 + $0x178] sm:$0xff]
        %v3252 = vld [vmem:[#allocation2 + $0x180] sm:$0xff]
        %v3253 = vld [vmem:[#allocation2 + $0x188] sm:$0xff]
        %v3254 = vld [vmem:[#allocation2 + $0x190] sm:$0xff]
        %v3255 = vld [vmem:[#allocation2 + $0x198] sm:$0xff]
        %v3256 = vld [vmem:[#allocation2 + $0x1a0] sm:$0xff]
        %v3257 = vld [vmem:[#allocation2 + $0x1a8] sm:$0xff]
        %v3258 = vld [vmem:[#allocation2 + $0x1b0] sm:$0xff]
        %v3259 = vld [vmem:[#allocation2 + $0x1b8] sm:$0xff]
        %v3260 = vld [vmem:[#allocation2 + $0x1c0] sm:$0xff]
        %v3261 = vld [vmem:[#allocation2 + $0x1c8] sm:$0xff]
        %v3262 = vld [vmem:[#allocation2 + $0x1d0] sm:$0xff]
        %v3263 = vld [vmem:[#allocation2 + $0x1d8] sm:$0xff]
        %v3264 = vld [vmem:[#allocation2 + $0x1e0] sm:$0xff]
        %v3265 = vld [vmem:[#allocation2 + $0x1e8] sm:$0xff]
        %v3266 = vld [vmem:[#allocation2 + $0x1f0] sm:$0xff]
        %v3267 = vld [vmem:[#allocation2 + $0x1f8] sm:$0xff]
        %v3268 = vld [vmem:[#allocation2 + $0x200] sm:$0xff]
        %v3269 = vld [vmem:[#allocation2 + $0x208] sm:$0xff]
        %v3270 = vld [vmem:[#allocation2 + $0x210] sm:$0xff]
        %v3271 = vld [vmem:[#allocation2 + $0x218] sm:$0xff]
        %v3272 = vld [vmem:[#allocation2 + $0x220] sm:$0xff]
        %v3273 = vld [vmem:[#allocation2 + $0x228] sm:$0xff]
        %v3274 = vld [vmem:[#allocation2 + $0x230] sm:$0xff]
        %v3275 = vld [vmem:[#allocation2 + $0x238] sm:$0xff]
        %v3276 = vld [vmem:[#allocation2 + $0x240] sm:$0xff]
        %v3277 = vld [vmem:[#allocation2 + $0x248] sm:$0xff]
        %v3278 = vld [vmem:[#allocation2 + $0x250] sm:$0xff]
        %v3279 = vld [vmem:[#allocation2 + $0x258] sm:$0xff]
        %v3280 = vld [vmem:[#allocation2 + $0x260] sm:$0xff]
        %v3281 = vld [vmem:[#allocation2 + $0x268] sm:$0xff]
        %v3282 = vld [vmem:[#allocation2 + $0x270] sm:$0xff]
        %v3283 = vld [vmem:[#allocation2 + $0x278] sm:$0xff]
        %v3284 = vld [vmem:[#allocation2 + $0x280] sm:$0xff]
        %v3285 = vld [vmem:[#allocation2 + $0x288] sm:$0xff]
        %v3286 = vld [vmem:[#allocation2 + $0x290] sm:$0xff]
        %v3287 = vld [vmem:[#allocation2 + $0x298] sm:$0xff]
        %v3288 = vld [vmem:[#allocation2 + $0x2a0] sm:$0xff]
        %v3289 = vld [vmem:[#allocation2 + $0x2a8] sm:$0xff]
        %v3290 = vld [vmem:[#allocation2 + $0x2b0] sm:$0xff]
        %v3291 = vld [vmem:[#allocation2 + $0x2b8] sm:$0xff]
        %v3292 = vld [vmem:[#allocation2 + $0x2c0] sm:$0xff]
        %v3293 = vld [vmem:[#allocation2 + $0x2c8] sm:$0xff]
        %v3294 = vld [vmem:[#allocation2 + $0x2d0] sm:$0xff]
        %v3295 = vld [vmem:[#allocation2 + $0x2d8] sm:$0xff]
        %v3296 = vld [vmem:[#allocation2 + $0x2e0] sm:$0xff]
        %v3297 = vld [vmem:[#allocation2 + $0x2e8] sm:$0xff]
        %v3298 = vld [vmem:[#allocation2 + $0x2f0] sm:$0xff]
        %v3299 = vld [vmem:[#allocation2 + $0x2f8] sm:$0xff]
        %v3300 = vld [vmem:[#allocation2 + $0x300] sm:$0xff]
        %v3301 = vld [vmem:[#allocation2 + $0x308] sm:$0xff]
        %v3302 = vld [vmem:[#allocation2 + $0x310] sm:$0xff]
        %v3303 = vld [vmem:[#allocation2 + $0x318] sm:$0xff]
        %v3304 = vld [vmem:[#allocation2 + $0x320] sm:$0xff]
        %v3305 = vld [vmem:[#allocation2 + $0x328] sm:$0xff]
        %v3306 = vld [vmem:[#allocation2 + $0x330] sm:$0xff]
        %v3307 = vld [vmem:[#allocation2 + $0x338] sm:$0xff]
        %v3308 = vld [vmem:[#allocation2 + $0x340] sm:$0xff]
        %v3309 = vld [vmem:[#allocation2 + $0x348] sm:$0xff]
        %v3310 = vld [vmem:[#allocation2 + $0x350] sm:$0xff]
        %v3311 = vld [vmem:[#allocation2 + $0x358] sm:$0xff]
        %v3312 = vld [vmem:[#allocation2 + $0x360] sm:$0xff]
        %v3313 = vld [vmem:[#allocation2 + $0x368] sm:$0xff]
        %v3314 = vld [vmem:[#allocation2 + $0x370] sm:$0xff]
        %v3315 = vld [vmem:[#allocation2 + $0x378] sm:$0xff]
        %v3316 = vld [vmem:[#allocation2 + $0x380] sm:$0xff]
        %v3317 = vld [vmem:[#allocation2 + $0x388] sm:$0xff]
        %v3318 = vld [vmem:[#allocation2 + $0x390] sm:$0xff]
        %v3319 = vld [vmem:[#allocation2 + $0x398] sm:$0xff]
        %v3320 = vld [vmem:[#allocation2 + $0x3a0] sm:$0xff]
        %v3321 = vld [vmem:[#allocation2 + $0x3a8] sm:$0xff]
        %v3322 = vld [vmem:[#allocation2 + $0x3b0] sm:$0xff]
        %v3323 = vld [vmem:[#allocation2 + $0x3b8] sm:$0xff]
        %v3324 = vld [vmem:[#allocation2 + $0x3c0] sm:$0xff]
        %v3325 = vld [vmem:[#allocation2 + $0x3c8] sm:$0xff]
        %v3326 = vld [vmem:[#allocation2 + $0x3d0] sm:$0xff]
        %v3327 = vld [vmem:[#allocation2 + $0x3d8] sm:$0xff]
        %v3328 = vld [vmem:[#allocation2 + $0x3e0] sm:$0xff]
        %v3329 = vld [vmem:[#allocation2 + $0x3e8] sm:$0xff]
        %v3330 = vld [vmem:[#allocation2 + $0x3f0] sm:$0xff]
        %v3331 = vld [vmem:[#allocation2 + $0x3f8] sm:$0xff]
        %3332 = vst.msk [vmem:[%s301] sm:$0xff] %vm3071, %v3204
        %3333 = vst.msk [vmem:[%s301 + $0x8] sm:$0xff] %vm3071, %v3205
        %3334 = vst.msk [vmem:[%s301 + $0x10] sm:$0xff] %vm3071, %v3206
        %3335 = vst.msk [vmem:[%s301 + $0x18] sm:$0xff] %vm3071, %v3207
        %3336 = vst.msk [vmem:[%s301 + $0x20] sm:$0xff] %vm3071, %v3208
        %3337 = vst.msk [vmem:[%s301 + $0x28] sm:$0xff] %vm3071, %v3209
        %3338 = vst.msk [vmem:[%s301 + $0x30] sm:$0xff] %vm3071, %v3210
        %3339 = vst.msk [vmem:[%s301 + $0x38] sm:$0xff] %vm3071, %v3211
        %3340 = vst.msk [vmem:[%s301 + $0x40] sm:$0xff] %vm3071, %v3212
        %3341 = vst.msk [vmem:[%s301 + $0x48] sm:$0xff] %vm3071, %v3213
        %3342 = vst.msk [vmem:[%s301 + $0x50] sm:$0xff] %vm3071, %v3214
        %3343 = vst.msk [vmem:[%s301 + $0x58] sm:$0xff] %vm3071, %v3215
        %3344 = vst.msk [vmem:[%s301 + $0x60] sm:$0xff] %vm3071, %v3216
        %3345 = vst.msk [vmem:[%s301 + $0x68] sm:$0xff] %vm3071, %v3217
        %3346 = vst.msk [vmem:[%s301 + $0x70] sm:$0xff] %vm3071, %v3218
        %3347 = vst.msk [vmem:[%s301 + $0x78] sm:$0xff] %vm3071, %v3219
        %3348 = vst.msk [vmem:[%s301 + $0x80] sm:$0xff] %vm3071, %v3220
        %3349 = vst.msk [vmem:[%s301 + $0x88] sm:$0xff] %vm3071, %v3221
        %3350 = vst.msk [vmem:[%s301 + $0x90] sm:$0xff] %vm3071, %v3222
        %3351 = vst.msk [vmem:[%s301 + $0x98] sm:$0xff] %vm3071, %v3223
        %3352 = vst.msk [vmem:[%s301 + $0xa0] sm:$0xff] %vm3071, %v3224
        %3353 = vst.msk [vmem:[%s301 + $0xa8] sm:$0xff] %vm3071, %v3225
        %3354 = vst.msk [vmem:[%s301 + $0xb0] sm:$0xff] %vm3071, %v3226
        %3355 = vst.msk [vmem:[%s301 + $0xb8] sm:$0xff] %vm3071, %v3227
        %3356 = vst.msk [vmem:[%s301 + $0xc0] sm:$0xff] %vm3071, %v3228
        %3357 = vst.msk [vmem:[%s301 + $0xc8] sm:$0xff] %vm3071, %v3229
        %3358 = vst.msk [vmem:[%s301 + $0xd0] sm:$0xff] %vm3071, %v3230
        %3359 = vst.msk [vmem:[%s301 + $0xd8] sm:$0xff] %vm3071, %v3231
        %3360 = vst.msk [vmem:[%s301 + $0xe0] sm:$0xff] %vm3071, %v3232
        %3361 = vst.msk [vmem:[%s301 + $0xe8] sm:$0xff] %vm3071, %v3233
        %3362 = vst.msk [vmem:[%s301 + $0xf0] sm:$0xff] %vm3071, %v3234
        %3363 = vst.msk [vmem:[%s301 + $0xf8] sm:$0xff] %vm3071, %v3235
        %3364 = vst.msk [vmem:[%s301 + $0x100] sm:$0xff] %vm3071, %v3236
        %3365 = vst.msk [vmem:[%s301 + $0x108] sm:$0xff] %vm3071, %v3237
        %3366 = vst.msk [vmem:[%s301 + $0x110] sm:$0xff] %vm3071, %v3238
        %3367 = vst.msk [vmem:[%s301 + $0x118] sm:$0xff] %vm3071, %v3239
        %3368 = vst.msk [vmem:[%s301 + $0x120] sm:$0xff] %vm3071, %v3240
        %3369 = vst.msk [vmem:[%s301 + $0x128] sm:$0xff] %vm3071, %v3241
        %3370 = vst.msk [vmem:[%s301 + $0x130] sm:$0xff] %vm3071, %v3242
        %3371 = vst.msk [vmem:[%s301 + $0x138] sm:$0xff] %vm3071, %v3243
        %3372 = vst.msk [vmem:[%s301 + $0x140] sm:$0xff] %vm3071, %v3244
        %3373 = vst.msk [vmem:[%s301 + $0x148] sm:$0xff] %vm3071, %v3245
        %3374 = vst.msk [vmem:[%s301 + $0x150] sm:$0xff] %vm3071, %v3246
        %3375 = vst.msk [vmem:[%s301 + $0x158] sm:$0xff] %vm3071, %v3247
        %3376 = vst.msk [vmem:[%s301 + $0x160] sm:$0xff] %vm3071, %v3248
        %3377 = vst.msk [vmem:[%s301 + $0x168] sm:$0xff] %vm3071, %v3249
        %3378 = vst.msk [vmem:[%s301 + $0x170] sm:$0xff] %vm3071, %v3250
        %3379 = vst.msk [vmem:[%s301 + $0x178] sm:$0xff] %vm3071, %v3251
        %3380 = vst.msk [vmem:[%s301 + $0x180] sm:$0xff] %vm3071, %v3252
        %3381 = vst.msk [vmem:[%s301 + $0x188] sm:$0xff] %vm3071, %v3253
        %3382 = vst.msk [vmem:[%s301 + $0x190] sm:$0xff] %vm3071, %v3254
        %3383 = vst.msk [vmem:[%s301 + $0x198] sm:$0xff] %vm3071, %v3255
        %3384 = vst.msk [vmem:[%s301 + $0x1a0] sm:$0xff] %vm3071, %v3256
        %3385 = vst.msk [vmem:[%s301 + $0x1a8] sm:$0xff] %vm3071, %v3257
        %3386 = vst.msk [vmem:[%s301 + $0x1b0] sm:$0xff] %vm3071, %v3258
        %3387 = vst.msk [vmem:[%s301 + $0x1b8] sm:$0xff] %vm3071, %v3259
        %3388 = vst.msk [vmem:[%s301 + $0x1c0] sm:$0xff] %vm3071, %v3260
        %3389 = vst.msk [vmem:[%s301 + $0x1c8] sm:$0xff] %vm3071, %v3261
        %3390 = vst.msk [vmem:[%s301 + $0x1d0] sm:$0xff] %vm3071, %v3262
        %3391 = vst.msk [vmem:[%s301 + $0x1d8] sm:$0xff] %vm3071, %v3263
        %3392 = vst.msk [vmem:[%s301 + $0x1e0] sm:$0xff] %vm3071, %v3264
        %3393 = vst.msk [vmem:[%s301 + $0x1e8] sm:$0xff] %vm3071, %v3265
        %3394 = vst.msk [vmem:[%s301 + $0x1f0] sm:$0xff] %vm3071, %v3266
        %3395 = vst.msk [vmem:[%s301 + $0x1f8] sm:$0xff] %vm3071, %v3267
        %3396 = vst.msk [vmem:[%s301 + $0x200] sm:$0xff] %vm3071, %v3268
        %3397 = vst.msk [vmem:[%s301 + $0x208] sm:$0xff] %vm3071, %v3269
        %3398 = vst.msk [vmem:[%s301 + $0x210] sm:$0xff] %vm3071, %v3270
        %3399 = vst.msk [vmem:[%s301 + $0x218] sm:$0xff] %vm3071, %v3271
        %3400 = vst.msk [vmem:[%s301 + $0x220] sm:$0xff] %vm3071, %v3272
        %3401 = vst.msk [vmem:[%s301 + $0x228] sm:$0xff] %vm3071, %v3273
        %3402 = vst.msk [vmem:[%s301 + $0x230] sm:$0xff] %vm3071, %v3274
        %3403 = vst.msk [vmem:[%s301 + $0x238] sm:$0xff] %vm3071, %v3275
        %3404 = vst.msk [vmem:[%s301 + $0x240] sm:$0xff] %vm3071, %v3276
        %3405 = vst.msk [vmem:[%s301 + $0x248] sm:$0xff] %vm3071, %v3277
        %3406 = vst.msk [vmem:[%s301 + $0x250] sm:$0xff] %vm3071, %v3278
        %3407 = vst.msk [vmem:[%s301 + $0x258] sm:$0xff] %vm3071, %v3279
        %3408 = vst.msk [vmem:[%s301 + $0x260] sm:$0xff] %vm3071, %v3280
        %3409 = vst.msk [vmem:[%s301 + $0x268] sm:$0xff] %vm3071, %v3281
        %3410 = vst.msk [vmem:[%s301 + $0x270] sm:$0xff] %vm3071, %v3282
        %3411 = vst.msk [vmem:[%s301 + $0x278] sm:$0xff] %vm3071, %v3283
        %3412 = vst.msk [vmem:[%s301 + $0x280] sm:$0xff] %vm3071, %v3284
        %3413 = vst.msk [vmem:[%s301 + $0x288] sm:$0xff] %vm3071, %v3285
        %3414 = vst.msk [vmem:[%s301 + $0x290] sm:$0xff] %vm3071, %v3286
        %3415 = vst.msk [vmem:[%s301 + $0x298] sm:$0xff] %vm3071, %v3287
        %3416 = vst.msk [vmem:[%s301 + $0x2a0] sm:$0xff] %vm3071, %v3288
        %3417 = vst.msk [vmem:[%s301 + $0x2a8] sm:$0xff] %vm3071, %v3289
        %3418 = vst.msk [vmem:[%s301 + $0x2b0] sm:$0xff] %vm3071, %v3290
        %3419 = vst.msk [vmem:[%s301 + $0x2b8] sm:$0xff] %vm3071, %v3291
        %3420 = vst.msk [vmem:[%s301 + $0x2c0] sm:$0xff] %vm3071, %v3292
        %3421 = vst.msk [vmem:[%s301 + $0x2c8] sm:$0xff] %vm3071, %v3293
        %3422 = vst.msk [vmem:[%s301 + $0x2d0] sm:$0xff] %vm3071, %v3294
        %3423 = vst.msk [vmem:[%s301 + $0x2d8] sm:$0xff] %vm3071, %v3295
        %3424 = vst.msk [vmem:[%s301 + $0x2e0] sm:$0xff] %vm3071, %v3296
        %3425 = vst.msk [vmem:[%s301 + $0x2e8] sm:$0xff] %vm3071, %v3297
        %3426 = vst.msk [vmem:[%s301 + $0x2f0] sm:$0xff] %vm3071, %v3298
        %3427 = vst.msk [vmem:[%s301 + $0x2f8] sm:$0xff] %vm3071, %v3299
        %3428 = vst.msk [vmem:[%s301 + $0x300] sm:$0xff] %vm3071, %v3300
        %3429 = vst.msk [vmem:[%s301 + $0x308] sm:$0xff] %vm3071, %v3301
        %3430 = vst.msk [vmem:[%s301 + $0x310] sm:$0xff] %vm3071, %v3302
        %3431 = vst.msk [vmem:[%s301 + $0x318] sm:$0xff] %vm3071, %v3303
        %3432 = vst.msk [vmem:[%s301 + $0x320] sm:$0xff] %vm3071, %v3304
        %3433 = vst.msk [vmem:[%s301 + $0x328] sm:$0xff] %vm3071, %v3305
        %3434 = vst.msk [vmem:[%s301 + $0x330] sm:$0xff] %vm3071, %v3306
        %3435 = vst.msk [vmem:[%s301 + $0x338] sm:$0xff] %vm3071, %v3307
        %3436 = vst.msk [vmem:[%s301 + $0x340] sm:$0xff] %vm3071, %v3308
        %3437 = vst.msk [vmem:[%s301 + $0x348] sm:$0xff] %vm3071, %v3309
        %3438 = vst.msk [vmem:[%s301 + $0x350] sm:$0xff] %vm3071, %v3310
        %3439 = vst.msk [vmem:[%s301 + $0x358] sm:$0xff] %vm3071, %v3311
        %3440 = vst.msk [vmem:[%s301 + $0x360] sm:$0xff] %vm3071, %v3312
        %3441 = vst.msk [vmem:[%s301 + $0x368] sm:$0xff] %vm3071, %v3313
        %3442 = vst.msk [vmem:[%s301 + $0x370] sm:$0xff] %vm3071, %v3314
        %3443 = vst.msk [vmem:[%s301 + $0x378] sm:$0xff] %vm3071, %v3315
        %3444 = vst.msk [vmem:[%s301 + $0x380] sm:$0xff] %vm3071, %v3316
        %3445 = vst.msk [vmem:[%s301 + $0x388] sm:$0xff] %vm3071, %v3317
        %3446 = vst.msk [vmem:[%s301 + $0x390] sm:$0xff] %vm3071, %v3318
        %3447 = vst.msk [vmem:[%s301 + $0x398] sm:$0xff] %vm3071, %v3319
        %3448 = vst.msk [vmem:[%s301 + $0x3a0] sm:$0xff] %vm3071, %v3320
        %3449 = vst.msk [vmem:[%s301 + $0x3a8] sm:$0xff] %vm3071, %v3321
        %3450 = vst.msk [vmem:[%s301 + $0x3b0] sm:$0xff] %vm3071, %v3322
        %3451 = vst.msk [vmem:[%s301 + $0x3b8] sm:$0xff] %vm3071, %v3323
        %3452 = vst.msk [vmem:[%s301 + $0x3c0] sm:$0xff] %vm3071, %v3324
        %3453 = vst.msk [vmem:[%s301 + $0x3c8] sm:$0xff] %vm3071, %v3325
        %3454 = vst.msk [vmem:[%s301 + $0x3d0] sm:$0xff] %vm3071, %v3326
        %3455 = vst.msk [vmem:[%s301 + $0x3d8] sm:$0xff] %vm3071, %v3327
        %3456 = vst.msk [vmem:[%s301 + $0x3e0] sm:$0xff] %vm3071, %v3328
        %3457 = vst.msk [vmem:[%s301 + $0x3e8] sm:$0xff] %vm3071, %v3329
        %3458 = vst.msk [vmem:[%s301 + $0x3f0] sm:$0xff] %vm3071, %v3330
        %3459 = vst.msk [vmem:[%s301 + $0x3f8] sm:$0xff] %vm3071, %v3331
      $region56: #{tpu_custom_call.1} parent=47 // pred_fallthru
        _
      %p3460 = scmp.lt.s32.totalorder %s22, 1
      %s3461 = scalar_select %p3460, %s22, 1
      %s3462 = smul.addr %s3461, 128
      %s3463 = smul.addr %s3462, 8
      %s3464 = scalar_lea.vmem %s7, %s3463
      // Predicated region
      $region57: #{tpu_custom_call.1} parent=47 // pred_check
        %p3465 = pneg %p202
      $region58: #{tpu_custom_call.1} parent=47 // pred_check_branch
        %3467 = sbr.rel (%p3465) target = $region60
      $region59: #{tpu_custom_call.1} parent=47 // pred_region
        _
      $region60: #{tpu_custom_call.1} parent=47 // pred_fallthru
        _
    $region48: #{tpu_custom_call.1} parent=5 // pred_fallthru
      _
    %p3468 = scmp.le.s32.totalorder 2, %s13
    // Predicated region
    $region61: #{tpu_custom_call.1} parent=5 // pred_check
      %p3469 = pneg %p3468
    $region62: #{tpu_custom_call.1} parent=5 // pred_check_branch
      %3471 = sbr.rel (%p3469) target = $region64
    $region63: #{tpu_custom_call.1} parent=5 // pred_region
      %s3472 = ssub.s32 %s13, 2
      // Predicated region
      $region65: #{tpu_custom_call.1} parent=63 // pred_check
        %p3473 = pneg %p208
      $region66: #{tpu_custom_call.1} parent=63 // pred_check_branch
        %3475 = sbr.rel (%p3473) target = $region68
      $region67: #{tpu_custom_call.1} parent=63 // pred_region
        %p3476 = scmp.lt.s32.totalorder %s24, 1
        %s3477 = scalar_select %p3476, %s24, 1
        %s3478 = smul.addr %s3477, 128
        %s3479 = smul.addr %s3478, 8
        %s3480 = scalar_lea.vmem %s7, %s3479
      $region68: #{tpu_custom_call.1} parent=63 // pred_fallthru
        _
    $region64: #{tpu_custom_call.1} parent=5 // pred_fallthru
      _
  $region6: #{tpu_custom_call.1} parent=0 // loop_footer
    %s17 = sadd.s32 1, %s13
  $region7: #{tpu_custom_call.1} parent=0 // loop_footer_branch
    %12 = sbr.rel target = $region3
  $region8: #{tpu_custom_call.1} parent=0 // loop_exit
    _

</llo_original>
